<compile_context>
chip_gen: v5e
topology: v5e:2x2
jax: 0.10.0
libtpu: 0.0.40
codegen_flags: <defaults>
</compile_context>

<pallas_src>
import jax
import jax.numpy as jnp
from jax.experimental import pallas as pl
from jax.experimental.pallas import tpu as pltpu

LN_EPS = 1e-5
TB_DEFAULT = 512  # batch tile (rows per grid step)


def _layernorm(h, gamma, beta):
    # LayerNorm over last axis, biased variance (matches torch.nn.LayerNorm).
    # Centered two-pass moments: avoids E[h^2] - mean^2 cancellation; the
    # extra subtract/square is pure VPU work hidden under the MXU.
    mean = jnp.mean(h, axis=-1, keepdims=True)
    c = h - mean
    var = jnp.mean(c * c, axis=-1, keepdims=True)
    inv = jax.lax.rsqrt(var + LN_EPS)
    return c * inv * gamma + beta


def resblock_kernel(x_ref, w1_ref, w2_ref, vec_ref, o_ref):
    x = x_ref[...].astype(jnp.float32)

    # Packed per-feature vectors: rows [b1, g1, be1, b2, g2, be2, pad, pad].
    b1 = vec_ref[0:1, :]
    g1 = vec_ref[1:2, :]
    be1 = vec_ref[2:3, :]
    b2 = vec_ref[3:4, :]
    g2 = vec_ref[4:5, :]
    be2 = vec_ref[5:6, :]

    # Linear 1 (dim -> dim): bf16 MXU matmul, f32 accumulation, bias in f32.
    h = jnp.dot(x.astype(jnp.bfloat16), w1_ref[...],
                preferred_element_type=jnp.float32)
    h = h + b1
    # LayerNorm 1 (f32) + ReLU
    h = _layernorm(h, g1, be1)
    h = jnp.maximum(h, 0.0)
    # Linear 2 (dim -> dim)
    h = jnp.dot(h.astype(jnp.bfloat16), w2_ref[...],
                preferred_element_type=jnp.float32)
    h = h + b2
    # LayerNorm 2 (f32)
    h = _layernorm(h, g2, be2)

    # Residual connection
    o_ref[...] = (x + h).astype(o_ref.dtype)


def _vmem_need_bytes(tb, d):
    tile_bytes = 2 * 2 * tb * d * 4      # x + out tiles, double-buffered, f32
    weight_bytes = 2 * d * d * 2         # two bf16 weights, single-buffered
    vec_bytes = 8 * d * 4                # packed bias / LN params
    scratch_bytes = 4 * tb * d * 4       # live in-kernel f32/bf16 temporaries
    return tile_bytes + weight_bytes + vec_bytes + scratch_bytes + (2 << 20)


def _vmem_capacity_bytes():
    try:
        return int(pltpu.get_tpu_info().vmem_capacity_bytes)
    except Exception:
        return 64 << 20  # conservative: v7x per-TensorCore VMEM


def residual_block(x, kparams, tb=TB_DEFAULT):
    """x: [batch, dim] f32; kparams: (w1_bf16 [D,D], w2_bf16 [D,D], vecs f32 [8,D])."""
    B, D = x.shape
    w1_bf, w2_bf, vecs = kparams

    budget = int(_vmem_capacity_bytes() * 0.8)

    # Pick the largest batch tile that fits the generation's VMEM budget.
    TB = min(tb, B)
    if TB < B:
        TB = max(8, (TB // 8) * 8)
    while TB > 8 and _vmem_need_bytes(TB, D) > budget:
        TB = max(8, TB // 2)

    grid = (pl.cdiv(B, TB),)

    act_spec = pl.BlockSpec((TB, D), lambda i: (i, 0))
    # Constant index_map -> resident in VMEM across all batch tiles; single
    # buffer (double-buffering a constant operand is pure VMEM waste).
    mat_spec = pl.BlockSpec((D, D), lambda i: (0, 0),
                            pipeline_mode=pl.Buffered(1))
    vec_spec = pl.BlockSpec((8, D), lambda i: (0, 0),
                            pipeline_mode=pl.Buffered(1))

    vmem_limit = min(max(_vmem_need_bytes(TB, D), 16 << 20), budget)

    return pl.pallas_call(
        resblock_kernel,
        out_shape=jax.ShapeDtypeStruct((B, D), x.dtype),
        grid=grid,
        in_specs=[act_spec, mat_spec, mat_spec, vec_spec],
        out_specs=act_spec,
        compiler_params=pltpu.CompilerParams(
            dimension_semantics=("parallel",),   # batch tiles split across TCs
            vmem_limit_bytes=int(vmem_limit)),
    )(x, w1_bf, w2_bf, vecs)


def init_params(key, dim):
    """Deterministic f32 params mirroring nn.Linear / nn.LayerNorm defaults."""
    k1, k2, k3, k4 = jax.random.split(key, 4)
    bound = 1.0 / (dim ** 0.5)
    # nn.Linear stores W as [out, in]; keep it transposed [in, out] for x @ W_t.
    w1_t = jax.random.uniform(k1, (dim, dim), jnp.float32, -bound, bound)
    b1 = jax.random.uniform(k2, (1, dim), jnp.float32, -bound, bound)
    w2_t = jax.random.uniform(k3, (dim, dim), jnp.float32, -bound, bound)
    b2 = jax.random.uniform(k4, (1, dim), jnp.float32, -bound, bound)
    # nn.LayerNorm default affine params: gamma=1, beta=0.
    g1 = jnp.ones((1, dim), jnp.float32)
    be1 = jnp.zeros((1, dim), jnp.float32)
    g2 = jnp.ones((1, dim), jnp.float32)
    be2 = jnp.zeros((1, dim), jnp.float32)
    return (w1_t, b1, g1, be1, w2_t, b2, g2, be2)


def pack_params(params):
    """One-time conversion to kernel format: bf16 weights + packed (8, D) vectors.

    Hoisted out of the hot path so the f32->bf16 weight casts (HBM traffic
    ~= 6*D^2 bytes) run once, not per forward call."""
    w1_t, b1, g1, be1, w2_t, b2, g2, be2 = params
    D = w1_t.shape[0]
    vecs = jnp.zeros((8, D), jnp.float32)
    vecs = vecs.at[0].set(b1[0]).at[1].set(g1[0]).at[2].set(be1[0])
    vecs = vecs.at[3].set(b2[0]).at[4].set(g2[0]).at[5].set(be2[0])
    return (w1_t.astype(jnp.bfloat16), w2_t.astype(jnp.bfloat16), vecs)


def residual_block_ref(x, params):
    """Pure-JAX reference mirroring the kernel math (bf16 matmuls, f32 rest)."""
    w1_t, b1, g1, be1, w2_t, b2, g2, be2 = params
    h = jnp.dot(x.astype(jnp.bfloat16), w1_t.astype(jnp.bfloat16),
                preferred_element_type=jnp.float32) + b1
    h = _layernorm(h, g1, be1)
    h = jnp.maximum(h, 0.0)
    h = jnp.dot(h.astype(jnp.bfloat16), w2_t.astype(jnp.bfloat16),
                preferred_element_type=jnp.float32) + b2
    h = _layernorm(h, g2, be2)
    return x + h


if __name__ == "__main__":
    # Lane-dense shapes: D multiple of 128, batch a multiple of the tile.
    batch, dim = 512, 256
    key = jax.random.PRNGKey(0)
    kx, kp = jax.random.split(key)
    x = jax.random.normal(kx, (batch, dim), jnp.float32)
    params = init_params(kp, dim)
    kparams = pack_params(params)

    # Default path (single large batch tile).
    out = residual_block(x, kparams)
    out = jax.block_until_ready(out)

    # Smaller tile to exercise the multi-step grid / pipelining path.
    out_tiled = residual_block(x, kparams, tb=128)
    out_tiled = jax.block_until_ready(out_tiled)

    ref = residual_block_ref(x, params)
    assert out.shape == (batch, dim)
    assert jnp.allclose(out, ref, atol=2e-2, rtol=2e-2), "mismatch vs reference"
    assert jnp.allclose(out_tiled, ref, atol=2e-2, rtol=2e-2), "tiled mismatch"

    print("KERNEL_OK")
</pallas_src>

<mosaic_0001>
module attributes {stable_mosaic.version = 11 : i64} {
  func.func @resblock_kernel(%arg0: i32, %arg1: memref<512x256xf32, #tpu.memory_space<vmem>>, %arg2: memref<256x256xbf16, #tpu.memory_space<vmem>>, %arg3: memref<256x256xbf16, #tpu.memory_space<vmem>>, %arg4: memref<8x256xf32, #tpu.memory_space<vmem>>, %arg5: memref<512x256xf32, #tpu.memory_space<vmem>>) attributes {dimension_semantics = [#tpu.dimension_semantics<parallel>], iteration_bounds = array<i64: 1>, scalar_prefetch = 0 : i64, scratch_operands = 0 : i64, tpu.core_type = #tpu.core_type<tc>, window_params = [{transform_indices = @transform_0, window_bounds = array<i64: 512, 256>}, {pipeline_mode = #tpu.pipeline_mode<synchronous>, transform_indices = @transform_1, window_bounds = array<i64: 256, 256>}, {pipeline_mode = #tpu.pipeline_mode<synchronous>, transform_indices = @transform_2, window_bounds = array<i64: 256, 256>}, {pipeline_mode = #tpu.pipeline_mode<synchronous>, transform_indices = @transform_3, window_bounds = array<i64: 8, 256>}, {transform_indices = @transform_4, window_bounds = array<i64: 512, 256>}]} {
    %c0 = arith.constant 0 : index
    %c0_0 = arith.constant 0 : index
    %0 = vector.load %arg1[%c0, %c0_0] : memref<512x256xf32, #tpu.memory_space<vmem>>, vector<512x256xf32>
    %c0_1 = arith.constant 0 : index
    %c0_2 = arith.constant 0 : index
    %1 = vector.load %arg4[%c0_1, %c0_2] : memref<8x256xf32, #tpu.memory_space<vmem>>, vector<1x256xf32>
    %c1 = arith.constant 1 : index
    %c0_3 = arith.constant 0 : index
    %2 = vector.load %arg4[%c1, %c0_3] : memref<8x256xf32, #tpu.memory_space<vmem>>, vector<1x256xf32>
    %c2 = arith.constant 2 : index
    %c0_4 = arith.constant 0 : index
    %3 = vector.load %arg4[%c2, %c0_4] : memref<8x256xf32, #tpu.memory_space<vmem>>, vector<1x256xf32>
    %c3 = arith.constant 3 : index
    %c0_5 = arith.constant 0 : index
    %4 = vector.load %arg4[%c3, %c0_5] : memref<8x256xf32, #tpu.memory_space<vmem>>, vector<1x256xf32>
    %c4 = arith.constant 4 : index
    %c0_6 = arith.constant 0 : index
    %5 = vector.load %arg4[%c4, %c0_6] : memref<8x256xf32, #tpu.memory_space<vmem>>, vector<1x256xf32>
    %c5 = arith.constant 5 : index
    %c0_7 = arith.constant 0 : index
    %6 = vector.load %arg4[%c5, %c0_7] : memref<8x256xf32, #tpu.memory_space<vmem>>, vector<1x256xf32>
    %7 = arith.truncf %0 : vector<512x256xf32> to vector<512x256xbf16>
    %c0_8 = arith.constant 0 : index
    %c0_9 = arith.constant 0 : index
    %8 = vector.load %arg2[%c0_8, %c0_9] : memref<256x256xbf16, #tpu.memory_space<vmem>>, vector<256x256xbf16>
    %cst = arith.constant dense<0.000000e+00> : vector<512x256xf32>
    %9 = tpu.matmul %7, %8, %cst {dimension_numbers = #tpu.dot_dimension_numbers<[1], [0], [0], [1], [0, 0, 1, 1], [], []>} : vector<512x256xbf16>, vector<256x256xbf16>, vector<512x256xf32> -> vector<512x256xf32>
    %10 = vector.broadcast %1 : vector<1x256xf32> to vector<512x256xf32>
    %11 = arith.addf %9, %10 : vector<512x256xf32>
    %cst_10 = arith.constant dense<0.000000e+00> : vector<512xf32>
    %12 = vector.multi_reduction <add>, %11, %cst_10 [1] : vector<512x256xf32> to vector<512xf32>
    %13 = vector.shape_cast %12 : vector<512xf32> to vector<512x1xf32>
    %cst_11 = arith.constant 2.560000e+02 : f32
    %14 = vector.broadcast %cst_11 : f32 to vector<512x1xf32>
    %15 = arith.divf %13, %14 : vector<512x1xf32>
    %16 = vector.broadcast %15 : vector<512x1xf32> to vector<512x256xf32>
    %17 = arith.subf %11, %16 : vector<512x256xf32>
    %18 = arith.mulf %17, %17 : vector<512x256xf32>
    %cst_12 = arith.constant dense<0.000000e+00> : vector<512xf32>
    %19 = vector.multi_reduction <add>, %18, %cst_12 [1] : vector<512x256xf32> to vector<512xf32>
    %20 = vector.shape_cast %19 : vector<512xf32> to vector<512x1xf32>
    %cst_13 = arith.constant 2.560000e+02 : f32
    %21 = vector.broadcast %cst_13 : f32 to vector<512x1xf32>
    %22 = arith.divf %20, %21 : vector<512x1xf32>
    %cst_14 = arith.constant 9.99999974E-6 : f32
    %23 = vector.broadcast %cst_14 : f32 to vector<512x1xf32>
    %24 = arith.addf %22, %23 : vector<512x1xf32>
    %25 = math.rsqrt %24 : vector<512x1xf32>
    %26 = vector.broadcast %25 : vector<512x1xf32> to vector<512x256xf32>
    %27 = arith.mulf %17, %26 : vector<512x256xf32>
    %28 = vector.broadcast %2 : vector<1x256xf32> to vector<512x256xf32>
    %29 = arith.mulf %27, %28 : vector<512x256xf32>
    %30 = vector.broadcast %3 : vector<1x256xf32> to vector<512x256xf32>
    %31 = arith.addf %29, %30 : vector<512x256xf32>
    %cst_15 = arith.constant 0.000000e+00 : f32
    %32 = vector.broadcast %cst_15 : f32 to vector<512x256xf32>
    %33 = arith.maximumf %31, %32 : vector<512x256xf32>
    %34 = arith.truncf %33 : vector<512x256xf32> to vector<512x256xbf16>
    %c0_16 = arith.constant 0 : index
    %c0_17 = arith.constant 0 : index
    %35 = vector.load %arg3[%c0_16, %c0_17] : memref<256x256xbf16, #tpu.memory_space<vmem>>, vector<256x256xbf16>
    %cst_18 = arith.constant dense<0.000000e+00> : vector<512x256xf32>
    %36 = tpu.matmul %34, %35, %cst_18 {dimension_numbers = #tpu.dot_dimension_numbers<[1], [0], [0], [1], [0, 0, 1, 1], [], []>} : vector<512x256xbf16>, vector<256x256xbf16>, vector<512x256xf32> -> vector<512x256xf32>
    %37 = vector.broadcast %4 : vector<1x256xf32> to vector<512x256xf32>
    %38 = arith.addf %36, %37 : vector<512x256xf32>
    %cst_19 = arith.constant dense<0.000000e+00> : vector<512xf32>
    %39 = vector.multi_reduction <add>, %38, %cst_19 [1] : vector<512x256xf32> to vector<512xf32>
    %40 = vector.shape_cast %39 : vector<512xf32> to vector<512x1xf32>
    %cst_20 = arith.constant 2.560000e+02 : f32
    %41 = vector.broadcast %cst_20 : f32 to vector<512x1xf32>
    %42 = arith.divf %40, %41 : vector<512x1xf32>
    %43 = vector.broadcast %42 : vector<512x1xf32> to vector<512x256xf32>
    %44 = arith.subf %38, %43 : vector<512x256xf32>
    %45 = arith.mulf %44, %44 : vector<512x256xf32>
    %cst_21 = arith.constant dense<0.000000e+00> : vector<512xf32>
    %46 = vector.multi_reduction <add>, %45, %cst_21 [1] : vector<512x256xf32> to vector<512xf32>
    %47 = vector.shape_cast %46 : vector<512xf32> to vector<512x1xf32>
    %cst_22 = arith.constant 2.560000e+02 : f32
    %48 = vector.broadcast %cst_22 : f32 to vector<512x1xf32>
    %49 = arith.divf %47, %48 : vector<512x1xf32>
    %cst_23 = arith.constant 9.99999974E-6 : f32
    %50 = vector.broadcast %cst_23 : f32 to vector<512x1xf32>
    %51 = arith.addf %49, %50 : vector<512x1xf32>
    %52 = math.rsqrt %51 : vector<512x1xf32>
    %53 = vector.broadcast %52 : vector<512x1xf32> to vector<512x256xf32>
    %54 = arith.mulf %44, %53 : vector<512x256xf32>
    %55 = vector.broadcast %5 : vector<1x256xf32> to vector<512x256xf32>
    %56 = arith.mulf %54, %55 : vector<512x256xf32>
    %57 = vector.broadcast %6 : vector<1x256xf32> to vector<512x256xf32>
    %58 = arith.addf %56, %57 : vector<512x256xf32>
    %59 = arith.addf %0, %58 : vector<512x256xf32>
    %c0_24 = arith.constant 0 : index
    %c0_25 = arith.constant 0 : index
    %60 = vector.load %arg5[%c0_24, %c0_25] : memref<512x256xf32, #tpu.memory_space<vmem>>, vector<512x256xf32>
    tpu.vector_store %arg5[%c0_24, %c0_25], %59 {strides = array<i32>} : memref<512x256xf32, #tpu.memory_space<vmem>>, vector<512x256xf32>,
    return
  }
  func.func @transform_0(%arg0: i32) -> (i32, i32) {
    %c0_i32 = arith.constant 0 : i32
    %c0_i32_0 = arith.constant 0 : i32
    return %arg0, %c0_i32 : i32, i32
  }
  func.func @transform_1(%arg0: i32) -> (i32, i32) {
    %c0_i32 = arith.constant 0 : i32
    %c0_i32_0 = arith.constant 0 : i32
    %c0_i32_1 = arith.constant 0 : i32
    return %c0_i32, %c0_i32_0 : i32, i32
  }
  func.func @transform_2(%arg0: i32) -> (i32, i32) {
    %c0_i32 = arith.constant 0 : i32
    %c0_i32_0 = arith.constant 0 : i32
    %c0_i32_1 = arith.constant 0 : i32
    return %c0_i32, %c0_i32_0 : i32, i32
  }
  func.func @transform_3(%arg0: i32) -> (i32, i32) {
    %c0_i32 = arith.constant 0 : i32
    %c0_i32_0 = arith.constant 0 : i32
    %c0_i32_1 = arith.constant 0 : i32
    return %c0_i32, %c0_i32_0 : i32, i32
  }
  func.func @transform_4(%arg0: i32) -> (i32, i32) {
    %c0_i32 = arith.constant 0 : i32
    %c0_i32_0 = arith.constant 0 : i32
    return %arg0, %c0_i32 : i32, i32
  }
}

</mosaic_0001>

<llo_original>
// kernel: tpu_custom_call.1
$region0: #{tpu_custom_call.1}
  #allocation0 [shape = 'u32[]', space=smem, size = 0x4, offset = 0x4, fixed_abs, tag = 'smem constant byte address 0x4 - core index']
  #allocation1 [shape = 'u32[72,128]{1,0:T(1,128)}', space=vmem, size = 0x9000, scoped, tag = 'internal scratch']
  %s0 = inlined_call_operand.hbm [shape: f32[512,256], index: 0, kind: input, shape index: {}]
  %s1 = inlined_call_operand.hbm [shape: bf16[256,256], index: 1, kind: input, shape index: {}]
  %s2 = inlined_call_operand.hbm [shape: bf16[256,256], index: 2, kind: input, shape index: {}]
  %s3 = inlined_call_operand.hbm [shape: f32[8,256], index: 3, kind: input, shape index: {}]
  %s4 = inlined_call_operand.hbm [shape: f32[512,256], index: 4, kind: output, shape index: {}]
  %s5 = sld [smem:[#allocation0]]
  $region42: #{tpu_custom_call.1} parent=0
    _
  %s7 = ssub.s32 1, %s5
  %s8 = scalar_select 0, %s7, %s5
  $region1: #{tpu_custom_call.1} parent=0
    #allocation2 [shape = 'u8[524288]{0}', space=vmem, size = 0x80000, scoped, tag = 'input window, operand 0, single buffered']
    #allocation3 [shape = 's32[1]{0}', space=sflag, size = 0x4, scoped, tag = 'scoped memory for tpu_custom_call.1']
    #allocation4 [shape = 's32[1]{0}', space=sflag, size = 0x4, scoped, tag = 'scoped memory for tpu_custom_call.1']
    #allocation5 [shape = 'u8[131072]{0}', space=vmem, size = 0x20000, scoped, tag = 'input window, operand 1, single buffered']
    #allocation6 [shape = 's32[1]{0}', space=sflag, size = 0x4, scoped, tag = 'scoped memory for tpu_custom_call.1']
    #allocation7 [shape = 'u8[131072]{0}', space=vmem, size = 0x20000, scoped, tag = 'input window, operand 2, single buffered']
    #allocation8 [shape = 'u8[8192]{0}', space=vmem, size = 0x2000, scoped, tag = 'input window, operand 3, single buffered']
    #allocation9 [shape = 's32[1]{0}', space=sflag, size = 0x4, scoped, tag = 'scoped memory for tpu_custom_call.1']
    #allocation10 [shape = 'u8[524288]{0}', space=vmem, size = 0x80000, scoped, tag = 'output window, operand 0, single buffered']
    %9 = vsyncpa [#allocation3], 0
    %10 = vsyncpa [#allocation6], 0
    %11 = vsyncpa [#allocation9], 0
    %12 = vsyncpa [#allocation4], 0
    // Predicated region
    $region2: #{tpu_custom_call.1} parent=1 // pred_check
      _
    $region3: #{tpu_custom_call.1} parent=1 // pred_check_branch
      %14 = sbr.rel (0) target = $region5
    $region4: #{tpu_custom_call.1} parent=1 // pred_region
      %16 = vsyncadd [#allocation3], 0
      %s17 = sshll.u32 %s0, 4
      %s18 = int_to_ptr.hbm [resolvable:$true] %s17
      %s19 = sshll.u32 [#allocation2], 4
      %s20 = int_to_ptr.vmem [resolvable:$true] %s19
      %25 = dma.hbm_to_vmem [thread:$0]  %s18, 16384, %s20, [#allocation3], 256, 256, 16
    $region5: #{tpu_custom_call.1} parent=1 // pred_fallthru
      _
    // Predicated region
    $region6: #{tpu_custom_call.1} parent=1 // pred_check
      _
    $region7: #{tpu_custom_call.1} parent=1 // pred_check_branch
      %27 = sbr.rel (0) target = $region9
    $region8: #{tpu_custom_call.1} parent=1 // pred_region
      %29 = vsyncadd [#allocation6], 0
      %s30 = sshll.u32 %s1, 4
      %s31 = int_to_ptr.hbm [resolvable:$true] %s30
      %s32 = sshll.u32 [#allocation5], 4
      %s33 = int_to_ptr.vmem [resolvable:$true] %s32
      %38 = dma.hbm_to_vmem [thread:$0]  %s31, 4096, %s33, [#allocation6], 128, 128, 8
    $region9: #{tpu_custom_call.1} parent=1 // pred_fallthru
      _
    // Predicated region
    $region10: #{tpu_custom_call.1} parent=1 // pred_check
      _
    $region11: #{tpu_custom_call.1} parent=1 // pred_check_branch
      %40 = sbr.rel (0) target = $region13
    $region12: #{tpu_custom_call.1} parent=1 // pred_region
      %42 = vsyncadd [#allocation6], 0
      %s43 = sshll.u32 %s2, 4
      %s44 = int_to_ptr.hbm [resolvable:$true] %s43
      %s45 = sshll.u32 [#allocation7], 4
      %s46 = int_to_ptr.vmem [resolvable:$true] %s45
      %51 = dma.hbm_to_vmem [thread:$0]  %s44, 4096, %s46, [#allocation6], 128, 128, 8
    $region13: #{tpu_custom_call.1} parent=1 // pred_fallthru
      _
    // Predicated region
    $region14: #{tpu_custom_call.1} parent=1 // pred_check
      _
    $region15: #{tpu_custom_call.1} parent=1 // pred_check_branch
      %53 = sbr.rel (0) target = $region17
    $region16: #{tpu_custom_call.1} parent=1 // pred_region
      %55 = vsyncadd [#allocation9], 0
      %s57 = sshll.u32 %s3, 4
      %s58 = int_to_ptr.hbm [resolvable:$true] %s57
      %s59 = sshll.u32 [#allocation8], 4
      %s60 = int_to_ptr.vmem [resolvable:$true] %s59
      %62 = dma.hbm_to_vmem [thread:$0]  %s58, 256, %s60, [#allocation9]
    $region17: #{tpu_custom_call.1} parent=1 // pred_fallthru
      _
    // Predicated region
    $region18: #{tpu_custom_call.1} parent=1 // pred_check
      _
    $region19: #{tpu_custom_call.1} parent=1 // pred_check_branch
      %64 = sbr.rel (0) target = $region21
    $region20: #{tpu_custom_call.1} parent=1 // pred_region
      %66 = dma.done [#allocation3], 16384
    $region21: #{tpu_custom_call.1} parent=1 // pred_fallthru
      _
    // Predicated region
    $region22: #{tpu_custom_call.1} parent=1 // pred_check
      _
    $region23: #{tpu_custom_call.1} parent=1 // pred_check_branch
      %68 = sbr.rel (0) target = $region25
    $region24: #{tpu_custom_call.1} parent=1 // pred_region
      %70 = dma.done [#allocation6], 4096
    $region25: #{tpu_custom_call.1} parent=1 // pred_fallthru
      _
    // Predicated region
    $region26: #{tpu_custom_call.1} parent=1 // pred_check
      _
    $region27: #{tpu_custom_call.1} parent=1 // pred_check_branch
      %72 = sbr.rel (0) target = $region29
    $region28: #{tpu_custom_call.1} parent=1 // pred_region
      %74 = dma.done [#allocation6], 4096
    $region29: #{tpu_custom_call.1} parent=1 // pred_fallthru
      _
    // Predicated region
    $region30: #{tpu_custom_call.1} parent=1 // pred_check
      _
    $region31: #{tpu_custom_call.1} parent=1 // pred_check_branch
      %76 = sbr.rel (0) target = $region33
    $region32: #{tpu_custom_call.1} parent=1 // pred_region
      %78 = dma.done [#allocation9], 256
    $region33: #{tpu_custom_call.1} parent=1 // pred_fallthru
      _
    %v79 = vld [vmem:[#allocation2] sm:$0xff]
    %v80 = vld [vmem:[#allocation2 + $0x8] sm:$0xff]
    %v81 = vld [vmem:[#allocation2 + $0x10] sm:$0xff]
    %v82 = vld [vmem:[#allocation2 + $0x18] sm:$0xff]
    %v83 = vld [vmem:[#allocation2 + $0x20] sm:$0xff]
    %v84 = vld [vmem:[#allocation2 + $0x28] sm:$0xff]
    %v85 = vld [vmem:[#allocation2 + $0x30] sm:$0xff]
    %v86 = vld [vmem:[#allocation2 + $0x38] sm:$0xff]
    %v87 = vld [vmem:[#allocation2 + $0x40] sm:$0xff]
    %v88 = vld [vmem:[#allocation2 + $0x48] sm:$0xff]
    %v89 = vld [vmem:[#allocation2 + $0x50] sm:$0xff]
    %v90 = vld [vmem:[#allocation2 + $0x58] sm:$0xff]
    %v91 = vld [vmem:[#allocation2 + $0x60] sm:$0xff]
    %v92 = vld [vmem:[#allocation2 + $0x68] sm:$0xff]
    %v93 = vld [vmem:[#allocation2 + $0x70] sm:$0xff]
    %v94 = vld [vmem:[#allocation2 + $0x78] sm:$0xff]
    %v95 = vld [vmem:[#allocation2 + $0x80] sm:$0xff]
    %v96 = vld [vmem:[#allocation2 + $0x88] sm:$0xff]
    %v97 = vld [vmem:[#allocation2 + $0x90] sm:$0xff]
    %v98 = vld [vmem:[#allocation2 + $0x98] sm:$0xff]
    %v99 = vld [vmem:[#allocation2 + $0xa0] sm:$0xff]
    %v100 = vld [vmem:[#allocation2 + $0xa8] sm:$0xff]
    %v101 = vld [vmem:[#allocation2 + $0xb0] sm:$0xff]
    %v102 = vld [vmem:[#allocation2 + $0xb8] sm:$0xff]
    %v103 = vld [vmem:[#allocation2 + $0xc0] sm:$0xff]
    %v104 = vld [vmem:[#allocation2 + $0xc8] sm:$0xff]
    %v105 = vld [vmem:[#allocation2 + $0xd0] sm:$0xff]
    %v106 = vld [vmem:[#allocation2 + $0xd8] sm:$0xff]
    %v107 = vld [vmem:[#allocation2 + $0xe0] sm:$0xff]
    %v108 = vld [vmem:[#allocation2 + $0xe8] sm:$0xff]
    %v109 = vld [vmem:[#allocation2 + $0xf0] sm:$0xff]
    %v110 = vld [vmem:[#allocation2 + $0xf8] sm:$0xff]
    %v111 = vld [vmem:[#allocation2 + $0x100] sm:$0xff]
    %v112 = vld [vmem:[#allocation2 + $0x108] sm:$0xff]
    %v113 = vld [vmem:[#allocation2 + $0x110] sm:$0xff]
    %v114 = vld [vmem:[#allocation2 + $0x118] sm:$0xff]
    %v115 = vld [vmem:[#allocation2 + $0x120] sm:$0xff]
    %v116 = vld [vmem:[#allocation2 + $0x128] sm:$0xff]
    %v117 = vld [vmem:[#allocation2 + $0x130] sm:$0xff]
    %v118 = vld [vmem:[#allocation2 + $0x138] sm:$0xff]
    %v119 = vld [vmem:[#allocation2 + $0x140] sm:$0xff]
    %v120 = vld [vmem:[#allocation2 + $0x148] sm:$0xff]
    %v121 = vld [vmem:[#allocation2 + $0x150] sm:$0xff]
    %v122 = vld [vmem:[#allocation2 + $0x158] sm:$0xff]
    %v123 = vld [vmem:[#allocation2 + $0x160] sm:$0xff]
    %v124 = vld [vmem:[#allocation2 + $0x168] sm:$0xff]
    %v125 = vld [vmem:[#allocation2 + $0x170] sm:$0xff]
    %v126 = vld [vmem:[#allocation2 + $0x178] sm:$0xff]
    %v127 = vld [vmem:[#allocation2 + $0x180] sm:$0xff]
    %v128 = vld [vmem:[#allocation2 + $0x188] sm:$0xff]
    %v129 = vld [vmem:[#allocation2 + $0x190] sm:$0xff]
    %v130 = vld [vmem:[#allocation2 + $0x198] sm:$0xff]
    %v131 = vld [vmem:[#allocation2 + $0x1a0] sm:$0xff]
    %v132 = vld [vmem:[#allocation2 + $0x1a8] sm:$0xff]
    %v133 = vld [vmem:[#allocation2 + $0x1b0] sm:$0xff]
    %v134 = vld [vmem:[#allocation2 + $0x1b8] sm:$0xff]
    %v135 = vld [vmem:[#allocation2 + $0x1c0] sm:$0xff]
    %v136 = vld [vmem:[#allocation2 + $0x1c8] sm:$0xff]
    %v137 = vld [vmem:[#allocation2 + $0x1d0] sm:$0xff]
    %v138 = vld [vmem:[#allocation2 + $0x1d8] sm:$0xff]
    %v139 = vld [vmem:[#allocation2 + $0x1e0] sm:$0xff]
    %v140 = vld [vmem:[#allocation2 + $0x1e8] sm:$0xff]
    %v141 = vld [vmem:[#allocation2 + $0x1f0] sm:$0xff]
    %v142 = vld [vmem:[#allocation2 + $0x1f8] sm:$0xff]
    %v143 = vld [vmem:[#allocation2 + $0x200] sm:$0xff]
    %v144 = vld [vmem:[#allocation2 + $0x208] sm:$0xff]
    %v145 = vld [vmem:[#allocation2 + $0x210] sm:$0xff]
    %v146 = vld [vmem:[#allocation2 + $0x218] sm:$0xff]
    %v147 = vld [vmem:[#allocation2 + $0x220] sm:$0xff]
    %v148 = vld [vmem:[#allocation2 + $0x228] sm:$0xff]
    %v149 = vld [vmem:[#allocation2 + $0x230] sm:$0xff]
    %v150 = vld [vmem:[#allocation2 + $0x238] sm:$0xff]
    %v151 = vld [vmem:[#allocation2 + $0x240] sm:$0xff]
    %v152 = vld [vmem:[#allocation2 + $0x248] sm:$0xff]
    %v153 = vld [vmem:[#allocation2 + $0x250] sm:$0xff]
    %v154 = vld [vmem:[#allocation2 + $0x258] sm:$0xff]
    %v155 = vld [vmem:[#allocation2 + $0x260] sm:$0xff]
    %v156 = vld [vmem:[#allocation2 + $0x268] sm:$0xff]
    %v157 = vld [vmem:[#allocation2 + $0x270] sm:$0xff]
    %v158 = vld [vmem:[#allocation2 + $0x278] sm:$0xff]
    %v159 = vld [vmem:[#allocation2 + $0x280] sm:$0xff]
    %v160 = vld [vmem:[#allocation2 + $0x288] sm:$0xff]
    %v161 = vld [vmem:[#allocation2 + $0x290] sm:$0xff]
    %v162 = vld [vmem:[#allocation2 + $0x298] sm:$0xff]
    %v163 = vld [vmem:[#allocation2 + $0x2a0] sm:$0xff]
    %v164 = vld [vmem:[#allocation2 + $0x2a8] sm:$0xff]
    %v165 = vld [vmem:[#allocation2 + $0x2b0] sm:$0xff]
    %v166 = vld [vmem:[#allocation2 + $0x2b8] sm:$0xff]
    %v167 = vld [vmem:[#allocation2 + $0x2c0] sm:$0xff]
    %v168 = vld [vmem:[#allocation2 + $0x2c8] sm:$0xff]
    %v169 = vld [vmem:[#allocation2 + $0x2d0] sm:$0xff]
    %v170 = vld [vmem:[#allocation2 + $0x2d8] sm:$0xff]
    %v171 = vld [vmem:[#allocation2 + $0x2e0] sm:$0xff]
    %v172 = vld [vmem:[#allocation2 + $0x2e8] sm:$0xff]
    %v173 = vld [vmem:[#allocation2 + $0x2f0] sm:$0xff]
    %v174 = vld [vmem:[#allocation2 + $0x2f8] sm:$0xff]
    %v175 = vld [vmem:[#allocation2 + $0x300] sm:$0xff]
    %v176 = vld [vmem:[#allocation2 + $0x308] sm:$0xff]
    %v177 = vld [vmem:[#allocation2 + $0x310] sm:$0xff]
    %v178 = vld [vmem:[#allocation2 + $0x318] sm:$0xff]
    %v179 = vld [vmem:[#allocation2 + $0x320] sm:$0xff]
    %v180 = vld [vmem:[#allocation2 + $0x328] sm:$0xff]
    %v181 = vld [vmem:[#allocation2 + $0x330] sm:$0xff]
    %v182 = vld [vmem:[#allocation2 + $0x338] sm:$0xff]
    %v183 = vld [vmem:[#allocation2 + $0x340] sm:$0xff]
    %v184 = vld [vmem:[#allocation2 + $0x348] sm:$0xff]
    %v185 = vld [vmem:[#allocation2 + $0x350] sm:$0xff]
    %v186 = vld [vmem:[#allocation2 + $0x358] sm:$0xff]
    %v187 = vld [vmem:[#allocation2 + $0x360] sm:$0xff]
    %v188 = vld [vmem:[#allocation2 + $0x368] sm:$0xff]
    %v189 = vld [vmem:[#allocation2 + $0x370] sm:$0xff]
    %v190 = vld [vmem:[#allocation2 + $0x378] sm:$0xff]
    %v191 = vld [vmem:[#allocation2 + $0x380] sm:$0xff]
    %v192 = vld [vmem:[#allocation2 + $0x388] sm:$0xff]
    %v193 = vld [vmem:[#allocation2 + $0x390] sm:$0xff]
    %v194 = vld [vmem:[#allocation2 + $0x398] sm:$0xff]
    %v195 = vld [vmem:[#allocation2 + $0x3a0] sm:$0xff]
    %v196 = vld [vmem:[#allocation2 + $0x3a8] sm:$0xff]
    %v197 = vld [vmem:[#allocation2 + $0x3b0] sm:$0xff]
    %v198 = vld [vmem:[#allocation2 + $0x3b8] sm:$0xff]
    %v199 = vld [vmem:[#allocation2 + $0x3c0] sm:$0xff]
    %v200 = vld [vmem:[#allocation2 + $0x3c8] sm:$0xff]
    %v201 = vld [vmem:[#allocation2 + $0x3d0] sm:$0xff]
    %v202 = vld [vmem:[#allocation2 + $0x3d8] sm:$0xff]
    %v203 = vld [vmem:[#allocation2 + $0x3e0] sm:$0xff]
    %v204 = vld [vmem:[#allocation2 + $0x3e8] sm:$0xff]
    %v205 = vld [vmem:[#allocation2 + $0x3f0] sm:$0xff]
    %v206 = vld [vmem:[#allocation2 + $0x3f8] sm:$0xff]
    %v207 = vld [vmem:[#allocation8] ss:$8 sm:$0x3]
    %s208 = scalar_lea.vmem [#allocation8], 1
    %v209 = vld [vmem:[%s208] ss:$8 sm:$0x3]
    %s210 = scalar_lea.vmem [#allocation8], 2
    %v211 = vld [vmem:[%s210] ss:$8 sm:$0x3]
    %s212 = scalar_lea.vmem [#allocation8], 3
    %v213 = vld [vmem:[%s212] ss:$8 sm:$0x3]
    %s214 = scalar_lea.vmem [#allocation8], 4
    %v215 = vld [vmem:[%s214] ss:$8 sm:$0x3]
    %s216 = scalar_lea.vmem [#allocation8], 5
    %v217 = vld [vmem:[%s216] ss:$8 sm:$0x3]
    %v218 = vpack.c.bf16 %v81, %v79
    %v219 = vpack.c.bf16 %v82, %v80
    %v220 = vpack.c.bf16 %v85, %v83
    %v221 = vpack.c.bf16 %v86, %v84
    %v222 = vpack.c.bf16 %v89, %v87
    %v223 = vpack.c.bf16 %v90, %v88
    %v224 = vpack.c.bf16 %v93, %v91
    %v225 = vpack.c.bf16 %v94, %v92
    %v226 = vpack.c.bf16 %v97, %v95
    %v227 = vpack.c.bf16 %v98, %v96
    %v228 = vpack.c.bf16 %v101, %v99
    %v229 = vpack.c.bf16 %v102, %v100
    %v230 = vpack.c.bf16 %v105, %v103
    %v231 = vpack.c.bf16 %v106, %v104
    %v232 = vpack.c.bf16 %v109, %v107
    %v233 = vpack.c.bf16 %v110, %v108
    %v234 = vpack.c.bf16 %v113, %v111
    %v235 = vpack.c.bf16 %v114, %v112
    %v236 = vpack.c.bf16 %v117, %v115
    %v237 = vpack.c.bf16 %v118, %v116
    %v238 = vpack.c.bf16 %v121, %v119
    %v239 = vpack.c.bf16 %v122, %v120
    %v240 = vpack.c.bf16 %v125, %v123
    %v241 = vpack.c.bf16 %v126, %v124
    %v242 = vpack.c.bf16 %v129, %v127
    %v243 = vpack.c.bf16 %v130, %v128
    %v244 = vpack.c.bf16 %v133, %v131
    %v245 = vpack.c.bf16 %v134, %v132
    %v246 = vpack.c.bf16 %v137, %v135
    %v247 = vpack.c.bf16 %v138, %v136
    %v248 = vpack.c.bf16 %v141, %v139
    %v249 = vpack.c.bf16 %v142, %v140
    %v250 = vpack.c.bf16 %v145, %v143
    %v251 = vpack.c.bf16 %v146, %v144
    %v252 = vpack.c.bf16 %v149, %v147
    %v253 = vpack.c.bf16 %v150, %v148
    %v254 = vpack.c.bf16 %v153, %v151
    %v255 = vpack.c.bf16 %v154, %v152
    %v256 = vpack.c.bf16 %v157, %v155
    %v257 = vpack.c.bf16 %v158, %v156
    %v258 = vpack.c.bf16 %v161, %v159
    %v259 = vpack.c.bf16 %v162, %v160
    %v260 = vpack.c.bf16 %v165, %v163
    %v261 = vpack.c.bf16 %v166, %v164
    %v262 = vpack.c.bf16 %v169, %v167
    %v263 = vpack.c.bf16 %v170, %v168
    %v264 = vpack.c.bf16 %v173, %v171
    %v265 = vpack.c.bf16 %v174, %v172
    %v266 = vpack.c.bf16 %v177, %v175
    %v267 = vpack.c.bf16 %v178, %v176
    %v268 = vpack.c.bf16 %v181, %v179
    %v269 = vpack.c.bf16 %v182, %v180
    %v270 = vpack.c.bf16 %v185, %v183
    %v271 = vpack.c.bf16 %v186, %v184
    %v272 = vpack.c.bf16 %v189, %v187
    %v273 = vpack.c.bf16 %v190, %v188
    %v274 = vpack.c.bf16 %v193, %v191
    %v275 = vpack.c.bf16 %v194, %v192
    %v276 = vpack.c.bf16 %v197, %v195
    %v277 = vpack.c.bf16 %v198, %v196
    %v278 = vpack.c.bf16 %v201, %v199
    %v279 = vpack.c.bf16 %v202, %v200
    %v280 = vpack.c.bf16 %v205, %v203
    %v281 = vpack.c.bf16 %v206, %v204
    %v282 = vld [vmem:[#allocation5] sm:$0xff]
    %v283 = vld [vmem:[#allocation5 + $0x8] sm:$0xff]
    %v284 = vld [vmem:[#allocation5 + $0x10] sm:$0xff]
    %v285 = vld [vmem:[#allocation5 + $0x18] sm:$0xff]
    %v286 = vld [vmem:[#allocation5 + $0x20] sm:$0xff]
    %v287 = vld [vmem:[#allocation5 + $0x28] sm:$0xff]
    %v288 = vld [vmem:[#allocation5 + $0x30] sm:$0xff]
    %v289 = vld [vmem:[#allocation5 + $0x38] sm:$0xff]
    %v290 = vld [vmem:[#allocation5 + $0x40] sm:$0xff]
    %v291 = vld [vmem:[#allocation5 + $0x48] sm:$0xff]
    %v292 = vld [vmem:[#allocation5 + $0x50] sm:$0xff]
    %v293 = vld [vmem:[#allocation5 + $0x58] sm:$0xff]
    %v294 = vld [vmem:[#allocation5 + $0x60] sm:$0xff]
    %v295 = vld [vmem:[#allocation5 + $0x68] sm:$0xff]
    %v296 = vld [vmem:[#allocation5 + $0x70] sm:$0xff]
    %v297 = vld [vmem:[#allocation5 + $0x78] sm:$0xff]
    %v298 = vld [vmem:[#allocation5 + $0x80] sm:$0xff]
    %v299 = vld [vmem:[#allocation5 + $0x88] sm:$0xff]
    %v300 = vld [vmem:[#allocation5 + $0x90] sm:$0xff]
    %v301 = vld [vmem:[#allocation5 + $0x98] sm:$0xff]
    %v302 = vld [vmem:[#allocation5 + $0xa0] sm:$0xff]
    %v303 = vld [vmem:[#allocation5 + $0xa8] sm:$0xff]
    %v304 = vld [vmem:[#allocation5 + $0xb0] sm:$0xff]
    %v305 = vld [vmem:[#allocation5 + $0xb8] sm:$0xff]
    %v306 = vld [vmem:[#allocation5 + $0xc0] sm:$0xff]
    %v307 = vld [vmem:[#allocation5 + $0xc8] sm:$0xff]
    %v308 = vld [vmem:[#allocation5 + $0xd0] sm:$0xff]
    %v309 = vld [vmem:[#allocation5 + $0xd8] sm:$0xff]
    %v310 = vld [vmem:[#allocation5 + $0xe0] sm:$0xff]
    %v311 = vld [vmem:[#allocation5 + $0xe8] sm:$0xff]
    %v312 = vld [vmem:[#allocation5 + $0xf0] sm:$0xff]
    %v313 = vld [vmem:[#allocation5 + $0xf8] sm:$0xff]
    %v315 = vperm.slane %v207, 0
    %v316 = vperm.slane %v207, 1
    %v351 = vunpack.c.l.b16 %v282
    %v352 = vunpack.c.h.b16 %v282
    %v353 = vunpack.c.l.b16 %v283
    %v354 = vunpack.c.h.b16 %v283
    %v355 = vunpack.c.l.b16 %v284
    %v356 = vunpack.c.h.b16 %v284
    %v357 = vunpack.c.l.b16 %v285
    %v358 = vunpack.c.h.b16 %v285
    %v359 = vunpack.c.l.b16 %v286
    %v360 = vunpack.c.h.b16 %v286
    %v361 = vunpack.c.l.b16 %v287
    %v362 = vunpack.c.h.b16 %v287
    %v363 = vunpack.c.l.b16 %v288
    %v364 = vunpack.c.h.b16 %v288
    %v365 = vunpack.c.l.b16 %v289
    %v366 = vunpack.c.h.b16 %v289
    %v367 = vunpack.c.l.b16 %v290
    %v368 = vunpack.c.h.b16 %v290
    %v369 = vunpack.c.l.b16 %v291
    %v370 = vunpack.c.h.b16 %v291
    %v371 = vunpack.c.l.b16 %v292
    %v372 = vunpack.c.h.b16 %v292
    %v373 = vunpack.c.l.b16 %v293
    %v374 = vunpack.c.h.b16 %v293
    %v375 = vunpack.c.l.b16 %v294
    %v376 = vunpack.c.h.b16 %v294
    %v377 = vunpack.c.l.b16 %v295
    %v378 = vunpack.c.h.b16 %v295
    %v379 = vunpack.c.l.b16 %v296
    %v380 = vunpack.c.h.b16 %v296
    %v381 = vunpack.c.l.b16 %v297
    %v382 = vunpack.c.h.b16 %v297
    %v383 = vunpack.c.l.b16 %v298
    %v384 = vunpack.c.h.b16 %v298
    %v385 = vunpack.c.l.b16 %v299
    %v386 = vunpack.c.h.b16 %v299
    %v387 = vunpack.c.l.b16 %v300
    %v388 = vunpack.c.h.b16 %v300
    %v389 = vunpack.c.l.b16 %v301
    %v390 = vunpack.c.h.b16 %v301
    %v391 = vunpack.c.l.b16 %v302
    %v392 = vunpack.c.h.b16 %v302
    %v393 = vunpack.c.l.b16 %v303
    %v394 = vunpack.c.h.b16 %v303
    %v395 = vunpack.c.l.b16 %v304
    %v396 = vunpack.c.h.b16 %v304
    %v397 = vunpack.c.l.b16 %v305
    %v398 = vunpack.c.h.b16 %v305
    %v399 = vunpack.c.l.b16 %v306
    %v400 = vunpack.c.h.b16 %v306
    %v401 = vunpack.c.l.b16 %v307
    %v402 = vunpack.c.h.b16 %v307
    %v403 = vunpack.c.l.b16 %v308
    %v404 = vunpack.c.h.b16 %v308
    %v405 = vunpack.c.l.b16 %v309
    %v406 = vunpack.c.h.b16 %v309
    %v407 = vunpack.c.l.b16 %v310
    %v408 = vunpack.c.h.b16 %v310
    %v409 = vunpack.c.l.b16 %v311
    %v410 = vunpack.c.h.b16 %v311
    %v411 = vunpack.c.l.b16 %v312
    %v412 = vunpack.c.h.b16 %v312
    %v413 = vunpack.c.l.b16 %v313
    %v414 = vunpack.c.h.b16 %v313
    %v415 = vpack.c.b16 %v353, %v351
    %v416 = vpack.c.b16 %v354, %v352
    %v417 = vpack.c.b16 %v357, %v355
    %v418 = vpack.c.b16 %v358, %v356
    %v419 = vpack.c.b16 %v361, %v359
    %v420 = vpack.c.b16 %v362, %v360
    %v421 = vpack.c.b16 %v365, %v363
    %v422 = vpack.c.b16 %v366, %v364
    %v423 = vpack.c.b16 %v369, %v367
    %v424 = vpack.c.b16 %v370, %v368
    %v425 = vpack.c.b16 %v373, %v371
    %v426 = vpack.c.b16 %v374, %v372
    %v427 = vpack.c.b16 %v377, %v375
    %v428 = vpack.c.b16 %v378, %v376
    %v429 = vpack.c.b16 %v381, %v379
    %v430 = vpack.c.b16 %v382, %v380
    %v431 = vpack.c.b16 %v385, %v383
    %v432 = vpack.c.b16 %v386, %v384
    %v433 = vpack.c.b16 %v389, %v387
    %v434 = vpack.c.b16 %v390, %v388
    %v435 = vpack.c.b16 %v393, %v391
    %v436 = vpack.c.b16 %v394, %v392
    %v437 = vpack.c.b16 %v397, %v395
    %v438 = vpack.c.b16 %v398, %v396
    %v439 = vpack.c.b16 %v401, %v399
    %v440 = vpack.c.b16 %v402, %v400
    %v441 = vpack.c.b16 %v405, %v403
    %v442 = vpack.c.b16 %v406, %v404
    %v443 = vpack.c.b16 %v409, %v407
    %v444 = vpack.c.b16 %v410, %v408
    %v445 = vpack.c.b16 %v413, %v411
    %v446 = vpack.c.b16 %v414, %v412
    %479 = vmatpush.bf16.msra.mxu0 %v429
    %480 = vmatpush.bf16.msra.mxu0 %v427
    %481 = vmatpush.bf16.msra.mxu0 %v425
    %482 = vmatpush.bf16.msra.mxu0 %v423
    %483 = vmatpush.bf16.msra.mxu0 %v421
    %484 = vmatpush.bf16.msra.mxu0 %v419
    %485 = vmatpush.bf16.msra.mxu0 %v417
    %486 = vmatpush.bf16.msra.mxu0 %v415
    %487 = vmatmul.bf16.gmra.mxu0 %v218
    %v488 = vpop.f32.mrf.mxu0
    %v489 = vadd.f32 %v315, %v488
    %v490 = vpop.f32.mrf.mxu0
    %v491 = vadd.f32 %v315, %v490
    %492 = vmatmul.bf16.gmra.mxu0 %v220
    %v493 = vpop.f32.mrf.mxu0
    %v494 = vadd.f32 %v315, %v493
    %v495 = vpop.f32.mrf.mxu0
    %v496 = vadd.f32 %v315, %v495
    %497 = vmatmul.bf16.gmra.mxu0 %v222
    %v498 = vpop.f32.mrf.mxu0
    %v499 = vadd.f32 %v315, %v498
    %v500 = vpop.f32.mrf.mxu0
    %v501 = vadd.f32 %v315, %v500
    %502 = vmatmul.bf16.gmra.mxu0 %v224
    %v503 = vpop.f32.mrf.mxu0
    %v504 = vadd.f32 %v315, %v503
    %v505 = vpop.f32.mrf.mxu0
    %v506 = vadd.f32 %v315, %v505
    %507 = vmatmul.bf16.gmra.mxu0 %v226
    %v508 = vpop.f32.mrf.mxu0
    %v509 = vadd.f32 %v315, %v508
    %v510 = vpop.f32.mrf.mxu0
    %v511 = vadd.f32 %v315, %v510
    %512 = vmatmul.bf16.gmra.mxu0 %v228
    %v513 = vpop.f32.mrf.mxu0
    %v514 = vadd.f32 %v315, %v513
    %v515 = vpop.f32.mrf.mxu0
    %v516 = vadd.f32 %v315, %v515
    %517 = vmatmul.bf16.gmra.mxu0 %v230
    %v518 = vpop.f32.mrf.mxu0
    %v519 = vadd.f32 %v315, %v518
    %v520 = vpop.f32.mrf.mxu0
    %v521 = vadd.f32 %v315, %v520
    %522 = vmatmul.bf16.gmra.mxu0 %v232
    %v523 = vpop.f32.mrf.mxu0
    %v524 = vadd.f32 %v315, %v523
    %v525 = vpop.f32.mrf.mxu0
    %v526 = vadd.f32 %v315, %v525
    %527 = vmatmul.bf16.gmra.mxu0 %v234
    %v528 = vpop.f32.mrf.mxu0
    %v529 = vadd.f32 %v315, %v528
    %v530 = vpop.f32.mrf.mxu0
    %v531 = vadd.f32 %v315, %v530
    %532 = vmatmul.bf16.gmra.mxu0 %v236
    %v533 = vpop.f32.mrf.mxu0
    %v534 = vadd.f32 %v315, %v533
    %v535 = vpop.f32.mrf.mxu0
    %v536 = vadd.f32 %v315, %v535
    %537 = vmatmul.bf16.gmra.mxu0 %v238
    %v538 = vpop.f32.mrf.mxu0
    %v539 = vadd.f32 %v315, %v538
    %v540 = vpop.f32.mrf.mxu0
    %v541 = vadd.f32 %v315, %v540
    %542 = vmatmul.bf16.gmra.mxu0 %v240
    %v543 = vpop.f32.mrf.mxu0
    %v544 = vadd.f32 %v315, %v543
    %v545 = vpop.f32.mrf.mxu0
    %v546 = vadd.f32 %v315, %v545
    %547 = vmatmul.bf16.gmra.mxu0 %v242
    %v548 = vpop.f32.mrf.mxu0
    %v549 = vadd.f32 %v315, %v548
    %v550 = vpop.f32.mrf.mxu0
    %v551 = vadd.f32 %v315, %v550
    %552 = vmatmul.bf16.gmra.mxu0 %v244
    %v553 = vpop.f32.mrf.mxu0
    %v554 = vadd.f32 %v315, %v553
    %v555 = vpop.f32.mrf.mxu0
    %v556 = vadd.f32 %v315, %v555
    %557 = vmatmul.bf16.gmra.mxu0 %v246
    %v558 = vpop.f32.mrf.mxu0
    %v559 = vadd.f32 %v315, %v558
    %v560 = vpop.f32.mrf.mxu0
    %v561 = vadd.f32 %v315, %v560
    %562 = vmatmul.bf16.gmra.mxu0 %v248
    %v563 = vpop.f32.mrf.mxu0
    %v564 = vadd.f32 %v315, %v563
    %v565 = vpop.f32.mrf.mxu0
    %v566 = vadd.f32 %v315, %v565
    %567 = vmatmul.bf16.gmra.mxu0 %v250
    %v568 = vpop.f32.mrf.mxu0
    %v569 = vadd.f32 %v315, %v568
    %v570 = vpop.f32.mrf.mxu0
    %v571 = vadd.f32 %v315, %v570
    %572 = vmatmul.bf16.gmra.mxu0 %v252
    %v573 = vpop.f32.mrf.mxu0
    %v574 = vadd.f32 %v315, %v573
    %v575 = vpop.f32.mrf.mxu0
    %v576 = vadd.f32 %v315, %v575
    %577 = vmatmul.bf16.gmra.mxu0 %v254
    %v578 = vpop.f32.mrf.mxu0
    %v579 = vadd.f32 %v315, %v578
    %v580 = vpop.f32.mrf.mxu0
    %v581 = vadd.f32 %v315, %v580
    %582 = vmatmul.bf16.gmra.mxu0 %v256
    %v583 = vpop.f32.mrf.mxu0
    %v584 = vadd.f32 %v315, %v583
    %v585 = vpop.f32.mrf.mxu0
    %v586 = vadd.f32 %v315, %v585
    %587 = vmatmul.bf16.gmra.mxu0 %v258
    %v588 = vpop.f32.mrf.mxu0
    %v589 = vadd.f32 %v315, %v588
    %v590 = vpop.f32.mrf.mxu0
    %v591 = vadd.f32 %v315, %v590
    %592 = vmatmul.bf16.gmra.mxu0 %v260
    %v593 = vpop.f32.mrf.mxu0
    %v594 = vadd.f32 %v315, %v593
    %v595 = vpop.f32.mrf.mxu0
    %v596 = vadd.f32 %v315, %v595
    %597 = vmatmul.bf16.gmra.mxu0 %v262
    %v598 = vpop.f32.mrf.mxu0
    %v599 = vadd.f32 %v315, %v598
    %v600 = vpop.f32.mrf.mxu0
    %v601 = vadd.f32 %v315, %v600
    %602 = vmatmul.bf16.gmra.mxu0 %v264
    %v603 = vpop.f32.mrf.mxu0
    %v604 = vadd.f32 %v315, %v603
    %v605 = vpop.f32.mrf.mxu0
    %v606 = vadd.f32 %v315, %v605
    %607 = vmatmul.bf16.gmra.mxu0 %v266
    %v608 = vpop.f32.mrf.mxu0
    %v609 = vadd.f32 %v315, %v608
    %v610 = vpop.f32.mrf.mxu0
    %v611 = vadd.f32 %v315, %v610
    %612 = vmatmul.bf16.gmra.mxu0 %v268
    %v613 = vpop.f32.mrf.mxu0
    %v614 = vadd.f32 %v315, %v613
    %v615 = vpop.f32.mrf.mxu0
    %v616 = vadd.f32 %v315, %v615
    %617 = vmatmul.bf16.gmra.mxu0 %v270
    %v618 = vpop.f32.mrf.mxu0
    %v619 = vadd.f32 %v315, %v618
    %v620 = vpop.f32.mrf.mxu0
    %v621 = vadd.f32 %v315, %v620
    %622 = vmatmul.bf16.gmra.mxu0 %v272
    %v623 = vpop.f32.mrf.mxu0
    %v624 = vadd.f32 %v315, %v623
    %v625 = vpop.f32.mrf.mxu0
    %v626 = vadd.f32 %v315, %v625
    %627 = vmatmul.bf16.gmra.mxu0 %v274
    %v628 = vpop.f32.mrf.mxu0
    %v629 = vadd.f32 %v315, %v628
    %v630 = vpop.f32.mrf.mxu0
    %v631 = vadd.f32 %v315, %v630
    %632 = vmatmul.bf16.gmra.mxu0 %v276
    %v633 = vpop.f32.mrf.mxu0
    %v634 = vadd.f32 %v315, %v633
    %v635 = vpop.f32.mrf.mxu0
    %v636 = vadd.f32 %v315, %v635
    %637 = vmatmul.bf16.gmra.mxu0 %v278
    %v638 = vpop.f32.mrf.mxu0
    %v639 = vadd.f32 %v315, %v638
    %v640 = vpop.f32.mrf.mxu0
    %v641 = vadd.f32 %v315, %v640
    %642 = vmatmul.bf16.gmra.mxu0 %v280
    %v643 = vpop.f32.mrf.mxu0
    %v644 = vadd.f32 %v315, %v643
    %v645 = vpop.f32.mrf.mxu0
    %v646 = vadd.f32 %v315, %v645
    %647 = vdwg.mxu0
    %648 = vmatpush.bf16.msra.mxu0 %v445
    %649 = vmatpush.bf16.msra.mxu0 %v443
    %650 = vmatpush.bf16.msra.mxu0 %v441
    %651 = vmatpush.bf16.msra.mxu0 %v439
    %652 = vmatpush.bf16.msra.mxu0 %v437
    %653 = vmatpush.bf16.msra.mxu0 %v435
    %654 = vmatpush.bf16.msra.mxu0 %v433
    %655 = vmatpush.bf16.msra.mxu0 %v431
    %656 = vmatmul.bf16.gmra.mxu0 %v219
    %v657 = vpop.f32.mrf.mxu0
    %v658 = vadd.f32 %v489, %v657
    %v659 = vpop.f32.mrf.mxu0
    %v660 = vadd.f32 %v491, %v659
    %661 = vmatmul.bf16.gmra.mxu0 %v221
    %v662 = vpop.f32.mrf.mxu0
    %v663 = vadd.f32 %v494, %v662
    %v664 = vpop.f32.mrf.mxu0
    %v665 = vadd.f32 %v496, %v664
    %666 = vmatmul.bf16.gmra.mxu0 %v223
    %v667 = vpop.f32.mrf.mxu0
    %v668 = vadd.f32 %v499, %v667
    %v669 = vpop.f32.mrf.mxu0
    %v670 = vadd.f32 %v501, %v669
    %671 = vmatmul.bf16.gmra.mxu0 %v225
    %v672 = vpop.f32.mrf.mxu0
    %v673 = vadd.f32 %v504, %v672
    %v674 = vpop.f32.mrf.mxu0
    %v675 = vadd.f32 %v506, %v674
    %676 = vmatmul.bf16.gmra.mxu0 %v227
    %v677 = vpop.f32.mrf.mxu0
    %v678 = vadd.f32 %v509, %v677
    %v679 = vpop.f32.mrf.mxu0
    %v680 = vadd.f32 %v511, %v679
    %681 = vmatmul.bf16.gmra.mxu0 %v229
    %v682 = vpop.f32.mrf.mxu0
    %v683 = vadd.f32 %v514, %v682
    %v684 = vpop.f32.mrf.mxu0
    %v685 = vadd.f32 %v516, %v684
    %686 = vmatmul.bf16.gmra.mxu0 %v231
    %v687 = vpop.f32.mrf.mxu0
    %v688 = vadd.f32 %v519, %v687
    %v689 = vpop.f32.mrf.mxu0
    %v690 = vadd.f32 %v521, %v689
    %691 = vmatmul.bf16.gmra.mxu0 %v233
    %v692 = vpop.f32.mrf.mxu0
    %v693 = vadd.f32 %v524, %v692
    %v694 = vpop.f32.mrf.mxu0
    %v695 = vadd.f32 %v526, %v694
    %696 = vmatmul.bf16.gmra.mxu0 %v235
    %v697 = vpop.f32.mrf.mxu0
    %v698 = vadd.f32 %v529, %v697
    %v699 = vpop.f32.mrf.mxu0
    %v700 = vadd.f32 %v531, %v699
    %701 = vmatmul.bf16.gmra.mxu0 %v237
    %v702 = vpop.f32.mrf.mxu0
    %v703 = vadd.f32 %v534, %v702
    %v704 = vpop.f32.mrf.mxu0
    %v705 = vadd.f32 %v536, %v704
    %706 = vmatmul.bf16.gmra.mxu0 %v239
    %v707 = vpop.f32.mrf.mxu0
    %v708 = vadd.f32 %v539, %v707
    %v709 = vpop.f32.mrf.mxu0
    %v710 = vadd.f32 %v541, %v709
    %711 = vmatmul.bf16.gmra.mxu0 %v241
    %v712 = vpop.f32.mrf.mxu0
    %v713 = vadd.f32 %v544, %v712
    %v714 = vpop.f32.mrf.mxu0
    %v715 = vadd.f32 %v546, %v714
    %716 = vmatmul.bf16.gmra.mxu0 %v243
    %v717 = vpop.f32.mrf.mxu0
    %v718 = vadd.f32 %v549, %v717
    %v719 = vpop.f32.mrf.mxu0
    %v720 = vadd.f32 %v551, %v719
    %721 = vmatmul.bf16.gmra.mxu0 %v245
    %v722 = vpop.f32.mrf.mxu0
    %v723 = vadd.f32 %v554, %v722
    %v724 = vpop.f32.mrf.mxu0
    %v725 = vadd.f32 %v556, %v724
    %726 = vmatmul.bf16.gmra.mxu0 %v247
    %v727 = vpop.f32.mrf.mxu0
    %v728 = vadd.f32 %v559, %v727
    %v729 = vpop.f32.mrf.mxu0
    %v730 = vadd.f32 %v561, %v729
    %731 = vmatmul.bf16.gmra.mxu0 %v249
    %v732 = vpop.f32.mrf.mxu0
    %v733 = vadd.f32 %v564, %v732
    %v734 = vpop.f32.mrf.mxu0
    %v735 = vadd.f32 %v566, %v734
    %736 = vmatmul.bf16.gmra.mxu0 %v251
    %v737 = vpop.f32.mrf.mxu0
    %v738 = vadd.f32 %v569, %v737
    %v739 = vpop.f32.mrf.mxu0
    %v740 = vadd.f32 %v571, %v739
    %741 = vmatmul.bf16.gmra.mxu0 %v253
    %v742 = vpop.f32.mrf.mxu0
    %v743 = vadd.f32 %v574, %v742
    %v744 = vpop.f32.mrf.mxu0
    %v745 = vadd.f32 %v576, %v744
    %746 = vmatmul.bf16.gmra.mxu0 %v255
    %v747 = vpop.f32.mrf.mxu0
    %v748 = vadd.f32 %v579, %v747
    %v749 = vpop.f32.mrf.mxu0
    %v750 = vadd.f32 %v581, %v749
    %751 = vmatmul.bf16.gmra.mxu0 %v257
    %v752 = vpop.f32.mrf.mxu0
    %v753 = vadd.f32 %v584, %v752
    %v754 = vpop.f32.mrf.mxu0
    %v755 = vadd.f32 %v586, %v754
    %756 = vmatmul.bf16.gmra.mxu0 %v259
    %v757 = vpop.f32.mrf.mxu0
    %v758 = vadd.f32 %v589, %v757
    %v759 = vpop.f32.mrf.mxu0
    %v760 = vadd.f32 %v591, %v759
    %761 = vmatmul.bf16.gmra.mxu0 %v261
    %v762 = vpop.f32.mrf.mxu0
    %v763 = vadd.f32 %v594, %v762
    %v764 = vpop.f32.mrf.mxu0
    %v765 = vadd.f32 %v596, %v764
    %766 = vmatmul.bf16.gmra.mxu0 %v263
    %v767 = vpop.f32.mrf.mxu0
    %v768 = vadd.f32 %v599, %v767
    %v769 = vpop.f32.mrf.mxu0
    %v770 = vadd.f32 %v601, %v769
    %771 = vmatmul.bf16.gmra.mxu0 %v265
    %v772 = vpop.f32.mrf.mxu0
    %v773 = vadd.f32 %v604, %v772
    %v774 = vpop.f32.mrf.mxu0
    %v775 = vadd.f32 %v606, %v774
    %776 = vmatmul.bf16.gmra.mxu0 %v267
    %v777 = vpop.f32.mrf.mxu0
    %v778 = vadd.f32 %v609, %v777
    %v779 = vpop.f32.mrf.mxu0
    %v780 = vadd.f32 %v611, %v779
    %781 = vmatmul.bf16.gmra.mxu0 %v269
    %v782 = vpop.f32.mrf.mxu0
    %v783 = vadd.f32 %v614, %v782
    %v784 = vpop.f32.mrf.mxu0
    %v785 = vadd.f32 %v616, %v784
    %786 = vmatmul.bf16.gmra.mxu0 %v271
    %v787 = vpop.f32.mrf.mxu0
    %v788 = vadd.f32 %v619, %v787
    %v789 = vpop.f32.mrf.mxu0
    %v790 = vadd.f32 %v621, %v789
    %791 = vmatmul.bf16.gmra.mxu0 %v273
    %v792 = vpop.f32.mrf.mxu0
    %v793 = vadd.f32 %v624, %v792
    %v794 = vpop.f32.mrf.mxu0
    %v795 = vadd.f32 %v626, %v794
    %796 = vmatmul.bf16.gmra.mxu0 %v275
    %v797 = vpop.f32.mrf.mxu0
    %v798 = vadd.f32 %v629, %v797
    %v799 = vpop.f32.mrf.mxu0
    %v800 = vadd.f32 %v631, %v799
    %801 = vmatmul.bf16.gmra.mxu0 %v277
    %v802 = vpop.f32.mrf.mxu0
    %v803 = vadd.f32 %v634, %v802
    %v804 = vpop.f32.mrf.mxu0
    %v805 = vadd.f32 %v636, %v804
    %806 = vmatmul.bf16.gmra.mxu0 %v279
    %v807 = vpop.f32.mrf.mxu0
    %v808 = vadd.f32 %v639, %v807
    %v809 = vpop.f32.mrf.mxu0
    %v810 = vadd.f32 %v641, %v809
    %811 = vmatmul.bf16.gmra.mxu0 %v281
    %v812 = vpop.f32.mrf.mxu0
    %v813 = vadd.f32 %v644, %v812
    %v814 = vpop.f32.mrf.mxu0
    %v815 = vadd.f32 %v646, %v814
    %816 = vdwg.mxu0
    %817 = vmatpush.bf16.msra.mxu0 %v430
    %818 = vmatpush.bf16.msra.mxu0 %v428
    %819 = vmatpush.bf16.msra.mxu0 %v426
    %820 = vmatpush.bf16.msra.mxu0 %v424
    %821 = vmatpush.bf16.msra.mxu0 %v422
    %822 = vmatpush.bf16.msra.mxu0 %v420
    %823 = vmatpush.bf16.msra.mxu0 %v418
    %824 = vmatpush.bf16.msra.mxu0 %v416
    %825 = vmatmul.bf16.gmra.mxu0 %v218
    %v826 = vpop.f32.mrf.mxu0
    %v827 = vadd.f32 %v316, %v826
    %v828 = vpop.f32.mrf.mxu0
    %v829 = vadd.f32 %v316, %v828
    %830 = vmatmul.bf16.gmra.mxu0 %v220
    %v831 = vpop.f32.mrf.mxu0
    %v832 = vadd.f32 %v316, %v831
    %v833 = vpop.f32.mrf.mxu0
    %v834 = vadd.f32 %v316, %v833
    %835 = vmatmul.bf16.gmra.mxu0 %v222
    %v836 = vpop.f32.mrf.mxu0
    %v837 = vadd.f32 %v316, %v836
    %v838 = vpop.f32.mrf.mxu0
    %v839 = vadd.f32 %v316, %v838
    %840 = vmatmul.bf16.gmra.mxu0 %v224
    %v841 = vpop.f32.mrf.mxu0
    %v842 = vadd.f32 %v316, %v841
    %v843 = vpop.f32.mrf.mxu0
    %v844 = vadd.f32 %v316, %v843
    %845 = vmatmul.bf16.gmra.mxu0 %v226
    %v846 = vpop.f32.mrf.mxu0
    %v847 = vadd.f32 %v316, %v846
    %v848 = vpop.f32.mrf.mxu0
    %v849 = vadd.f32 %v316, %v848
    %850 = vmatmul.bf16.gmra.mxu0 %v228
    %v851 = vpop.f32.mrf.mxu0
    %v852 = vadd.f32 %v316, %v851
    %v853 = vpop.f32.mrf.mxu0
    %v854 = vadd.f32 %v316, %v853
    %855 = vmatmul.bf16.gmra.mxu0 %v230
    %v856 = vpop.f32.mrf.mxu0
    %v857 = vadd.f32 %v316, %v856
    %v858 = vpop.f32.mrf.mxu0
    %v859 = vadd.f32 %v316, %v858
    %860 = vmatmul.bf16.gmra.mxu0 %v232
    %v861 = vpop.f32.mrf.mxu0
    %v862 = vadd.f32 %v316, %v861
    %v863 = vpop.f32.mrf.mxu0
    %v864 = vadd.f32 %v316, %v863
    %865 = vmatmul.bf16.gmra.mxu0 %v234
    %v866 = vpop.f32.mrf.mxu0
    %v867 = vadd.f32 %v316, %v866
    %v868 = vpop.f32.mrf.mxu0
    %v869 = vadd.f32 %v316, %v868
    %870 = vmatmul.bf16.gmra.mxu0 %v236
    %v871 = vpop.f32.mrf.mxu0
    %v872 = vadd.f32 %v316, %v871
    %v873 = vpop.f32.mrf.mxu0
    %v874 = vadd.f32 %v316, %v873
    %875 = vmatmul.bf16.gmra.mxu0 %v238
    %v876 = vpop.f32.mrf.mxu0
    %v877 = vadd.f32 %v316, %v876
    %v878 = vpop.f32.mrf.mxu0
    %v879 = vadd.f32 %v316, %v878
    %880 = vmatmul.bf16.gmra.mxu0 %v240
    %v881 = vpop.f32.mrf.mxu0
    %v882 = vadd.f32 %v316, %v881
    %v883 = vpop.f32.mrf.mxu0
    %v884 = vadd.f32 %v316, %v883
    %885 = vmatmul.bf16.gmra.mxu0 %v242
    %v886 = vpop.f32.mrf.mxu0
    %v887 = vadd.f32 %v316, %v886
    %v888 = vpop.f32.mrf.mxu0
    %v889 = vadd.f32 %v316, %v888
    %890 = vmatmul.bf16.gmra.mxu0 %v244
    %v891 = vpop.f32.mrf.mxu0
    %v892 = vadd.f32 %v316, %v891
    %v893 = vpop.f32.mrf.mxu0
    %v894 = vadd.f32 %v316, %v893
    %895 = vmatmul.bf16.gmra.mxu0 %v246
    %v896 = vpop.f32.mrf.mxu0
    %v897 = vadd.f32 %v316, %v896
    %v898 = vpop.f32.mrf.mxu0
    %v899 = vadd.f32 %v316, %v898
    %900 = vmatmul.bf16.gmra.mxu0 %v248
    %v901 = vpop.f32.mrf.mxu0
    %v902 = vadd.f32 %v316, %v901
    %v903 = vpop.f32.mrf.mxu0
    %v904 = vadd.f32 %v316, %v903
    %905 = vmatmul.bf16.gmra.mxu0 %v250
    %v906 = vpop.f32.mrf.mxu0
    %v907 = vadd.f32 %v316, %v906
    %v908 = vpop.f32.mrf.mxu0
    %v909 = vadd.f32 %v316, %v908
    %910 = vmatmul.bf16.gmra.mxu0 %v252
    %v911 = vpop.f32.mrf.mxu0
    %v912 = vadd.f32 %v316, %v911
    %v913 = vpop.f32.mrf.mxu0
    %v914 = vadd.f32 %v316, %v913
    %915 = vmatmul.bf16.gmra.mxu0 %v254
    %v916 = vpop.f32.mrf.mxu0
    %v917 = vadd.f32 %v316, %v916
    %v918 = vpop.f32.mrf.mxu0
    %v919 = vadd.f32 %v316, %v918
    %920 = vmatmul.bf16.gmra.mxu0 %v256
    %v921 = vpop.f32.mrf.mxu0
    %v922 = vadd.f32 %v316, %v921
    %v923 = vpop.f32.mrf.mxu0
    %v924 = vadd.f32 %v316, %v923
    %925 = vmatmul.bf16.gmra.mxu0 %v258
    %v926 = vpop.f32.mrf.mxu0
    %v927 = vadd.f32 %v316, %v926
    %v928 = vpop.f32.mrf.mxu0
    %v929 = vadd.f32 %v316, %v928
    %930 = vmatmul.bf16.gmra.mxu0 %v260
    %v931 = vpop.f32.mrf.mxu0
    %v932 = vadd.f32 %v316, %v931
    %v933 = vpop.f32.mrf.mxu0
    %v934 = vadd.f32 %v316, %v933
    %935 = vmatmul.bf16.gmra.mxu0 %v262
    %v936 = vpop.f32.mrf.mxu0
    %v937 = vadd.f32 %v316, %v936
    %v938 = vpop.f32.mrf.mxu0
    %v939 = vadd.f32 %v316, %v938
    %940 = vmatmul.bf16.gmra.mxu0 %v264
    %v941 = vpop.f32.mrf.mxu0
    %v942 = vadd.f32 %v316, %v941
    %v943 = vpop.f32.mrf.mxu0
    %v944 = vadd.f32 %v316, %v943
    %945 = vmatmul.bf16.gmra.mxu0 %v266
    %v946 = vpop.f32.mrf.mxu0
    %v947 = vadd.f32 %v316, %v946
    %v948 = vpop.f32.mrf.mxu0
    %v949 = vadd.f32 %v316, %v948
    %950 = vmatmul.bf16.gmra.mxu0 %v268
    %v951 = vpop.f32.mrf.mxu0
    %v952 = vadd.f32 %v316, %v951
    %v953 = vpop.f32.mrf.mxu0
    %v954 = vadd.f32 %v316, %v953
    %955 = vmatmul.bf16.gmra.mxu0 %v270
    %v956 = vpop.f32.mrf.mxu0
    %v957 = vadd.f32 %v316, %v956
    %v958 = vpop.f32.mrf.mxu0
    %v959 = vadd.f32 %v316, %v958
    %960 = vmatmul.bf16.gmra.mxu0 %v272
    %v961 = vpop.f32.mrf.mxu0
    %v962 = vadd.f32 %v316, %v961
    %v963 = vpop.f32.mrf.mxu0
    %v964 = vadd.f32 %v316, %v963
    %965 = vmatmul.bf16.gmra.mxu0 %v274
    %v966 = vpop.f32.mrf.mxu0
    %v967 = vadd.f32 %v316, %v966
    %v968 = vpop.f32.mrf.mxu0
    %v969 = vadd.f32 %v316, %v968
    %970 = vmatmul.bf16.gmra.mxu0 %v276
    %v971 = vpop.f32.mrf.mxu0
    %v972 = vadd.f32 %v316, %v971
    %v973 = vpop.f32.mrf.mxu0
    %v974 = vadd.f32 %v316, %v973
    %975 = vmatmul.bf16.gmra.mxu0 %v278
    %v976 = vpop.f32.mrf.mxu0
    %v977 = vadd.f32 %v316, %v976
    %v978 = vpop.f32.mrf.mxu0
    %v979 = vadd.f32 %v316, %v978
    %980 = vmatmul.bf16.gmra.mxu0 %v280
    %v981 = vpop.f32.mrf.mxu0
    %v982 = vadd.f32 %v316, %v981
    %v983 = vpop.f32.mrf.mxu0
    %v984 = vadd.f32 %v316, %v983
    %985 = vdwg.mxu0
    %986 = vmatpush.bf16.msra.mxu0 %v446
    %987 = vmatpush.bf16.msra.mxu0 %v444
    %988 = vmatpush.bf16.msra.mxu0 %v442
    %989 = vmatpush.bf16.msra.mxu0 %v440
    %990 = vmatpush.bf16.msra.mxu0 %v438
    %991 = vmatpush.bf16.msra.mxu0 %v436
    %992 = vmatpush.bf16.msra.mxu0 %v434
    %993 = vmatpush.bf16.msra.mxu0 %v432
    %994 = vmatmul.bf16.gmra.mxu0 %v219
    %v995 = vpop.f32.mrf.mxu0
    %v996 = vadd.f32 %v827, %v995
    %v997 = vpop.f32.mrf.mxu0
    %v998 = vadd.f32 %v829, %v997
    %999 = vmatmul.bf16.gmra.mxu0 %v221
    %v1000 = vpop.f32.mrf.mxu0
    %v1001 = vadd.f32 %v832, %v1000
    %v1002 = vpop.f32.mrf.mxu0
    %v1003 = vadd.f32 %v834, %v1002
    %1004 = vmatmul.bf16.gmra.mxu0 %v223
    %v1005 = vpop.f32.mrf.mxu0
    %v1006 = vadd.f32 %v837, %v1005
    %v1007 = vpop.f32.mrf.mxu0
    %v1008 = vadd.f32 %v839, %v1007
    %1009 = vmatmul.bf16.gmra.mxu0 %v225
    %v1010 = vpop.f32.mrf.mxu0
    %v1011 = vadd.f32 %v842, %v1010
    %v1012 = vpop.f32.mrf.mxu0
    %v1013 = vadd.f32 %v844, %v1012
    %1014 = vmatmul.bf16.gmra.mxu0 %v227
    %v1015 = vpop.f32.mrf.mxu0
    %v1016 = vadd.f32 %v847, %v1015
    %v1017 = vpop.f32.mrf.mxu0
    %v1018 = vadd.f32 %v849, %v1017
    %1019 = vmatmul.bf16.gmra.mxu0 %v229
    %v1020 = vpop.f32.mrf.mxu0
    %v1021 = vadd.f32 %v852, %v1020
    %v1022 = vpop.f32.mrf.mxu0
    %v1023 = vadd.f32 %v854, %v1022
    %1024 = vmatmul.bf16.gmra.mxu0 %v231
    %v1025 = vpop.f32.mrf.mxu0
    %v1026 = vadd.f32 %v857, %v1025
    %v1027 = vpop.f32.mrf.mxu0
    %v1028 = vadd.f32 %v859, %v1027
    %1029 = vmatmul.bf16.gmra.mxu0 %v233
    %v1030 = vpop.f32.mrf.mxu0
    %v1031 = vadd.f32 %v862, %v1030
    %v1032 = vpop.f32.mrf.mxu0
    %v1033 = vadd.f32 %v864, %v1032
    %1034 = vmatmul.bf16.gmra.mxu0 %v235
    %v1035 = vpop.f32.mrf.mxu0
    %v1036 = vadd.f32 %v867, %v1035
    %v1037 = vpop.f32.mrf.mxu0
    %v1038 = vadd.f32 %v869, %v1037
    %1039 = vmatmul.bf16.gmra.mxu0 %v237
    %v1040 = vpop.f32.mrf.mxu0
    %v1041 = vadd.f32 %v872, %v1040
    %v1042 = vpop.f32.mrf.mxu0
    %v1043 = vadd.f32 %v874, %v1042
    %1044 = vmatmul.bf16.gmra.mxu0 %v239
    %v1045 = vpop.f32.mrf.mxu0
    %v1046 = vadd.f32 %v877, %v1045
    %v1047 = vpop.f32.mrf.mxu0
    %v1048 = vadd.f32 %v879, %v1047
    %1049 = vmatmul.bf16.gmra.mxu0 %v241
    %v1050 = vpop.f32.mrf.mxu0
    %v1051 = vadd.f32 %v882, %v1050
    %v1052 = vpop.f32.mrf.mxu0
    %v1053 = vadd.f32 %v884, %v1052
    %1054 = vmatmul.bf16.gmra.mxu0 %v243
    %v1055 = vpop.f32.mrf.mxu0
    %v1056 = vadd.f32 %v887, %v1055
    %v1057 = vpop.f32.mrf.mxu0
    %v1058 = vadd.f32 %v889, %v1057
    %1059 = vmatmul.bf16.gmra.mxu0 %v245
    %v1060 = vpop.f32.mrf.mxu0
    %v1061 = vadd.f32 %v892, %v1060
    %v1062 = vpop.f32.mrf.mxu0
    %v1063 = vadd.f32 %v894, %v1062
    %1064 = vmatmul.bf16.gmra.mxu0 %v247
    %v1065 = vpop.f32.mrf.mxu0
    %v1066 = vadd.f32 %v897, %v1065
    %v1067 = vpop.f32.mrf.mxu0
    %v1068 = vadd.f32 %v899, %v1067
    %1069 = vmatmul.bf16.gmra.mxu0 %v249
    %v1070 = vpop.f32.mrf.mxu0
    %v1071 = vadd.f32 %v902, %v1070
    %v1072 = vpop.f32.mrf.mxu0
    %v1073 = vadd.f32 %v904, %v1072
    %1074 = vmatmul.bf16.gmra.mxu0 %v251
    %v1075 = vpop.f32.mrf.mxu0
    %v1076 = vadd.f32 %v907, %v1075
    %v1077 = vpop.f32.mrf.mxu0
    %v1078 = vadd.f32 %v909, %v1077
    %1079 = vmatmul.bf16.gmra.mxu0 %v253
    %v1080 = vpop.f32.mrf.mxu0
    %v1081 = vadd.f32 %v912, %v1080
    %v1082 = vpop.f32.mrf.mxu0
    %v1083 = vadd.f32 %v914, %v1082
    %1084 = vmatmul.bf16.gmra.mxu0 %v255
    %v1085 = vpop.f32.mrf.mxu0
    %v1086 = vadd.f32 %v917, %v1085
    %v1087 = vpop.f32.mrf.mxu0
    %v1088 = vadd.f32 %v919, %v1087
    %1089 = vmatmul.bf16.gmra.mxu0 %v257
    %v1090 = vpop.f32.mrf.mxu0
    %v1091 = vadd.f32 %v922, %v1090
    %v1092 = vpop.f32.mrf.mxu0
    %v1093 = vadd.f32 %v924, %v1092
    %1094 = vmatmul.bf16.gmra.mxu0 %v259
    %v1095 = vpop.f32.mrf.mxu0
    %v1096 = vadd.f32 %v927, %v1095
    %v1097 = vpop.f32.mrf.mxu0
    %v1098 = vadd.f32 %v929, %v1097
    %1099 = vmatmul.bf16.gmra.mxu0 %v261
    %v1100 = vpop.f32.mrf.mxu0
    %v1101 = vadd.f32 %v932, %v1100
    %v1102 = vpop.f32.mrf.mxu0
    %v1103 = vadd.f32 %v934, %v1102
    %1104 = vmatmul.bf16.gmra.mxu0 %v263
    %v1105 = vpop.f32.mrf.mxu0
    %v1106 = vadd.f32 %v937, %v1105
    %v1107 = vpop.f32.mrf.mxu0
    %v1108 = vadd.f32 %v939, %v1107
    %1109 = vmatmul.bf16.gmra.mxu0 %v265
    %v1110 = vpop.f32.mrf.mxu0
    %v1111 = vadd.f32 %v942, %v1110
    %v1112 = vpop.f32.mrf.mxu0
    %v1113 = vadd.f32 %v944, %v1112
    %1114 = vmatmul.bf16.gmra.mxu0 %v267
    %v1115 = vpop.f32.mrf.mxu0
    %v1116 = vadd.f32 %v947, %v1115
    %v1117 = vpop.f32.mrf.mxu0
    %v1118 = vadd.f32 %v949, %v1117
    %1119 = vmatmul.bf16.gmra.mxu0 %v269
    %v1120 = vpop.f32.mrf.mxu0
    %v1121 = vadd.f32 %v952, %v1120
    %v1122 = vpop.f32.mrf.mxu0
    %v1123 = vadd.f32 %v954, %v1122
    %1124 = vmatmul.bf16.gmra.mxu0 %v271
    %v1125 = vpop.f32.mrf.mxu0
    %v1126 = vadd.f32 %v957, %v1125
    %v1127 = vpop.f32.mrf.mxu0
    %v1128 = vadd.f32 %v959, %v1127
    %1129 = vmatmul.bf16.gmra.mxu0 %v273
    %v1130 = vpop.f32.mrf.mxu0
    %v1131 = vadd.f32 %v962, %v1130
    %v1132 = vpop.f32.mrf.mxu0
    %v1133 = vadd.f32 %v964, %v1132
    %1134 = vmatmul.bf16.gmra.mxu0 %v275
    %v1135 = vpop.f32.mrf.mxu0
    %v1136 = vadd.f32 %v967, %v1135
    %v1137 = vpop.f32.mrf.mxu0
    %v1138 = vadd.f32 %v969, %v1137
    %1139 = vmatmul.bf16.gmra.mxu0 %v277
    %v1140 = vpop.f32.mrf.mxu0
    %v1141 = vadd.f32 %v972, %v1140
    %v1142 = vpop.f32.mrf.mxu0
    %v1143 = vadd.f32 %v974, %v1142
    %1144 = vmatmul.bf16.gmra.mxu0 %v279
    %v1145 = vpop.f32.mrf.mxu0
    %v1146 = vadd.f32 %v977, %v1145
    %v1147 = vpop.f32.mrf.mxu0
    %v1148 = vadd.f32 %v979, %v1147
    %1149 = vmatmul.bf16.gmra.mxu0 %v281
    %v1150 = vpop.f32.mrf.mxu0
    %v1151 = vadd.f32 %v982, %v1150
    %v1152 = vpop.f32.mrf.mxu0
    %v1153 = vadd.f32 %v984, %v1152
    %1154 = vdwg.mxu0
    %v1155 = vadd.f32 %v658, %v996
    %1156 = vadd.xlane.f32.xlu0 %v1155
    %v1157 = vpop.xlane.xlu0 %1156
    %v1158 = vadd.f32 %v660, %v998
    %1159 = vadd.xlane.f32.xlu0 %v1158
    %v1160 = vpop.xlane.xlu0 %1159
    %v1161 = vadd.f32 %v663, %v1001
    %1162 = vadd.xlane.f32.xlu0 %v1161
    %v1163 = vpop.xlane.xlu0 %1162
    %v1164 = vadd.f32 %v665, %v1003
    %1165 = vadd.xlane.f32.xlu0 %v1164
    %v1166 = vpop.xlane.xlu0 %1165
    %v1167 = vadd.f32 %v668, %v1006
    %1168 = vadd.xlane.f32.xlu0 %v1167
    %v1169 = vpop.xlane.xlu0 %1168
    %v1170 = vadd.f32 %v670, %v1008
    %1171 = vadd.xlane.f32.xlu0 %v1170
    %v1172 = vpop.xlane.xlu0 %1171
    %v1173 = vadd.f32 %v673, %v1011
    %1174 = vadd.xlane.f32.xlu0 %v1173
    %v1175 = vpop.xlane.xlu0 %1174
    %v1176 = vadd.f32 %v675, %v1013
    %1177 = vadd.xlane.f32.xlu0 %v1176
    %v1178 = vpop.xlane.xlu0 %1177
    %v1179 = vadd.f32 %v678, %v1016
    %1180 = vadd.xlane.f32.xlu0 %v1179
    %v1181 = vpop.xlane.xlu0 %1180
    %v1182 = vadd.f32 %v680, %v1018
    %1183 = vadd.xlane.f32.xlu0 %v1182
    %v1184 = vpop.xlane.xlu0 %1183
    %v1185 = vadd.f32 %v683, %v1021
    %1186 = vadd.xlane.f32.xlu0 %v1185
    %v1187 = vpop.xlane.xlu0 %1186
    %v1188 = vadd.f32 %v685, %v1023
    %1189 = vadd.xlane.f32.xlu0 %v1188
    %v1190 = vpop.xlane.xlu0 %1189
    %v1191 = vadd.f32 %v688, %v1026
    %1192 = vadd.xlane.f32.xlu0 %v1191
    %v1193 = vpop.xlane.xlu0 %1192
    %v1194 = vadd.f32 %v690, %v1028
    %1195 = vadd.xlane.f32.xlu0 %v1194
    %v1196 = vpop.xlane.xlu0 %1195
    %v1197 = vadd.f32 %v693, %v1031
    %1198 = vadd.xlane.f32.xlu0 %v1197
    %v1199 = vpop.xlane.xlu0 %1198
    %v1200 = vadd.f32 %v695, %v1033
    %1201 = vadd.xlane.f32.xlu0 %v1200
    %v1202 = vpop.xlane.xlu0 %1201
    %v1203 = vadd.f32 %v698, %v1036
    %1204 = vadd.xlane.f32.xlu0 %v1203
    %v1205 = vpop.xlane.xlu0 %1204
    %v1206 = vadd.f32 %v700, %v1038
    %1207 = vadd.xlane.f32.xlu0 %v1206
    %v1208 = vpop.xlane.xlu0 %1207
    %v1209 = vadd.f32 %v703, %v1041
    %1210 = vadd.xlane.f32.xlu0 %v1209
    %v1211 = vpop.xlane.xlu0 %1210
    %v1212 = vadd.f32 %v705, %v1043
    %1213 = vadd.xlane.f32.xlu0 %v1212
    %v1214 = vpop.xlane.xlu0 %1213
    %v1215 = vadd.f32 %v708, %v1046
    %1216 = vadd.xlane.f32.xlu0 %v1215
    %v1217 = vpop.xlane.xlu0 %1216
    %v1218 = vadd.f32 %v710, %v1048
    %1219 = vadd.xlane.f32.xlu0 %v1218
    %v1220 = vpop.xlane.xlu0 %1219
    %v1221 = vadd.f32 %v713, %v1051
    %1222 = vadd.xlane.f32.xlu0 %v1221
    %v1223 = vpop.xlane.xlu0 %1222
    %v1224 = vadd.f32 %v715, %v1053
    %1225 = vadd.xlane.f32.xlu0 %v1224
    %v1226 = vpop.xlane.xlu0 %1225
    %v1227 = vadd.f32 %v718, %v1056
    %1228 = vadd.xlane.f32.xlu0 %v1227
    %v1229 = vpop.xlane.xlu0 %1228
    %v1230 = vadd.f32 %v720, %v1058
    %1231 = vadd.xlane.f32.xlu0 %v1230
    %v1232 = vpop.xlane.xlu0 %1231
    %v1233 = vadd.f32 %v723, %v1061
    %1234 = vadd.xlane.f32.xlu0 %v1233
    %v1235 = vpop.xlane.xlu0 %1234
    %v1236 = vadd.f32 %v725, %v1063
    %1237 = vadd.xlane.f32.xlu0 %v1236
    %v1238 = vpop.xlane.xlu0 %1237
    %v1239 = vadd.f32 %v728, %v1066
    %1240 = vadd.xlane.f32.xlu0 %v1239
    %v1241 = vpop.xlane.xlu0 %1240
    %v1242 = vadd.f32 %v730, %v1068
    %1243 = vadd.xlane.f32.xlu0 %v1242
    %v1244 = vpop.xlane.xlu0 %1243
    %v1245 = vadd.f32 %v733, %v1071
    %1246 = vadd.xlane.f32.xlu0 %v1245
    %v1247 = vpop.xlane.xlu0 %1246
    %v1248 = vadd.f32 %v735, %v1073
    %1249 = vadd.xlane.f32.xlu0 %v1248
    %v1250 = vpop.xlane.xlu0 %1249
    %v1251 = vadd.f32 %v738, %v1076
    %1252 = vadd.xlane.f32.xlu0 %v1251
    %v1253 = vpop.xlane.xlu0 %1252
    %v1254 = vadd.f32 %v740, %v1078
    %1255 = vadd.xlane.f32.xlu0 %v1254
    %v1256 = vpop.xlane.xlu0 %1255
    %v1257 = vadd.f32 %v743, %v1081
    %1258 = vadd.xlane.f32.xlu0 %v1257
    %v1259 = vpop.xlane.xlu0 %1258
    %v1260 = vadd.f32 %v745, %v1083
    %1261 = vadd.xlane.f32.xlu0 %v1260
    %v1262 = vpop.xlane.xlu0 %1261
    %v1263 = vadd.f32 %v748, %v1086
    %1264 = vadd.xlane.f32.xlu0 %v1263
    %v1265 = vpop.xlane.xlu0 %1264
    %v1266 = vadd.f32 %v750, %v1088
    %1267 = vadd.xlane.f32.xlu0 %v1266
    %v1268 = vpop.xlane.xlu0 %1267
    %v1269 = vadd.f32 %v753, %v1091
    %1270 = vadd.xlane.f32.xlu0 %v1269
    %v1271 = vpop.xlane.xlu0 %1270
    %v1272 = vadd.f32 %v755, %v1093
    %1273 = vadd.xlane.f32.xlu0 %v1272
    %v1274 = vpop.xlane.xlu0 %1273
    %v1275 = vadd.f32 %v758, %v1096
    %1276 = vadd.xlane.f32.xlu0 %v1275
    %v1277 = vpop.xlane.xlu0 %1276
    %v1278 = vadd.f32 %v760, %v1098
    %1279 = vadd.xlane.f32.xlu0 %v1278
    %v1280 = vpop.xlane.xlu0 %1279
    %v1281 = vadd.f32 %v763, %v1101
    %1282 = vadd.xlane.f32.xlu0 %v1281
    %v1283 = vpop.xlane.xlu0 %1282
    %v1284 = vadd.f32 %v765, %v1103
    %1285 = vadd.xlane.f32.xlu0 %v1284
    %v1286 = vpop.xlane.xlu0 %1285
    %v1287 = vadd.f32 %v768, %v1106
    %1288 = vadd.xlane.f32.xlu0 %v1287
    %v1289 = vpop.xlane.xlu0 %1288
    %v1290 = vadd.f32 %v770, %v1108
    %1291 = vadd.xlane.f32.xlu0 %v1290
    %v1292 = vpop.xlane.xlu0 %1291
    %v1293 = vadd.f32 %v773, %v1111
    %1294 = vadd.xlane.f32.xlu0 %v1293
    %v1295 = vpop.xlane.xlu0 %1294
    %v1296 = vadd.f32 %v775, %v1113
    %1297 = vadd.xlane.f32.xlu0 %v1296
    %v1298 = vpop.xlane.xlu0 %1297
    %v1299 = vadd.f32 %v778, %v1116
    %1300 = vadd.xlane.f32.xlu0 %v1299
    %v1301 = vpop.xlane.xlu0 %1300
    %v1302 = vadd.f32 %v780, %v1118
    %1303 = vadd.xlane.f32.xlu0 %v1302
    %v1304 = vpop.xlane.xlu0 %1303
    %v1305 = vadd.f32 %v783, %v1121
    %1306 = vadd.xlane.f32.xlu0 %v1305
    %v1307 = vpop.xlane.xlu0 %1306
    %v1308 = vadd.f32 %v785, %v1123
    %1309 = vadd.xlane.f32.xlu0 %v1308
    %v1310 = vpop.xlane.xlu0 %1309
    %v1311 = vadd.f32 %v788, %v1126
    %1312 = vadd.xlane.f32.xlu0 %v1311
    %v1313 = vpop.xlane.xlu0 %1312
    %v1314 = vadd.f32 %v790, %v1128
    %1315 = vadd.xlane.f32.xlu0 %v1314
    %v1316 = vpop.xlane.xlu0 %1315
    %v1317 = vadd.f32 %v793, %v1131
    %1318 = vadd.xlane.f32.xlu0 %v1317
    %v1319 = vpop.xlane.xlu0 %1318
    %v1320 = vadd.f32 %v795, %v1133
    %1321 = vadd.xlane.f32.xlu0 %v1320
    %v1322 = vpop.xlane.xlu0 %1321
    %v1323 = vadd.f32 %v798, %v1136
    %1324 = vadd.xlane.f32.xlu0 %v1323
    %v1325 = vpop.xlane.xlu0 %1324
    %v1326 = vadd.f32 %v800, %v1138
    %1327 = vadd.xlane.f32.xlu0 %v1326
    %v1328 = vpop.xlane.xlu0 %1327
    %v1329 = vadd.f32 %v803, %v1141
    %1330 = vadd.xlane.f32.xlu0 %v1329
    %v1331 = vpop.xlane.xlu0 %1330
    %v1332 = vadd.f32 %v805, %v1143
    %1333 = vadd.xlane.f32.xlu0 %v1332
    %v1334 = vpop.xlane.xlu0 %1333
    %v1335 = vadd.f32 %v808, %v1146
    %1336 = vadd.xlane.f32.xlu0 %v1335
    %v1337 = vpop.xlane.xlu0 %1336
    %v1338 = vadd.f32 %v810, %v1148
    %1339 = vadd.xlane.f32.xlu0 %v1338
    %v1340 = vpop.xlane.xlu0 %1339
    %v1341 = vadd.f32 %v813, %v1151
    %1342 = vadd.xlane.f32.xlu0 %v1341
    %v1343 = vpop.xlane.xlu0 %1342
    %v1344 = vadd.f32 %v815, %v1153
    %1345 = vadd.xlane.f32.xlu0 %v1344
    %v1346 = vpop.xlane.xlu0 %1345
    %v1347 = vrcp.pop 256.0
    %v1348 = vmul.f32 256.0, %v1347
    %v1349 = vsub.f32 1.0, %v1348
    %v1350 = vmul.f32 %v1347, %v1349
    %v1351 = vadd.f32 %v1347, %v1350
    %vm1352 = vweird.f32 %v1347
    %v1353 = vsel %vm1352, %v1347, %v1351
    %v1354 = vmul.f32 %v1157, %v1353
    %v1355 = vmul.f32 %v1160, %v1353
    %v1356 = vmul.f32 %v1163, %v1353
    %v1357 = vmul.f32 %v1166, %v1353
    %v1358 = vmul.f32 %v1169, %v1353
    %v1359 = vmul.f32 %v1172, %v1353
    %v1360 = vmul.f32 %v1175, %v1353
    %v1361 = vmul.f32 %v1178, %v1353
    %v1362 = vmul.f32 %v1181, %v1353
    %v1363 = vmul.f32 %v1184, %v1353
    %v1364 = vmul.f32 %v1187, %v1353
    %v1365 = vmul.f32 %v1190, %v1353
    %v1366 = vmul.f32 %v1193, %v1353
    %v1367 = vmul.f32 %v1196, %v1353
    %v1368 = vmul.f32 %v1199, %v1353
    %v1369 = vmul.f32 %v1202, %v1353
    %v1370 = vmul.f32 %v1205, %v1353
    %v1371 = vmul.f32 %v1208, %v1353
    %v1372 = vmul.f32 %v1211, %v1353
    %v1373 = vmul.f32 %v1214, %v1353
    %v1374 = vmul.f32 %v1217, %v1353
    %v1375 = vmul.f32 %v1220, %v1353
    %v1376 = vmul.f32 %v1223, %v1353
    %v1377 = vmul.f32 %v1226, %v1353
    %v1378 = vmul.f32 %v1229, %v1353
    %v1379 = vmul.f32 %v1232, %v1353
    %v1380 = vmul.f32 %v1235, %v1353
    %v1381 = vmul.f32 %v1238, %v1353
    %v1382 = vmul.f32 %v1241, %v1353
    %v1383 = vmul.f32 %v1244, %v1353
    %v1384 = vmul.f32 %v1247, %v1353
    %v1385 = vmul.f32 %v1250, %v1353
    %v1386 = vmul.f32 %v1253, %v1353
    %v1387 = vmul.f32 %v1256, %v1353
    %v1388 = vmul.f32 %v1259, %v1353
    %v1389 = vmul.f32 %v1262, %v1353
    %v1390 = vmul.f32 %v1265, %v1353
    %v1391 = vmul.f32 %v1268, %v1353
    %v1392 = vmul.f32 %v1271, %v1353
    %v1393 = vmul.f32 %v1274, %v1353
    %v1394 = vmul.f32 %v1277, %v1353
    %v1395 = vmul.f32 %v1280, %v1353
    %v1396 = vmul.f32 %v1283, %v1353
    %v1397 = vmul.f32 %v1286, %v1353
    %v1398 = vmul.f32 %v1289, %v1353
    %v1399 = vmul.f32 %v1292, %v1353
    %v1400 = vmul.f32 %v1295, %v1353
    %v1401 = vmul.f32 %v1298, %v1353
    %v1402 = vmul.f32 %v1301, %v1353
    %v1403 = vmul.f32 %v1304, %v1353
    %v1404 = vmul.f32 %v1307, %v1353
    %v1405 = vmul.f32 %v1310, %v1353
    %v1406 = vmul.f32 %v1313, %v1353
    %v1407 = vmul.f32 %v1316, %v1353
    %v1408 = vmul.f32 %v1319, %v1353
    %v1409 = vmul.f32 %v1322, %v1353
    %v1410 = vmul.f32 %v1325, %v1353
    %v1411 = vmul.f32 %v1328, %v1353
    %v1412 = vmul.f32 %v1331, %v1353
    %v1413 = vmul.f32 %v1334, %v1353
    %v1414 = vmul.f32 %v1337, %v1353
    %v1415 = vmul.f32 %v1340, %v1353
    %v1416 = vmul.f32 %v1343, %v1353
    %v1417 = vmul.f32 %v1346, %v1353
    %v1418 = vsub.f32 %v658, %v1354
    %v1419 = vsub.f32 %v996, %v1354
    %v1420 = vsub.f32 %v660, %v1355
    %v1421 = vsub.f32 %v998, %v1355
    %v1422 = vsub.f32 %v663, %v1356
    %v1423 = vsub.f32 %v1001, %v1356
    %v1424 = vsub.f32 %v665, %v1357
    %v1425 = vsub.f32 %v1003, %v1357
    %v1426 = vsub.f32 %v668, %v1358
    %v1427 = vsub.f32 %v1006, %v1358
    %v1428 = vsub.f32 %v670, %v1359
    %v1429 = vsub.f32 %v1008, %v1359
    %v1430 = vsub.f32 %v673, %v1360
    %v1431 = vsub.f32 %v1011, %v1360
    %v1432 = vsub.f32 %v675, %v1361
    %v1433 = vsub.f32 %v1013, %v1361
    %v1434 = vsub.f32 %v678, %v1362
    %v1435 = vsub.f32 %v1016, %v1362
    %v1436 = vsub.f32 %v680, %v1363
    %v1437 = vsub.f32 %v1018, %v1363
    %v1438 = vsub.f32 %v683, %v1364
    %v1439 = vsub.f32 %v1021, %v1364
    %v1440 = vsub.f32 %v685, %v1365
    %v1441 = vsub.f32 %v1023, %v1365
    %v1442 = vsub.f32 %v688, %v1366
    %v1443 = vsub.f32 %v1026, %v1366
    %v1444 = vsub.f32 %v690, %v1367
    %v1445 = vsub.f32 %v1028, %v1367
    %v1446 = vsub.f32 %v693, %v1368
    %v1447 = vsub.f32 %v1031, %v1368
    %v1448 = vsub.f32 %v695, %v1369
    %v1449 = vsub.f32 %v1033, %v1369
    %v1450 = vsub.f32 %v698, %v1370
    %v1451 = vsub.f32 %v1036, %v1370
    %v1452 = vsub.f32 %v700, %v1371
    %v1453 = vsub.f32 %v1038, %v1371
    %v1454 = vsub.f32 %v703, %v1372
    %v1455 = vsub.f32 %v1041, %v1372
    %v1456 = vsub.f32 %v705, %v1373
    %v1457 = vsub.f32 %v1043, %v1373
    %v1458 = vsub.f32 %v708, %v1374
    %v1459 = vsub.f32 %v1046, %v1374
    %v1460 = vsub.f32 %v710, %v1375
    %v1461 = vsub.f32 %v1048, %v1375
    %v1462 = vsub.f32 %v713, %v1376
    %v1463 = vsub.f32 %v1051, %v1376
    %v1464 = vsub.f32 %v715, %v1377
    %v1465 = vsub.f32 %v1053, %v1377
    %v1466 = vsub.f32 %v718, %v1378
    %v1467 = vsub.f32 %v1056, %v1378
    %v1468 = vsub.f32 %v720, %v1379
    %v1469 = vsub.f32 %v1058, %v1379
    %v1470 = vsub.f32 %v723, %v1380
    %v1471 = vsub.f32 %v1061, %v1380
    %v1472 = vsub.f32 %v725, %v1381
    %v1473 = vsub.f32 %v1063, %v1381
    %v1474 = vsub.f32 %v728, %v1382
    %v1475 = vsub.f32 %v1066, %v1382
    %v1476 = vsub.f32 %v730, %v1383
    %v1477 = vsub.f32 %v1068, %v1383
    %v1478 = vsub.f32 %v733, %v1384
    %v1479 = vsub.f32 %v1071, %v1384
    %v1480 = vsub.f32 %v735, %v1385
    %v1481 = vsub.f32 %v1073, %v1385
    %v1482 = vsub.f32 %v738, %v1386
    %v1483 = vsub.f32 %v1076, %v1386
    %v1484 = vsub.f32 %v740, %v1387
    %v1485 = vsub.f32 %v1078, %v1387
    %v1486 = vsub.f32 %v743, %v1388
    %v1487 = vsub.f32 %v1081, %v1388
    %v1488 = vsub.f32 %v745, %v1389
    %v1489 = vsub.f32 %v1083, %v1389
    %v1490 = vsub.f32 %v748, %v1390
    %v1491 = vsub.f32 %v1086, %v1390
    %v1492 = vsub.f32 %v750, %v1391
    %v1493 = vsub.f32 %v1088, %v1391
    %v1494 = vsub.f32 %v753, %v1392
    %v1495 = vsub.f32 %v1091, %v1392
    %v1496 = vsub.f32 %v755, %v1393
    %v1497 = vsub.f32 %v1093, %v1393
    %v1498 = vsub.f32 %v758, %v1394
    %v1499 = vsub.f32 %v1096, %v1394
    %v1500 = vsub.f32 %v760, %v1395
    %v1501 = vsub.f32 %v1098, %v1395
    %v1502 = vsub.f32 %v763, %v1396
    %v1503 = vsub.f32 %v1101, %v1396
    %v1504 = vsub.f32 %v765, %v1397
    %v1505 = vsub.f32 %v1103, %v1397
    %v1506 = vsub.f32 %v768, %v1398
    %v1507 = vsub.f32 %v1106, %v1398
    %v1508 = vsub.f32 %v770, %v1399
    %v1509 = vsub.f32 %v1108, %v1399
    %v1510 = vsub.f32 %v773, %v1400
    %v1511 = vsub.f32 %v1111, %v1400
    %v1512 = vsub.f32 %v775, %v1401
    %v1513 = vsub.f32 %v1113, %v1401
    %v1514 = vsub.f32 %v778, %v1402
    %v1515 = vsub.f32 %v1116, %v1402
    %v1516 = vsub.f32 %v780, %v1403
    %v1517 = vsub.f32 %v1118, %v1403
    %v1518 = vsub.f32 %v783, %v1404
    %v1519 = vsub.f32 %v1121, %v1404
    %v1520 = vsub.f32 %v785, %v1405
    %v1521 = vsub.f32 %v1123, %v1405
    %v1522 = vsub.f32 %v788, %v1406
    %v1523 = vsub.f32 %v1126, %v1406
    %v1524 = vsub.f32 %v790, %v1407
    %v1525 = vsub.f32 %v1128, %v1407
    %v1526 = vsub.f32 %v793, %v1408
    %v1527 = vsub.f32 %v1131, %v1408
    %v1528 = vsub.f32 %v795, %v1409
    %v1529 = vsub.f32 %v1133, %v1409
    %v1530 = vsub.f32 %v798, %v1410
    %v1531 = vsub.f32 %v1136, %v1410
    %v1532 = vsub.f32 %v800, %v1411
    %v1533 = vsub.f32 %v1138, %v1411
    %v1534 = vsub.f32 %v803, %v1412
    %v1535 = vsub.f32 %v1141, %v1412
    %v1536 = vsub.f32 %v805, %v1413
    %v1537 = vsub.f32 %v1143, %v1413
    %v1538 = vsub.f32 %v808, %v1414
    %v1539 = vsub.f32 %v1146, %v1414
    %v1540 = vsub.f32 %v810, %v1415
    %v1541 = vsub.f32 %v1148, %v1415
    %v1542 = vsub.f32 %v813, %v1416
    %v1543 = vsub.f32 %v1151, %v1416
    %v1544 = vsub.f32 %v815, %v1417
    %v1545 = vsub.f32 %v1153, %v1417
    %v1546 = vmul.f32 %v1418, %v1418
    %v1547 = vmul.f32 %v1419, %v1419
    %v1548 = vmul.f32 %v1420, %v1420
    %v1549 = vmul.f32 %v1421, %v1421
    %v1550 = vmul.f32 %v1422, %v1422
    %v1551 = vmul.f32 %v1423, %v1423
    %v1552 = vmul.f32 %v1424, %v1424
    %v1553 = vmul.f32 %v1425, %v1425
    %v1554 = vmul.f32 %v1426, %v1426
    %v1555 = vmul.f32 %v1427, %v1427
    %v1556 = vmul.f32 %v1428, %v1428
    %v1557 = vmul.f32 %v1429, %v1429
    %v1558 = vmul.f32 %v1430, %v1430
    %v1559 = vmul.f32 %v1431, %v1431
    %v1560 = vmul.f32 %v1432, %v1432
    %v1561 = vmul.f32 %v1433, %v1433
    %v1562 = vmul.f32 %v1434, %v1434
    %v1563 = vmul.f32 %v1435, %v1435
    %v1564 = vmul.f32 %v1436, %v1436
    %v1565 = vmul.f32 %v1437, %v1437
    %v1566 = vmul.f32 %v1438, %v1438
    %v1567 = vmul.f32 %v1439, %v1439
    %v1568 = vmul.f32 %v1440, %v1440
    %v1569 = vmul.f32 %v1441, %v1441
    %v1570 = vmul.f32 %v1442, %v1442
    %v1571 = vmul.f32 %v1443, %v1443
    %v1572 = vmul.f32 %v1444, %v1444
    %v1573 = vmul.f32 %v1445, %v1445
    %v1574 = vmul.f32 %v1446, %v1446
    %v1575 = vmul.f32 %v1447, %v1447
    %v1576 = vmul.f32 %v1448, %v1448
    %v1577 = vmul.f32 %v1449, %v1449
    %v1578 = vmul.f32 %v1450, %v1450
    %v1579 = vmul.f32 %v1451, %v1451
    %v1580 = vmul.f32 %v1452, %v1452
    %v1581 = vmul.f32 %v1453, %v1453
    %v1582 = vmul.f32 %v1454, %v1454
    %v1583 = vmul.f32 %v1455, %v1455
    %v1584 = vmul.f32 %v1456, %v1456
    %v1585 = vmul.f32 %v1457, %v1457
    %v1586 = vmul.f32 %v1458, %v1458
    %v1587 = vmul.f32 %v1459, %v1459
    %v1588 = vmul.f32 %v1460, %v1460
    %v1589 = vmul.f32 %v1461, %v1461
    %v1590 = vmul.f32 %v1462, %v1462
    %v1591 = vmul.f32 %v1463, %v1463
    %v1592 = vmul.f32 %v1464, %v1464
    %v1593 = vmul.f32 %v1465, %v1465
    %v1594 = vmul.f32 %v1466, %v1466
    %v1595 = vmul.f32 %v1467, %v1467
    %v1596 = vmul.f32 %v1468, %v1468
    %v1597 = vmul.f32 %v1469, %v1469
    %v1598 = vmul.f32 %v1470, %v1470
    %v1599 = vmul.f32 %v1471, %v1471
    %v1600 = vmul.f32 %v1472, %v1472
    %v1601 = vmul.f32 %v1473, %v1473
    %v1602 = vmul.f32 %v1474, %v1474
    %v1603 = vmul.f32 %v1475, %v1475
    %v1604 = vmul.f32 %v1476, %v1476
    %v1605 = vmul.f32 %v1477, %v1477
    %v1606 = vmul.f32 %v1478, %v1478
    %v1607 = vmul.f32 %v1479, %v1479
    %v1608 = vmul.f32 %v1480, %v1480
    %v1609 = vmul.f32 %v1481, %v1481
    %v1610 = vmul.f32 %v1482, %v1482
    %v1611 = vmul.f32 %v1483, %v1483
    %v1612 = vmul.f32 %v1484, %v1484
    %v1613 = vmul.f32 %v1485, %v1485
    %v1614 = vmul.f32 %v1486, %v1486
    %v1615 = vmul.f32 %v1487, %v1487
    %v1616 = vmul.f32 %v1488, %v1488
    %v1617 = vmul.f32 %v1489, %v1489
    %v1618 = vmul.f32 %v1490, %v1490
    %v1619 = vmul.f32 %v1491, %v1491
    %v1620 = vmul.f32 %v1492, %v1492
    %v1621 = vmul.f32 %v1493, %v1493
    %v1622 = vmul.f32 %v1494, %v1494
    %v1623 = vmul.f32 %v1495, %v1495
    %v1624 = vmul.f32 %v1496, %v1496
    %v1625 = vmul.f32 %v1497, %v1497
    %v1626 = vmul.f32 %v1498, %v1498
    %v1627 = vmul.f32 %v1499, %v1499
    %v1628 = vmul.f32 %v1500, %v1500
    %v1629 = vmul.f32 %v1501, %v1501
    %v1630 = vmul.f32 %v1502, %v1502
    %v1631 = vmul.f32 %v1503, %v1503
    %v1632 = vmul.f32 %v1504, %v1504
    %v1633 = vmul.f32 %v1505, %v1505
    %v1634 = vmul.f32 %v1506, %v1506
    %v1635 = vmul.f32 %v1507, %v1507
    %v1636 = vmul.f32 %v1508, %v1508
    %v1637 = vmul.f32 %v1509, %v1509
    %v1638 = vmul.f32 %v1510, %v1510
    %v1639 = vmul.f32 %v1511, %v1511
    %v1640 = vmul.f32 %v1512, %v1512
    %v1641 = vmul.f32 %v1513, %v1513
    %v1642 = vmul.f32 %v1514, %v1514
    %v1643 = vmul.f32 %v1515, %v1515
    %v1644 = vmul.f32 %v1516, %v1516
    %v1645 = vmul.f32 %v1517, %v1517
    %v1646 = vmul.f32 %v1518, %v1518
    %v1647 = vmul.f32 %v1519, %v1519
    %v1648 = vmul.f32 %v1520, %v1520
    %v1649 = vmul.f32 %v1521, %v1521
    %v1650 = vmul.f32 %v1522, %v1522
    %v1651 = vmul.f32 %v1523, %v1523
    %v1652 = vmul.f32 %v1524, %v1524
    %v1653 = vmul.f32 %v1525, %v1525
    %v1654 = vmul.f32 %v1526, %v1526
    %v1655 = vmul.f32 %v1527, %v1527
    %v1656 = vmul.f32 %v1528, %v1528
    %v1657 = vmul.f32 %v1529, %v1529
    %v1658 = vmul.f32 %v1530, %v1530
    %v1659 = vmul.f32 %v1531, %v1531
    %v1660 = vmul.f32 %v1532, %v1532
    %v1661 = vmul.f32 %v1533, %v1533
    %v1662 = vmul.f32 %v1534, %v1534
    %v1663 = vmul.f32 %v1535, %v1535
    %v1664 = vmul.f32 %v1536, %v1536
    %v1665 = vmul.f32 %v1537, %v1537
    %v1666 = vmul.f32 %v1538, %v1538
    %v1667 = vmul.f32 %v1539, %v1539
    %v1668 = vmul.f32 %v1540, %v1540
    %v1669 = vmul.f32 %v1541, %v1541
    %v1670 = vmul.f32 %v1542, %v1542
    %v1671 = vmul.f32 %v1543, %v1543
    %v1672 = vmul.f32 %v1544, %v1544
    %v1673 = vmul.f32 %v1545, %v1545
    %v1674 = vadd.f32 %v1546, %v1547
    %1675 = vadd.xlane.f32.xlu0 %v1674
    %v1676 = vpop.xlane.xlu0 %1675
    %v1677 = vadd.f32 %v1548, %v1549
    %1678 = vadd.xlane.f32.xlu0 %v1677
    %v1679 = vpop.xlane.xlu0 %1678
    %v1680 = vadd.f32 %v1550, %v1551
    %1681 = vadd.xlane.f32.xlu0 %v1680
    %v1682 = vpop.xlane.xlu0 %1681
    %v1683 = vadd.f32 %v1552, %v1553
    %1684 = vadd.xlane.f32.xlu0 %v1683
    %v1685 = vpop.xlane.xlu0 %1684
    %v1686 = vadd.f32 %v1554, %v1555
    %1687 = vadd.xlane.f32.xlu0 %v1686
    %v1688 = vpop.xlane.xlu0 %1687
    %v1689 = vadd.f32 %v1556, %v1557
    %1690 = vadd.xlane.f32.xlu0 %v1689
    %v1691 = vpop.xlane.xlu0 %1690
    %v1692 = vadd.f32 %v1558, %v1559
    %1693 = vadd.xlane.f32.xlu0 %v1692
    %v1694 = vpop.xlane.xlu0 %1693
    %v1695 = vadd.f32 %v1560, %v1561
    %1696 = vadd.xlane.f32.xlu0 %v1695
    %v1697 = vpop.xlane.xlu0 %1696
    %v1698 = vadd.f32 %v1562, %v1563
    %1699 = vadd.xlane.f32.xlu0 %v1698
    %v1700 = vpop.xlane.xlu0 %1699
    %v1701 = vadd.f32 %v1564, %v1565
    %1702 = vadd.xlane.f32.xlu0 %v1701
    %v1703 = vpop.xlane.xlu0 %1702
    %v1704 = vadd.f32 %v1566, %v1567
    %1705 = vadd.xlane.f32.xlu0 %v1704
    %v1706 = vpop.xlane.xlu0 %1705
    %v1707 = vadd.f32 %v1568, %v1569
    %1708 = vadd.xlane.f32.xlu0 %v1707
    %v1709 = vpop.xlane.xlu0 %1708
    %v1710 = vadd.f32 %v1570, %v1571
    %1711 = vadd.xlane.f32.xlu0 %v1710
    %v1712 = vpop.xlane.xlu0 %1711
    %v1713 = vadd.f32 %v1572, %v1573
    %1714 = vadd.xlane.f32.xlu0 %v1713
    %v1715 = vpop.xlane.xlu0 %1714
    %v1716 = vadd.f32 %v1574, %v1575
    %1717 = vadd.xlane.f32.xlu0 %v1716
    %v1718 = vpop.xlane.xlu0 %1717
    %v1719 = vadd.f32 %v1576, %v1577
    %1720 = vadd.xlane.f32.xlu0 %v1719
    %v1721 = vpop.xlane.xlu0 %1720
    %v1722 = vadd.f32 %v1578, %v1579
    %1723 = vadd.xlane.f32.xlu0 %v1722
    %v1724 = vpop.xlane.xlu0 %1723
    %v1725 = vadd.f32 %v1580, %v1581
    %1726 = vadd.xlane.f32.xlu0 %v1725
    %v1727 = vpop.xlane.xlu0 %1726
    %v1728 = vadd.f32 %v1582, %v1583
    %1729 = vadd.xlane.f32.xlu0 %v1728
    %v1730 = vpop.xlane.xlu0 %1729
    %v1731 = vadd.f32 %v1584, %v1585
    %1732 = vadd.xlane.f32.xlu0 %v1731
    %v1733 = vpop.xlane.xlu0 %1732
    %v1734 = vadd.f32 %v1586, %v1587
    %1735 = vadd.xlane.f32.xlu0 %v1734
    %v1736 = vpop.xlane.xlu0 %1735
    %v1737 = vadd.f32 %v1588, %v1589
    %1738 = vadd.xlane.f32.xlu0 %v1737
    %v1739 = vpop.xlane.xlu0 %1738
    %v1740 = vadd.f32 %v1590, %v1591
    %1741 = vadd.xlane.f32.xlu0 %v1740
    %v1742 = vpop.xlane.xlu0 %1741
    %v1743 = vadd.f32 %v1592, %v1593
    %1744 = vadd.xlane.f32.xlu0 %v1743
    %v1745 = vpop.xlane.xlu0 %1744
    %v1746 = vadd.f32 %v1594, %v1595
    %1747 = vadd.xlane.f32.xlu0 %v1746
    %v1748 = vpop.xlane.xlu0 %1747
    %v1749 = vadd.f32 %v1596, %v1597
    %1750 = vadd.xlane.f32.xlu0 %v1749
    %v1751 = vpop.xlane.xlu0 %1750
    %v1752 = vadd.f32 %v1598, %v1599
    %1753 = vadd.xlane.f32.xlu0 %v1752
    %v1754 = vpop.xlane.xlu0 %1753
    %v1755 = vadd.f32 %v1600, %v1601
    %1756 = vadd.xlane.f32.xlu0 %v1755
    %v1757 = vpop.xlane.xlu0 %1756
    %v1758 = vadd.f32 %v1602, %v1603
    %1759 = vadd.xlane.f32.xlu0 %v1758
    %v1760 = vpop.xlane.xlu0 %1759
    %v1761 = vadd.f32 %v1604, %v1605
    %1762 = vadd.xlane.f32.xlu0 %v1761
    %v1763 = vpop.xlane.xlu0 %1762
    %v1764 = vadd.f32 %v1606, %v1607
    %1765 = vadd.xlane.f32.xlu0 %v1764
    %v1766 = vpop.xlane.xlu0 %1765
    %v1767 = vadd.f32 %v1608, %v1609
    %1768 = vadd.xlane.f32.xlu0 %v1767
    %v1769 = vpop.xlane.xlu0 %1768
    %v1770 = vadd.f32 %v1610, %v1611
    %1771 = vadd.xlane.f32.xlu0 %v1770
    %v1772 = vpop.xlane.xlu0 %1771
    %v1773 = vadd.f32 %v1612, %v1613
    %1774 = vadd.xlane.f32.xlu0 %v1773
    %v1775 = vpop.xlane.xlu0 %1774
    %v1776 = vadd.f32 %v1614, %v1615
    %1777 = vadd.xlane.f32.xlu0 %v1776
    %v1778 = vpop.xlane.xlu0 %1777
    %v1779 = vadd.f32 %v1616, %v1617
    %1780 = vadd.xlane.f32.xlu0 %v1779
    %v1781 = vpop.xlane.xlu0 %1780
    %v1782 = vadd.f32 %v1618, %v1619
    %1783 = vadd.xlane.f32.xlu0 %v1782
    %v1784 = vpop.xlane.xlu0 %1783
    %v1785 = vadd.f32 %v1620, %v1621
    %1786 = vadd.xlane.f32.xlu0 %v1785
    %v1787 = vpop.xlane.xlu0 %1786
    %v1788 = vadd.f32 %v1622, %v1623
    %1789 = vadd.xlane.f32.xlu0 %v1788
    %v1790 = vpop.xlane.xlu0 %1789
    %v1791 = vadd.f32 %v1624, %v1625
    %1792 = vadd.xlane.f32.xlu0 %v1791
    %v1793 = vpop.xlane.xlu0 %1792
    %v1794 = vadd.f32 %v1626, %v1627
    %1795 = vadd.xlane.f32.xlu0 %v1794
    %v1796 = vpop.xlane.xlu0 %1795
    %v1797 = vadd.f32 %v1628, %v1629
    %1798 = vadd.xlane.f32.xlu0 %v1797
    %v1799 = vpop.xlane.xlu0 %1798
    %v1800 = vadd.f32 %v1630, %v1631
    %1801 = vadd.xlane.f32.xlu0 %v1800
    %v1802 = vpop.xlane.xlu0 %1801
    %v1803 = vadd.f32 %v1632, %v1633
    %1804 = vadd.xlane.f32.xlu0 %v1803
    %v1805 = vpop.xlane.xlu0 %1804
    %v1806 = vadd.f32 %v1634, %v1635
    %1807 = vadd.xlane.f32.xlu0 %v1806
    %v1808 = vpop.xlane.xlu0 %1807
    %v1809 = vadd.f32 %v1636, %v1637
    %1810 = vadd.xlane.f32.xlu0 %v1809
    %v1811 = vpop.xlane.xlu0 %1810
    %v1812 = vadd.f32 %v1638, %v1639
    %1813 = vadd.xlane.f32.xlu0 %v1812
    %v1814 = vpop.xlane.xlu0 %1813
    %v1815 = vadd.f32 %v1640, %v1641
    %1816 = vadd.xlane.f32.xlu0 %v1815
    %v1817 = vpop.xlane.xlu0 %1816
    %v1818 = vadd.f32 %v1642, %v1643
    %1819 = vadd.xlane.f32.xlu0 %v1818
    %v1820 = vpop.xlane.xlu0 %1819
    %v1821 = vadd.f32 %v1644, %v1645
    %1822 = vadd.xlane.f32.xlu0 %v1821
    %v1823 = vpop.xlane.xlu0 %1822
    %v1824 = vadd.f32 %v1646, %v1647
    %1825 = vadd.xlane.f32.xlu0 %v1824
    %v1826 = vpop.xlane.xlu0 %1825
    %v1827 = vadd.f32 %v1648, %v1649
    %1828 = vadd.xlane.f32.xlu0 %v1827
    %v1829 = vpop.xlane.xlu0 %1828
    %v1830 = vadd.f32 %v1650, %v1651
    %1831 = vadd.xlane.f32.xlu0 %v1830
    %v1832 = vpop.xlane.xlu0 %1831
    %v1833 = vadd.f32 %v1652, %v1653
    %1834 = vadd.xlane.f32.xlu0 %v1833
    %v1835 = vpop.xlane.xlu0 %1834
    %v1836 = vadd.f32 %v1654, %v1655
    %1837 = vadd.xlane.f32.xlu0 %v1836
    %v1838 = vpop.xlane.xlu0 %1837
    %v1839 = vadd.f32 %v1656, %v1657
    %1840 = vadd.xlane.f32.xlu0 %v1839
    %v1841 = vpop.xlane.xlu0 %1840
    %v1842 = vadd.f32 %v1658, %v1659
    %1843 = vadd.xlane.f32.xlu0 %v1842
    %v1844 = vpop.xlane.xlu0 %1843
    %v1845 = vadd.f32 %v1660, %v1661
    %1846 = vadd.xlane.f32.xlu0 %v1845
    %v1847 = vpop.xlane.xlu0 %1846
    %v1848 = vadd.f32 %v1662, %v1663
    %1849 = vadd.xlane.f32.xlu0 %v1848
    %v1850 = vpop.xlane.xlu0 %1849
    %v1851 = vadd.f32 %v1664, %v1665
    %1852 = vadd.xlane.f32.xlu0 %v1851
    %v1853 = vpop.xlane.xlu0 %1852
    %v1854 = vadd.f32 %v1666, %v1667
    %1855 = vadd.xlane.f32.xlu0 %v1854
    %v1856 = vpop.xlane.xlu0 %1855
    %v1857 = vadd.f32 %v1668, %v1669
    %1858 = vadd.xlane.f32.xlu0 %v1857
    %v1859 = vpop.xlane.xlu0 %1858
    %v1860 = vadd.f32 %v1670, %v1671
    %1861 = vadd.xlane.f32.xlu0 %v1860
    %v1862 = vpop.xlane.xlu0 %1861
    %v1863 = vadd.f32 %v1672, %v1673
    %1864 = vadd.xlane.f32.xlu0 %v1863
    %v1865 = vpop.xlane.xlu0 %1864
    %v1866 = vmul.f32 %v1676, %v1353
    %v1867 = vmul.f32 %v1679, %v1353
    %v1868 = vmul.f32 %v1682, %v1353
    %v1869 = vmul.f32 %v1685, %v1353
    %v1870 = vmul.f32 %v1688, %v1353
    %v1871 = vmul.f32 %v1691, %v1353
    %v1872 = vmul.f32 %v1694, %v1353
    %v1873 = vmul.f32 %v1697, %v1353
    %v1874 = vmul.f32 %v1700, %v1353
    %v1875 = vmul.f32 %v1703, %v1353
    %v1876 = vmul.f32 %v1706, %v1353
    %v1877 = vmul.f32 %v1709, %v1353
    %v1878 = vmul.f32 %v1712, %v1353
    %v1879 = vmul.f32 %v1715, %v1353
    %v1880 = vmul.f32 %v1718, %v1353
    %v1881 = vmul.f32 %v1721, %v1353
    %v1882 = vmul.f32 %v1724, %v1353
    %v1883 = vmul.f32 %v1727, %v1353
    %v1884 = vmul.f32 %v1730, %v1353
    %v1885 = vmul.f32 %v1733, %v1353
    %v1886 = vmul.f32 %v1736, %v1353
    %v1887 = vmul.f32 %v1739, %v1353
    %v1888 = vmul.f32 %v1742, %v1353
    %v1889 = vmul.f32 %v1745, %v1353
    %v1890 = vmul.f32 %v1748, %v1353
    %v1891 = vmul.f32 %v1751, %v1353
    %v1892 = vmul.f32 %v1754, %v1353
    %v1893 = vmul.f32 %v1757, %v1353
    %v1894 = vmul.f32 %v1760, %v1353
    %v1895 = vmul.f32 %v1763, %v1353
    %v1896 = vmul.f32 %v1766, %v1353
    %v1897 = vmul.f32 %v1769, %v1353
    %v1898 = vmul.f32 %v1772, %v1353
    %v1899 = vmul.f32 %v1775, %v1353
    %v1900 = vmul.f32 %v1778, %v1353
    %v1901 = vmul.f32 %v1781, %v1353
    %v1902 = vmul.f32 %v1784, %v1353
    %v1903 = vmul.f32 %v1787, %v1353
    %v1904 = vmul.f32 %v1790, %v1353
    %v1905 = vmul.f32 %v1793, %v1353
    %v1906 = vmul.f32 %v1796, %v1353
    %v1907 = vmul.f32 %v1799, %v1353
    %v1908 = vmul.f32 %v1802, %v1353
    %v1909 = vmul.f32 %v1805, %v1353
    %v1910 = vmul.f32 %v1808, %v1353
    %v1911 = vmul.f32 %v1811, %v1353
    %v1912 = vmul.f32 %v1814, %v1353
    %v1913 = vmul.f32 %v1817, %v1353
    %v1914 = vmul.f32 %v1820, %v1353
    %v1915 = vmul.f32 %v1823, %v1353
    %v1916 = vmul.f32 %v1826, %v1353
    %v1917 = vmul.f32 %v1829, %v1353
    %v1918 = vmul.f32 %v1832, %v1353
    %v1919 = vmul.f32 %v1835, %v1353
    %v1920 = vmul.f32 %v1838, %v1353
    %v1921 = vmul.f32 %v1841, %v1353
    %v1922 = vmul.f32 %v1844, %v1353
    %v1923 = vmul.f32 %v1847, %v1353
    %v1924 = vmul.f32 %v1850, %v1353
    %v1925 = vmul.f32 %v1853, %v1353
    %v1926 = vmul.f32 %v1856, %v1353
    %v1927 = vmul.f32 %v1859, %v1353
    %v1928 = vmul.f32 %v1862, %v1353
    %v1929 = vmul.f32 %v1865, %v1353
    %v1930 = vadd.f32 %v1866, 1e-05
    %v1931 = vadd.f32 %v1867, 1e-05
    %v1932 = vadd.f32 %v1868, 1e-05
    %v1933 = vadd.f32 %v1869, 1e-05
    %v1934 = vadd.f32 %v1870, 1e-05
    %v1935 = vadd.f32 %v1871, 1e-05
    %v1936 = vadd.f32 %v1872, 1e-05
    %v1937 = vadd.f32 %v1873, 1e-05
    %v1938 = vadd.f32 %v1874, 1e-05
    %v1939 = vadd.f32 %v1875, 1e-05
    %v1940 = vadd.f32 %v1876, 1e-05
    %v1941 = vadd.f32 %v1877, 1e-05
    %v1942 = vadd.f32 %v1878, 1e-05
    %v1943 = vadd.f32 %v1879, 1e-05
    %v1944 = vadd.f32 %v1880, 1e-05
    %v1945 = vadd.f32 %v1881, 1e-05
    %v1946 = vadd.f32 %v1882, 1e-05
    %v1947 = vadd.f32 %v1883, 1e-05
    %v1948 = vadd.f32 %v1884, 1e-05
    %v1949 = vadd.f32 %v1885, 1e-05
    %v1950 = vadd.f32 %v1886, 1e-05
    %v1951 = vadd.f32 %v1887, 1e-05
    %v1952 = vadd.f32 %v1888, 1e-05
    %v1953 = vadd.f32 %v1889, 1e-05
    %v1954 = vadd.f32 %v1890, 1e-05
    %v1955 = vadd.f32 %v1891, 1e-05
    %v1956 = vadd.f32 %v1892, 1e-05
    %v1957 = vadd.f32 %v1893, 1e-05
    %v1958 = vadd.f32 %v1894, 1e-05
    %v1959 = vadd.f32 %v1895, 1e-05
    %v1960 = vadd.f32 %v1896, 1e-05
    %v1961 = vadd.f32 %v1897, 1e-05
    %v1962 = vadd.f32 %v1898, 1e-05
    %v1963 = vadd.f32 %v1899, 1e-05
    %v1964 = vadd.f32 %v1900, 1e-05
    %v1965 = vadd.f32 %v1901, 1e-05
    %v1966 = vadd.f32 %v1902, 1e-05
    %v1967 = vadd.f32 %v1903, 1e-05
    %v1968 = vadd.f32 %v1904, 1e-05
    %v1969 = vadd.f32 %v1905, 1e-05
    %v1970 = vadd.f32 %v1906, 1e-05
    %v1971 = vadd.f32 %v1907, 1e-05
    %v1972 = vadd.f32 %v1908, 1e-05
    %v1973 = vadd.f32 %v1909, 1e-05
    %v1974 = vadd.f32 %v1910, 1e-05
    %v1975 = vadd.f32 %v1911, 1e-05
    %v1976 = vadd.f32 %v1912, 1e-05
    %v1977 = vadd.f32 %v1913, 1e-05
    %v1978 = vadd.f32 %v1914, 1e-05
    %v1979 = vadd.f32 %v1915, 1e-05
    %v1980 = vadd.f32 %v1916, 1e-05
    %v1981 = vadd.f32 %v1917, 1e-05
    %v1982 = vadd.f32 %v1918, 1e-05
    %v1983 = vadd.f32 %v1919, 1e-05
    %v1984 = vadd.f32 %v1920, 1e-05
    %v1985 = vadd.f32 %v1921, 1e-05
    %v1986 = vadd.f32 %v1922, 1e-05
    %v1987 = vadd.f32 %v1923, 1e-05
    %v1988 = vadd.f32 %v1924, 1e-05
    %v1989 = vadd.f32 %v1925, 1e-05
    %v1990 = vadd.f32 %v1926, 1e-05
    %v1991 = vadd.f32 %v1927, 1e-05
    %v1992 = vadd.f32 %v1928, 1e-05
    %v1993 = vadd.f32 %v1929, 1e-05
    %v1994 = vrsqrt.pop %v1930
    %v1995 = vmul.f32 %v1994, %v1930
    %v1996 = vmul.f32 %v1995, %v1994
    %v1997 = vmul.f32 0.5, %v1996
    %v1998 = vsub.f32 1.5, %v1997
    %v1999 = vmul.f32 %v1994, %v1998
    %vm2000 = vweird.f32 %v1930
    %vm2001 = vweird.f32 %v1994
    %vm2002 = vmor %vm2000, %vm2001
    %v2003 = vsel %vm2002, %v1994, %v1999
    %v2004 = vrsqrt.pop %v1931
    %v2005 = vmul.f32 %v2004, %v1931
    %v2006 = vmul.f32 %v2005, %v2004
    %v2007 = vmul.f32 0.5, %v2006
    %v2008 = vsub.f32 1.5, %v2007
    %v2009 = vmul.f32 %v2004, %v2008
    %vm2010 = vweird.f32 %v1931
    %vm2011 = vweird.f32 %v2004
    %vm2012 = vmor %vm2010, %vm2011
    %v2013 = vsel %vm2012, %v2004, %v2009
    %v2014 = vrsqrt.pop %v1932
    %v2015 = vmul.f32 %v2014, %v1932
    %v2016 = vmul.f32 %v2015, %v2014
    %v2017 = vmul.f32 0.5, %v2016
    %v2018 = vsub.f32 1.5, %v2017
    %v2019 = vmul.f32 %v2014, %v2018
    %vm2020 = vweird.f32 %v1932
    %vm2021 = vweird.f32 %v2014
    %vm2022 = vmor %vm2020, %vm2021
    %v2023 = vsel %vm2022, %v2014, %v2019
    %v2024 = vrsqrt.pop %v1933
    %v2025 = vmul.f32 %v2024, %v1933
    %v2026 = vmul.f32 %v2025, %v2024
    %v2027 = vmul.f32 0.5, %v2026
    %v2028 = vsub.f32 1.5, %v2027
    %v2029 = vmul.f32 %v2024, %v2028
    %vm2030 = vweird.f32 %v1933
    %vm2031 = vweird.f32 %v2024
    %vm2032 = vmor %vm2030, %vm2031
    %v2033 = vsel %vm2032, %v2024, %v2029
    %v2034 = vrsqrt.pop %v1934
    %v2035 = vmul.f32 %v2034, %v1934
    %v2036 = vmul.f32 %v2035, %v2034
    %v2037 = vmul.f32 0.5, %v2036
    %v2038 = vsub.f32 1.5, %v2037
    %v2039 = vmul.f32 %v2034, %v2038
    %vm2040 = vweird.f32 %v1934
    %vm2041 = vweird.f32 %v2034
    %vm2042 = vmor %vm2040, %vm2041
    %v2043 = vsel %vm2042, %v2034, %v2039
    %v2044 = vrsqrt.pop %v1935
    %v2045 = vmul.f32 %v2044, %v1935
    %v2046 = vmul.f32 %v2045, %v2044
    %v2047 = vmul.f32 0.5, %v2046
    %v2048 = vsub.f32 1.5, %v2047
    %v2049 = vmul.f32 %v2044, %v2048
    %vm2050 = vweird.f32 %v1935
    %vm2051 = vweird.f32 %v2044
    %vm2052 = vmor %vm2050, %vm2051
    %v2053 = vsel %vm2052, %v2044, %v2049
    %v2054 = vrsqrt.pop %v1936
    %v2055 = vmul.f32 %v2054, %v1936
    %v2056 = vmul.f32 %v2055, %v2054
    %v2057 = vmul.f32 0.5, %v2056
    %v2058 = vsub.f32 1.5, %v2057
    %v2059 = vmul.f32 %v2054, %v2058
    %vm2060 = vweird.f32 %v1936
    %vm2061 = vweird.f32 %v2054
    %vm2062 = vmor %vm2060, %vm2061
    %v2063 = vsel %vm2062, %v2054, %v2059
    %v2064 = vrsqrt.pop %v1937
    %v2065 = vmul.f32 %v2064, %v1937
    %v2066 = vmul.f32 %v2065, %v2064
    %v2067 = vmul.f32 0.5, %v2066
    %v2068 = vsub.f32 1.5, %v2067
    %v2069 = vmul.f32 %v2064, %v2068
    %vm2070 = vweird.f32 %v1937
    %vm2071 = vweird.f32 %v2064
    %vm2072 = vmor %vm2070, %vm2071
    %v2073 = vsel %vm2072, %v2064, %v2069
    %v2074 = vrsqrt.pop %v1938
    %v2075 = vmul.f32 %v2074, %v1938
    %v2076 = vmul.f32 %v2075, %v2074
    %v2077 = vmul.f32 0.5, %v2076
    %v2078 = vsub.f32 1.5, %v2077
    %v2079 = vmul.f32 %v2074, %v2078
    %vm2080 = vweird.f32 %v1938
    %vm2081 = vweird.f32 %v2074
    %vm2082 = vmor %vm2080, %vm2081
    %v2083 = vsel %vm2082, %v2074, %v2079
    %v2084 = vrsqrt.pop %v1939
    %v2085 = vmul.f32 %v2084, %v1939
    %v2086 = vmul.f32 %v2085, %v2084
    %v2087 = vmul.f32 0.5, %v2086
    %v2088 = vsub.f32 1.5, %v2087
    %v2089 = vmul.f32 %v2084, %v2088
    %vm2090 = vweird.f32 %v1939
    %vm2091 = vweird.f32 %v2084
    %vm2092 = vmor %vm2090, %vm2091
    %v2093 = vsel %vm2092, %v2084, %v2089
    %v2094 = vrsqrt.pop %v1940
    %v2095 = vmul.f32 %v2094, %v1940
    %v2096 = vmul.f32 %v2095, %v2094
    %v2097 = vmul.f32 0.5, %v2096
    %v2098 = vsub.f32 1.5, %v2097
    %v2099 = vmul.f32 %v2094, %v2098
    %vm2100 = vweird.f32 %v1940
    %vm2101 = vweird.f32 %v2094
    %vm2102 = vmor %vm2100, %vm2101
    %v2103 = vsel %vm2102, %v2094, %v2099
    %v2104 = vrsqrt.pop %v1941
    %v2105 = vmul.f32 %v2104, %v1941
    %v2106 = vmul.f32 %v2105, %v2104
    %v2107 = vmul.f32 0.5, %v2106
    %v2108 = vsub.f32 1.5, %v2107
    %v2109 = vmul.f32 %v2104, %v2108
    %vm2110 = vweird.f32 %v1941
    %vm2111 = vweird.f32 %v2104
    %vm2112 = vmor %vm2110, %vm2111
    %v2113 = vsel %vm2112, %v2104, %v2109
    %v2114 = vrsqrt.pop %v1942
    %v2115 = vmul.f32 %v2114, %v1942
    %v2116 = vmul.f32 %v2115, %v2114
    %v2117 = vmul.f32 0.5, %v2116
    %v2118 = vsub.f32 1.5, %v2117
    %v2119 = vmul.f32 %v2114, %v2118
    %vm2120 = vweird.f32 %v1942
    %vm2121 = vweird.f32 %v2114
    %vm2122 = vmor %vm2120, %vm2121
    %v2123 = vsel %vm2122, %v2114, %v2119
    %v2124 = vrsqrt.pop %v1943
    %v2125 = vmul.f32 %v2124, %v1943
    %v2126 = vmul.f32 %v2125, %v2124
    %v2127 = vmul.f32 0.5, %v2126
    %v2128 = vsub.f32 1.5, %v2127
    %v2129 = vmul.f32 %v2124, %v2128
    %vm2130 = vweird.f32 %v1943
    %vm2131 = vweird.f32 %v2124
    %vm2132 = vmor %vm2130, %vm2131
    %v2133 = vsel %vm2132, %v2124, %v2129
    %v2134 = vrsqrt.pop %v1944
    %v2135 = vmul.f32 %v2134, %v1944
    %v2136 = vmul.f32 %v2135, %v2134
    %v2137 = vmul.f32 0.5, %v2136
    %v2138 = vsub.f32 1.5, %v2137
    %v2139 = vmul.f32 %v2134, %v2138
    %vm2140 = vweird.f32 %v1944
    %vm2141 = vweird.f32 %v2134
    %vm2142 = vmor %vm2140, %vm2141
    %v2143 = vsel %vm2142, %v2134, %v2139
    %v2144 = vrsqrt.pop %v1945
    %v2145 = vmul.f32 %v2144, %v1945
    %v2146 = vmul.f32 %v2145, %v2144
    %v2147 = vmul.f32 0.5, %v2146
    %v2148 = vsub.f32 1.5, %v2147
    %v2149 = vmul.f32 %v2144, %v2148
    %vm2150 = vweird.f32 %v1945
    %vm2151 = vweird.f32 %v2144
    %vm2152 = vmor %vm2150, %vm2151
    %v2153 = vsel %vm2152, %v2144, %v2149
    %v2154 = vrsqrt.pop %v1946
    %v2155 = vmul.f32 %v2154, %v1946
    %v2156 = vmul.f32 %v2155, %v2154
    %v2157 = vmul.f32 0.5, %v2156
    %v2158 = vsub.f32 1.5, %v2157
    %v2159 = vmul.f32 %v2154, %v2158
    %vm2160 = vweird.f32 %v1946
    %vm2161 = vweird.f32 %v2154
    %vm2162 = vmor %vm2160, %vm2161
    %v2163 = vsel %vm2162, %v2154, %v2159
    %v2164 = vrsqrt.pop %v1947
    %v2165 = vmul.f32 %v2164, %v1947
    %v2166 = vmul.f32 %v2165, %v2164
    %v2167 = vmul.f32 0.5, %v2166
    %v2168 = vsub.f32 1.5, %v2167
    %v2169 = vmul.f32 %v2164, %v2168
    %vm2170 = vweird.f32 %v1947
    %vm2171 = vweird.f32 %v2164
    %vm2172 = vmor %vm2170, %vm2171
    %v2173 = vsel %vm2172, %v2164, %v2169
    %v2174 = vrsqrt.pop %v1948
    %v2175 = vmul.f32 %v2174, %v1948
    %v2176 = vmul.f32 %v2175, %v2174
    %v2177 = vmul.f32 0.5, %v2176
    %v2178 = vsub.f32 1.5, %v2177
    %v2179 = vmul.f32 %v2174, %v2178
    %vm2180 = vweird.f32 %v1948
    %vm2181 = vweird.f32 %v2174
    %vm2182 = vmor %vm2180, %vm2181
    %v2183 = vsel %vm2182, %v2174, %v2179
    %v2184 = vrsqrt.pop %v1949
    %v2185 = vmul.f32 %v2184, %v1949
    %v2186 = vmul.f32 %v2185, %v2184
    %v2187 = vmul.f32 0.5, %v2186
    %v2188 = vsub.f32 1.5, %v2187
    %v2189 = vmul.f32 %v2184, %v2188
    %vm2190 = vweird.f32 %v1949
    %vm2191 = vweird.f32 %v2184
    %vm2192 = vmor %vm2190, %vm2191
    %v2193 = vsel %vm2192, %v2184, %v2189
    %v2194 = vrsqrt.pop %v1950
    %v2195 = vmul.f32 %v2194, %v1950
    %v2196 = vmul.f32 %v2195, %v2194
    %v2197 = vmul.f32 0.5, %v2196
    %v2198 = vsub.f32 1.5, %v2197
    %v2199 = vmul.f32 %v2194, %v2198
    %vm2200 = vweird.f32 %v1950
    %vm2201 = vweird.f32 %v2194
    %vm2202 = vmor %vm2200, %vm2201
    %v2203 = vsel %vm2202, %v2194, %v2199
    %v2204 = vrsqrt.pop %v1951
    %v2205 = vmul.f32 %v2204, %v1951
    %v2206 = vmul.f32 %v2205, %v2204
    %v2207 = vmul.f32 0.5, %v2206
    %v2208 = vsub.f32 1.5, %v2207
    %v2209 = vmul.f32 %v2204, %v2208
    %vm2210 = vweird.f32 %v1951
    %vm2211 = vweird.f32 %v2204
    %vm2212 = vmor %vm2210, %vm2211
    %v2213 = vsel %vm2212, %v2204, %v2209
    %v2214 = vrsqrt.pop %v1952
    %v2215 = vmul.f32 %v2214, %v1952
    %v2216 = vmul.f32 %v2215, %v2214
    %v2217 = vmul.f32 0.5, %v2216
    %v2218 = vsub.f32 1.5, %v2217
    %v2219 = vmul.f32 %v2214, %v2218
    %vm2220 = vweird.f32 %v1952
    %vm2221 = vweird.f32 %v2214
    %vm2222 = vmor %vm2220, %vm2221
    %v2223 = vsel %vm2222, %v2214, %v2219
    %v2224 = vrsqrt.pop %v1953
    %v2225 = vmul.f32 %v2224, %v1953
    %v2226 = vmul.f32 %v2225, %v2224
    %v2227 = vmul.f32 0.5, %v2226
    %v2228 = vsub.f32 1.5, %v2227
    %v2229 = vmul.f32 %v2224, %v2228
    %vm2230 = vweird.f32 %v1953
    %vm2231 = vweird.f32 %v2224
    %vm2232 = vmor %vm2230, %vm2231
    %v2233 = vsel %vm2232, %v2224, %v2229
    %v2234 = vrsqrt.pop %v1954
    %v2235 = vmul.f32 %v2234, %v1954
    %v2236 = vmul.f32 %v2235, %v2234
    %v2237 = vmul.f32 0.5, %v2236
    %v2238 = vsub.f32 1.5, %v2237
    %v2239 = vmul.f32 %v2234, %v2238
    %vm2240 = vweird.f32 %v1954
    %vm2241 = vweird.f32 %v2234
    %vm2242 = vmor %vm2240, %vm2241
    %v2243 = vsel %vm2242, %v2234, %v2239
    %v2244 = vrsqrt.pop %v1955
    %v2245 = vmul.f32 %v2244, %v1955
    %v2246 = vmul.f32 %v2245, %v2244
    %v2247 = vmul.f32 0.5, %v2246
    %v2248 = vsub.f32 1.5, %v2247
    %v2249 = vmul.f32 %v2244, %v2248
    %vm2250 = vweird.f32 %v1955
    %vm2251 = vweird.f32 %v2244
    %vm2252 = vmor %vm2250, %vm2251
    %v2253 = vsel %vm2252, %v2244, %v2249
    %v2254 = vrsqrt.pop %v1956
    %v2255 = vmul.f32 %v2254, %v1956
    %v2256 = vmul.f32 %v2255, %v2254
    %v2257 = vmul.f32 0.5, %v2256
    %v2258 = vsub.f32 1.5, %v2257
    %v2259 = vmul.f32 %v2254, %v2258
    %vm2260 = vweird.f32 %v1956
    %vm2261 = vweird.f32 %v2254
    %vm2262 = vmor %vm2260, %vm2261
    %v2263 = vsel %vm2262, %v2254, %v2259
    %v2264 = vrsqrt.pop %v1957
    %v2265 = vmul.f32 %v2264, %v1957
    %v2266 = vmul.f32 %v2265, %v2264
    %v2267 = vmul.f32 0.5, %v2266
    %v2268 = vsub.f32 1.5, %v2267
    %v2269 = vmul.f32 %v2264, %v2268
    %vm2270 = vweird.f32 %v1957
    %vm2271 = vweird.f32 %v2264
    %vm2272 = vmor %vm2270, %vm2271
    %v2273 = vsel %vm2272, %v2264, %v2269
    %v2274 = vrsqrt.pop %v1958
    %v2275 = vmul.f32 %v2274, %v1958
    %v2276 = vmul.f32 %v2275, %v2274
    %v2277 = vmul.f32 0.5, %v2276
    %v2278 = vsub.f32 1.5, %v2277
    %v2279 = vmul.f32 %v2274, %v2278
    %vm2280 = vweird.f32 %v1958
    %vm2281 = vweird.f32 %v2274
    %vm2282 = vmor %vm2280, %vm2281
    %v2283 = vsel %vm2282, %v2274, %v2279
    %v2284 = vrsqrt.pop %v1959
    %v2285 = vmul.f32 %v2284, %v1959
    %v2286 = vmul.f32 %v2285, %v2284
    %v2287 = vmul.f32 0.5, %v2286
    %v2288 = vsub.f32 1.5, %v2287
    %v2289 = vmul.f32 %v2284, %v2288
    %vm2290 = vweird.f32 %v1959
    %vm2291 = vweird.f32 %v2284
    %vm2292 = vmor %vm2290, %vm2291
    %v2293 = vsel %vm2292, %v2284, %v2289
    %v2294 = vrsqrt.pop %v1960
    %v2295 = vmul.f32 %v2294, %v1960
    %v2296 = vmul.f32 %v2295, %v2294
    %v2297 = vmul.f32 0.5, %v2296
    %v2298 = vsub.f32 1.5, %v2297
    %v2299 = vmul.f32 %v2294, %v2298
    %vm2300 = vweird.f32 %v1960
    %vm2301 = vweird.f32 %v2294
    %vm2302 = vmor %vm2300, %vm2301
    %v2303 = vsel %vm2302, %v2294, %v2299
    %v2304 = vrsqrt.pop %v1961
    %v2305 = vmul.f32 %v2304, %v1961
    %v2306 = vmul.f32 %v2305, %v2304
    %v2307 = vmul.f32 0.5, %v2306
    %v2308 = vsub.f32 1.5, %v2307
    %v2309 = vmul.f32 %v2304, %v2308
    %vm2310 = vweird.f32 %v1961
    %vm2311 = vweird.f32 %v2304
    %vm2312 = vmor %vm2310, %vm2311
    %v2313 = vsel %vm2312, %v2304, %v2309
    %v2314 = vrsqrt.pop %v1962
    %v2315 = vmul.f32 %v2314, %v1962
    %v2316 = vmul.f32 %v2315, %v2314
    %v2317 = vmul.f32 0.5, %v2316
    %v2318 = vsub.f32 1.5, %v2317
    %v2319 = vmul.f32 %v2314, %v2318
    %vm2320 = vweird.f32 %v1962
    %vm2321 = vweird.f32 %v2314
    %vm2322 = vmor %vm2320, %vm2321
    %v2323 = vsel %vm2322, %v2314, %v2319
    %v2324 = vrsqrt.pop %v1963
    %v2325 = vmul.f32 %v2324, %v1963
    %v2326 = vmul.f32 %v2325, %v2324
    %v2327 = vmul.f32 0.5, %v2326
    %v2328 = vsub.f32 1.5, %v2327
    %v2329 = vmul.f32 %v2324, %v2328
    %vm2330 = vweird.f32 %v1963
    %vm2331 = vweird.f32 %v2324
    %vm2332 = vmor %vm2330, %vm2331
    %v2333 = vsel %vm2332, %v2324, %v2329
    %v2334 = vrsqrt.pop %v1964
    %v2335 = vmul.f32 %v2334, %v1964
    %v2336 = vmul.f32 %v2335, %v2334
    %v2337 = vmul.f32 0.5, %v2336
    %v2338 = vsub.f32 1.5, %v2337
    %v2339 = vmul.f32 %v2334, %v2338
    %vm2340 = vweird.f32 %v1964
    %vm2341 = vweird.f32 %v2334
    %vm2342 = vmor %vm2340, %vm2341
    %v2343 = vsel %vm2342, %v2334, %v2339
    %v2344 = vrsqrt.pop %v1965
    %v2345 = vmul.f32 %v2344, %v1965
    %v2346 = vmul.f32 %v2345, %v2344
    %v2347 = vmul.f32 0.5, %v2346
    %v2348 = vsub.f32 1.5, %v2347
    %v2349 = vmul.f32 %v2344, %v2348
    %vm2350 = vweird.f32 %v1965
    %vm2351 = vweird.f32 %v2344
    %vm2352 = vmor %vm2350, %vm2351
    %v2353 = vsel %vm2352, %v2344, %v2349
    %v2354 = vrsqrt.pop %v1966
    %v2355 = vmul.f32 %v2354, %v1966
    %v2356 = vmul.f32 %v2355, %v2354
    %v2357 = vmul.f32 0.5, %v2356
    %v2358 = vsub.f32 1.5, %v2357
    %v2359 = vmul.f32 %v2354, %v2358
    %vm2360 = vweird.f32 %v1966
    %vm2361 = vweird.f32 %v2354
    %vm2362 = vmor %vm2360, %vm2361
    %v2363 = vsel %vm2362, %v2354, %v2359
    %v2364 = vrsqrt.pop %v1967
    %v2365 = vmul.f32 %v2364, %v1967
    %v2366 = vmul.f32 %v2365, %v2364
    %v2367 = vmul.f32 0.5, %v2366
    %v2368 = vsub.f32 1.5, %v2367
    %v2369 = vmul.f32 %v2364, %v2368
    %vm2370 = vweird.f32 %v1967
    %vm2371 = vweird.f32 %v2364
    %vm2372 = vmor %vm2370, %vm2371
    %v2373 = vsel %vm2372, %v2364, %v2369
    %v2374 = vrsqrt.pop %v1968
    %v2375 = vmul.f32 %v2374, %v1968
    %v2376 = vmul.f32 %v2375, %v2374
    %v2377 = vmul.f32 0.5, %v2376
    %v2378 = vsub.f32 1.5, %v2377
    %v2379 = vmul.f32 %v2374, %v2378
    %vm2380 = vweird.f32 %v1968
    %vm2381 = vweird.f32 %v2374
    %vm2382 = vmor %vm2380, %vm2381
    %v2383 = vsel %vm2382, %v2374, %v2379
    %v2384 = vrsqrt.pop %v1969
    %v2385 = vmul.f32 %v2384, %v1969
    %v2386 = vmul.f32 %v2385, %v2384
    %v2387 = vmul.f32 0.5, %v2386
    %v2388 = vsub.f32 1.5, %v2387
    %v2389 = vmul.f32 %v2384, %v2388
    %vm2390 = vweird.f32 %v1969
    %vm2391 = vweird.f32 %v2384
    %vm2392 = vmor %vm2390, %vm2391
    %v2393 = vsel %vm2392, %v2384, %v2389
    %v2394 = vrsqrt.pop %v1970
    %v2395 = vmul.f32 %v2394, %v1970
    %v2396 = vmul.f32 %v2395, %v2394
    %v2397 = vmul.f32 0.5, %v2396
    %v2398 = vsub.f32 1.5, %v2397
    %v2399 = vmul.f32 %v2394, %v2398
    %vm2400 = vweird.f32 %v1970
    %vm2401 = vweird.f32 %v2394
    %vm2402 = vmor %vm2400, %vm2401
    %v2403 = vsel %vm2402, %v2394, %v2399
    %v2404 = vrsqrt.pop %v1971
    %v2405 = vmul.f32 %v2404, %v1971
    %v2406 = vmul.f32 %v2405, %v2404
    %v2407 = vmul.f32 0.5, %v2406
    %v2408 = vsub.f32 1.5, %v2407
    %v2409 = vmul.f32 %v2404, %v2408
    %vm2410 = vweird.f32 %v1971
    %vm2411 = vweird.f32 %v2404
    %vm2412 = vmor %vm2410, %vm2411
    %v2413 = vsel %vm2412, %v2404, %v2409
    %v2414 = vrsqrt.pop %v1972
    %v2415 = vmul.f32 %v2414, %v1972
    %v2416 = vmul.f32 %v2415, %v2414
    %v2417 = vmul.f32 0.5, %v2416
    %v2418 = vsub.f32 1.5, %v2417
    %v2419 = vmul.f32 %v2414, %v2418
    %vm2420 = vweird.f32 %v1972
    %vm2421 = vweird.f32 %v2414
    %vm2422 = vmor %vm2420, %vm2421
    %v2423 = vsel %vm2422, %v2414, %v2419
    %v2424 = vrsqrt.pop %v1973
    %v2425 = vmul.f32 %v2424, %v1973
    %v2426 = vmul.f32 %v2425, %v2424
    %v2427 = vmul.f32 0.5, %v2426
    %v2428 = vsub.f32 1.5, %v2427
    %v2429 = vmul.f32 %v2424, %v2428
    %vm2430 = vweird.f32 %v1973
    %vm2431 = vweird.f32 %v2424
    %vm2432 = vmor %vm2430, %vm2431
    %v2433 = vsel %vm2432, %v2424, %v2429
    %v2434 = vrsqrt.pop %v1974
    %v2435 = vmul.f32 %v2434, %v1974
    %v2436 = vmul.f32 %v2435, %v2434
    %v2437 = vmul.f32 0.5, %v2436
    %v2438 = vsub.f32 1.5, %v2437
    %v2439 = vmul.f32 %v2434, %v2438
    %vm2440 = vweird.f32 %v1974
    %vm2441 = vweird.f32 %v2434
    %vm2442 = vmor %vm2440, %vm2441
    %v2443 = vsel %vm2442, %v2434, %v2439
    %v2444 = vrsqrt.pop %v1975
    %v2445 = vmul.f32 %v2444, %v1975
    %v2446 = vmul.f32 %v2445, %v2444
    %v2447 = vmul.f32 0.5, %v2446
    %v2448 = vsub.f32 1.5, %v2447
    %v2449 = vmul.f32 %v2444, %v2448
    %vm2450 = vweird.f32 %v1975
    %vm2451 = vweird.f32 %v2444
    %vm2452 = vmor %vm2450, %vm2451
    %v2453 = vsel %vm2452, %v2444, %v2449
    %v2454 = vrsqrt.pop %v1976
    %v2455 = vmul.f32 %v2454, %v1976
    %v2456 = vmul.f32 %v2455, %v2454
    %v2457 = vmul.f32 0.5, %v2456
    %v2458 = vsub.f32 1.5, %v2457
    %v2459 = vmul.f32 %v2454, %v2458
    %vm2460 = vweird.f32 %v1976
    %vm2461 = vweird.f32 %v2454
    %vm2462 = vmor %vm2460, %vm2461
    %v2463 = vsel %vm2462, %v2454, %v2459
    %v2464 = vrsqrt.pop %v1977
    %v2465 = vmul.f32 %v2464, %v1977
    %v2466 = vmul.f32 %v2465, %v2464
    %v2467 = vmul.f32 0.5, %v2466
    %v2468 = vsub.f32 1.5, %v2467
    %v2469 = vmul.f32 %v2464, %v2468
    %vm2470 = vweird.f32 %v1977
    %vm2471 = vweird.f32 %v2464
    %vm2472 = vmor %vm2470, %vm2471
    %v2473 = vsel %vm2472, %v2464, %v2469
    %v2474 = vrsqrt.pop %v1978
    %v2475 = vmul.f32 %v2474, %v1978
    %v2476 = vmul.f32 %v2475, %v2474
    %v2477 = vmul.f32 0.5, %v2476
    %v2478 = vsub.f32 1.5, %v2477
    %v2479 = vmul.f32 %v2474, %v2478
    %vm2480 = vweird.f32 %v1978
    %vm2481 = vweird.f32 %v2474
    %vm2482 = vmor %vm2480, %vm2481
    %v2483 = vsel %vm2482, %v2474, %v2479
    %v2484 = vrsqrt.pop %v1979
    %v2485 = vmul.f32 %v2484, %v1979
    %v2486 = vmul.f32 %v2485, %v2484
    %v2487 = vmul.f32 0.5, %v2486
    %v2488 = vsub.f32 1.5, %v2487
    %v2489 = vmul.f32 %v2484, %v2488
    %vm2490 = vweird.f32 %v1979
    %vm2491 = vweird.f32 %v2484
    %vm2492 = vmor %vm2490, %vm2491
    %v2493 = vsel %vm2492, %v2484, %v2489
    %v2494 = vrsqrt.pop %v1980
    %v2495 = vmul.f32 %v2494, %v1980
    %v2496 = vmul.f32 %v2495, %v2494
    %v2497 = vmul.f32 0.5, %v2496
    %v2498 = vsub.f32 1.5, %v2497
    %v2499 = vmul.f32 %v2494, %v2498
    %vm2500 = vweird.f32 %v1980
    %vm2501 = vweird.f32 %v2494
    %vm2502 = vmor %vm2500, %vm2501
    %v2503 = vsel %vm2502, %v2494, %v2499
    %v2504 = vrsqrt.pop %v1981
    %v2505 = vmul.f32 %v2504, %v1981
    %v2506 = vmul.f32 %v2505, %v2504
    %v2507 = vmul.f32 0.5, %v2506
    %v2508 = vsub.f32 1.5, %v2507
    %v2509 = vmul.f32 %v2504, %v2508
    %vm2510 = vweird.f32 %v1981
    %vm2511 = vweird.f32 %v2504
    %vm2512 = vmor %vm2510, %vm2511
    %v2513 = vsel %vm2512, %v2504, %v2509
    %v2514 = vrsqrt.pop %v1982
    %v2515 = vmul.f32 %v2514, %v1982
    %v2516 = vmul.f32 %v2515, %v2514
    %v2517 = vmul.f32 0.5, %v2516
    %v2518 = vsub.f32 1.5, %v2517
    %v2519 = vmul.f32 %v2514, %v2518
    %vm2520 = vweird.f32 %v1982
    %vm2521 = vweird.f32 %v2514
    %vm2522 = vmor %vm2520, %vm2521
    %v2523 = vsel %vm2522, %v2514, %v2519
    %v2524 = vrsqrt.pop %v1983
    %v2525 = vmul.f32 %v2524, %v1983
    %v2526 = vmul.f32 %v2525, %v2524
    %v2527 = vmul.f32 0.5, %v2526
    %v2528 = vsub.f32 1.5, %v2527
    %v2529 = vmul.f32 %v2524, %v2528
    %vm2530 = vweird.f32 %v1983
    %vm2531 = vweird.f32 %v2524
    %vm2532 = vmor %vm2530, %vm2531
    %v2533 = vsel %vm2532, %v2524, %v2529
    %v2534 = vrsqrt.pop %v1984
    %v2535 = vmul.f32 %v2534, %v1984
    %v2536 = vmul.f32 %v2535, %v2534
    %v2537 = vmul.f32 0.5, %v2536
    %v2538 = vsub.f32 1.5, %v2537
    %v2539 = vmul.f32 %v2534, %v2538
    %vm2540 = vweird.f32 %v1984
    %vm2541 = vweird.f32 %v2534
    %vm2542 = vmor %vm2540, %vm2541
    %v2543 = vsel %vm2542, %v2534, %v2539
    %v2544 = vrsqrt.pop %v1985
    %v2545 = vmul.f32 %v2544, %v1985
    %v2546 = vmul.f32 %v2545, %v2544
    %v2547 = vmul.f32 0.5, %v2546
    %v2548 = vsub.f32 1.5, %v2547
    %v2549 = vmul.f32 %v2544, %v2548
    %vm2550 = vweird.f32 %v1985
    %vm2551 = vweird.f32 %v2544
    %vm2552 = vmor %vm2550, %vm2551
    %v2553 = vsel %vm2552, %v2544, %v2549
    %v2554 = vrsqrt.pop %v1986
    %v2555 = vmul.f32 %v2554, %v1986
    %v2556 = vmul.f32 %v2555, %v2554
    %v2557 = vmul.f32 0.5, %v2556
    %v2558 = vsub.f32 1.5, %v2557
    %v2559 = vmul.f32 %v2554, %v2558
    %vm2560 = vweird.f32 %v1986
    %vm2561 = vweird.f32 %v2554
    %vm2562 = vmor %vm2560, %vm2561
    %v2563 = vsel %vm2562, %v2554, %v2559
    %v2564 = vrsqrt.pop %v1987
    %v2565 = vmul.f32 %v2564, %v1987
    %v2566 = vmul.f32 %v2565, %v2564
    %v2567 = vmul.f32 0.5, %v2566
    %v2568 = vsub.f32 1.5, %v2567
    %v2569 = vmul.f32 %v2564, %v2568
    %vm2570 = vweird.f32 %v1987
    %vm2571 = vweird.f32 %v2564
    %vm2572 = vmor %vm2570, %vm2571
    %v2573 = vsel %vm2572, %v2564, %v2569
    %v2574 = vrsqrt.pop %v1988
    %v2575 = vmul.f32 %v2574, %v1988
    %v2576 = vmul.f32 %v2575, %v2574
    %v2577 = vmul.f32 0.5, %v2576
    %v2578 = vsub.f32 1.5, %v2577
    %v2579 = vmul.f32 %v2574, %v2578
    %vm2580 = vweird.f32 %v1988
    %vm2581 = vweird.f32 %v2574
    %vm2582 = vmor %vm2580, %vm2581
    %v2583 = vsel %vm2582, %v2574, %v2579
    %v2584 = vrsqrt.pop %v1989
    %v2585 = vmul.f32 %v2584, %v1989
    %v2586 = vmul.f32 %v2585, %v2584
    %v2587 = vmul.f32 0.5, %v2586
    %v2588 = vsub.f32 1.5, %v2587
    %v2589 = vmul.f32 %v2584, %v2588
    %vm2590 = vweird.f32 %v1989
    %vm2591 = vweird.f32 %v2584
    %vm2592 = vmor %vm2590, %vm2591
    %v2593 = vsel %vm2592, %v2584, %v2589
    %v2594 = vrsqrt.pop %v1990
    %v2595 = vmul.f32 %v2594, %v1990
    %v2596 = vmul.f32 %v2595, %v2594
    %v2597 = vmul.f32 0.5, %v2596
    %v2598 = vsub.f32 1.5, %v2597
    %v2599 = vmul.f32 %v2594, %v2598
    %vm2600 = vweird.f32 %v1990
    %vm2601 = vweird.f32 %v2594
    %vm2602 = vmor %vm2600, %vm2601
    %v2603 = vsel %vm2602, %v2594, %v2599
    %v2604 = vrsqrt.pop %v1991
    %v2605 = vmul.f32 %v2604, %v1991
    %v2606 = vmul.f32 %v2605, %v2604
    %v2607 = vmul.f32 0.5, %v2606
    %v2608 = vsub.f32 1.5, %v2607
    %v2609 = vmul.f32 %v2604, %v2608
    %vm2610 = vweird.f32 %v1991
    %vm2611 = vweird.f32 %v2604
    %vm2612 = vmor %vm2610, %vm2611
    %v2613 = vsel %vm2612, %v2604, %v2609
    %v2614 = vrsqrt.pop %v1992
    %v2615 = vmul.f32 %v2614, %v1992
    %v2616 = vmul.f32 %v2615, %v2614
    %v2617 = vmul.f32 0.5, %v2616
    %v2618 = vsub.f32 1.5, %v2617
    %v2619 = vmul.f32 %v2614, %v2618
    %vm2620 = vweird.f32 %v1992
    %vm2621 = vweird.f32 %v2614
    %vm2622 = vmor %vm2620, %vm2621
    %v2623 = vsel %vm2622, %v2614, %v2619
    %v2624 = vrsqrt.pop %v1993
    %v2625 = vmul.f32 %v2624, %v1993
    %v2626 = vmul.f32 %v2625, %v2624
    %v2627 = vmul.f32 0.5, %v2626
    %v2628 = vsub.f32 1.5, %v2627
    %v2629 = vmul.f32 %v2624, %v2628
    %vm2630 = vweird.f32 %v1993
    %vm2631 = vweird.f32 %v2624
    %vm2632 = vmor %vm2630, %vm2631
    %v2633 = vsel %vm2632, %v2624, %v2629
    %v2634 = vmul.f32 %v1418, %v2003
    %v2635 = vmul.f32 %v1419, %v2003
    %v2636 = vmul.f32 %v1420, %v2013
    %v2637 = vmul.f32 %v1421, %v2013
    %v2638 = vmul.f32 %v1422, %v2023
    %v2639 = vmul.f32 %v1423, %v2023
    %v2640 = vmul.f32 %v1424, %v2033
    %v2641 = vmul.f32 %v1425, %v2033
    %v2642 = vmul.f32 %v1426, %v2043
    %v2643 = vmul.f32 %v1427, %v2043
    %v2644 = vmul.f32 %v1428, %v2053
    %v2645 = vmul.f32 %v1429, %v2053
    %v2646 = vmul.f32 %v1430, %v2063
    %v2647 = vmul.f32 %v1431, %v2063
    %v2648 = vmul.f32 %v1432, %v2073
    %v2649 = vmul.f32 %v1433, %v2073
    %v2650 = vmul.f32 %v1434, %v2083
    %v2651 = vmul.f32 %v1435, %v2083
    %v2652 = vmul.f32 %v1436, %v2093
    %v2653 = vmul.f32 %v1437, %v2093
    %v2654 = vmul.f32 %v1438, %v2103
    %v2655 = vmul.f32 %v1439, %v2103
    %v2656 = vmul.f32 %v1440, %v2113
    %v2657 = vmul.f32 %v1441, %v2113
    %v2658 = vmul.f32 %v1442, %v2123
    %v2659 = vmul.f32 %v1443, %v2123
    %v2660 = vmul.f32 %v1444, %v2133
    %v2661 = vmul.f32 %v1445, %v2133
    %v2662 = vmul.f32 %v1446, %v2143
    %v2663 = vmul.f32 %v1447, %v2143
    %v2664 = vmul.f32 %v1448, %v2153
    %v2665 = vmul.f32 %v1449, %v2153
    %v2666 = vmul.f32 %v1450, %v2163
    %v2667 = vmul.f32 %v1451, %v2163
    %v2668 = vmul.f32 %v1452, %v2173
    %v2669 = vmul.f32 %v1453, %v2173
    %v2670 = vmul.f32 %v1454, %v2183
    %v2671 = vmul.f32 %v1455, %v2183
    %v2672 = vmul.f32 %v1456, %v2193
    %v2673 = vmul.f32 %v1457, %v2193
    %v2674 = vmul.f32 %v1458, %v2203
    %v2675 = vmul.f32 %v1459, %v2203
    %v2676 = vmul.f32 %v1460, %v2213
    %v2677 = vmul.f32 %v1461, %v2213
    %v2678 = vmul.f32 %v1462, %v2223
    %v2679 = vmul.f32 %v1463, %v2223
    %v2680 = vmul.f32 %v1464, %v2233
    %v2681 = vmul.f32 %v1465, %v2233
    %v2682 = vmul.f32 %v1466, %v2243
    %v2683 = vmul.f32 %v1467, %v2243
    %v2684 = vmul.f32 %v1468, %v2253
    %v2685 = vmul.f32 %v1469, %v2253
    %v2686 = vmul.f32 %v1470, %v2263
    %v2687 = vmul.f32 %v1471, %v2263
    %v2688 = vmul.f32 %v1472, %v2273
    %v2689 = vmul.f32 %v1473, %v2273
    %v2690 = vmul.f32 %v1474, %v2283
    %v2691 = vmul.f32 %v1475, %v2283
    %v2692 = vmul.f32 %v1476, %v2293
    %v2693 = vmul.f32 %v1477, %v2293
    %v2694 = vmul.f32 %v1478, %v2303
    %v2695 = vmul.f32 %v1479, %v2303
    %v2696 = vmul.f32 %v1480, %v2313
    %v2697 = vmul.f32 %v1481, %v2313
    %v2698 = vmul.f32 %v1482, %v2323
    %v2699 = vmul.f32 %v1483, %v2323
    %v2700 = vmul.f32 %v1484, %v2333
    %v2701 = vmul.f32 %v1485, %v2333
    %v2702 = vmul.f32 %v1486, %v2343
    %v2703 = vmul.f32 %v1487, %v2343
    %v2704 = vmul.f32 %v1488, %v2353
    %v2705 = vmul.f32 %v1489, %v2353
    %v2706 = vmul.f32 %v1490, %v2363
    %v2707 = vmul.f32 %v1491, %v2363
    %v2708 = vmul.f32 %v1492, %v2373
    %v2709 = vmul.f32 %v1493, %v2373
    %v2710 = vmul.f32 %v1494, %v2383
    %v2711 = vmul.f32 %v1495, %v2383
    %v2712 = vmul.f32 %v1496, %v2393
    %v2713 = vmul.f32 %v1497, %v2393
    %v2714 = vmul.f32 %v1498, %v2403
    %v2715 = vmul.f32 %v1499, %v2403
    %v2716 = vmul.f32 %v1500, %v2413
    %v2717 = vmul.f32 %v1501, %v2413
    %v2718 = vmul.f32 %v1502, %v2423
    %v2719 = vmul.f32 %v1503, %v2423
    %v2720 = vmul.f32 %v1504, %v2433
    %v2721 = vmul.f32 %v1505, %v2433
    %v2722 = vmul.f32 %v1506, %v2443
    %v2723 = vmul.f32 %v1507, %v2443
    %v2724 = vmul.f32 %v1508, %v2453
    %v2725 = vmul.f32 %v1509, %v2453
    %v2726 = vmul.f32 %v1510, %v2463
    %v2727 = vmul.f32 %v1511, %v2463
    %v2728 = vmul.f32 %v1512, %v2473
    %v2729 = vmul.f32 %v1513, %v2473
    %v2730 = vmul.f32 %v1514, %v2483
    %v2731 = vmul.f32 %v1515, %v2483
    %v2732 = vmul.f32 %v1516, %v2493
    %v2733 = vmul.f32 %v1517, %v2493
    %v2734 = vmul.f32 %v1518, %v2503
    %v2735 = vmul.f32 %v1519, %v2503
    %v2736 = vmul.f32 %v1520, %v2513
    %v2737 = vmul.f32 %v1521, %v2513
    %v2738 = vmul.f32 %v1522, %v2523
    %v2739 = vmul.f32 %v1523, %v2523
    %v2740 = vmul.f32 %v1524, %v2533
    %v2741 = vmul.f32 %v1525, %v2533
    %v2742 = vmul.f32 %v1526, %v2543
    %v2743 = vmul.f32 %v1527, %v2543
    %v2744 = vmul.f32 %v1528, %v2553
    %v2745 = vmul.f32 %v1529, %v2553
    %v2746 = vmul.f32 %v1530, %v2563
    %v2747 = vmul.f32 %v1531, %v2563
    %v2748 = vmul.f32 %v1532, %v2573
    %v2749 = vmul.f32 %v1533, %v2573
    %v2750 = vmul.f32 %v1534, %v2583
    %v2751 = vmul.f32 %v1535, %v2583
    %v2752 = vmul.f32 %v1536, %v2593
    %v2753 = vmul.f32 %v1537, %v2593
    %v2754 = vmul.f32 %v1538, %v2603
    %v2755 = vmul.f32 %v1539, %v2603
    %v2756 = vmul.f32 %v1540, %v2613
    %v2757 = vmul.f32 %v1541, %v2613
    %v2758 = vmul.f32 %v1542, %v2623
    %v2759 = vmul.f32 %v1543, %v2623
    %v2760 = vmul.f32 %v1544, %v2633
    %v2761 = vmul.f32 %v1545, %v2633
    %v2763 = vperm.slane %v209, 0
    %v2764 = vperm.slane %v209, 1
    %v2767 = vmul.f32 %v2634, %v2763
    %v2768 = vmul.f32 %v2635, %v2764
    %v2769 = vmul.f32 %v2636, %v2763
    %v2770 = vmul.f32 %v2637, %v2764
    %v2771 = vmul.f32 %v2638, %v2763
    %v2772 = vmul.f32 %v2639, %v2764
    %v2773 = vmul.f32 %v2640, %v2763
    %v2774 = vmul.f32 %v2641, %v2764
    %v2775 = vmul.f32 %v2642, %v2763
    %v2776 = vmul.f32 %v2643, %v2764
    %v2777 = vmul.f32 %v2644, %v2763
    %v2778 = vmul.f32 %v2645, %v2764
    %v2779 = vmul.f32 %v2646, %v2763
    %v2780 = vmul.f32 %v2647, %v2764
    %v2781 = vmul.f32 %v2648, %v2763
    %v2782 = vmul.f32 %v2649, %v2764
    %v2783 = vmul.f32 %v2650, %v2763
    %v2784 = vmul.f32 %v2651, %v2764
    %v2785 = vmul.f32 %v2652, %v2763
    %v2786 = vmul.f32 %v2653, %v2764
    %v2787 = vmul.f32 %v2654, %v2763
    %v2788 = vmul.f32 %v2655, %v2764
    %v2789 = vmul.f32 %v2656, %v2763
    %v2790 = vmul.f32 %v2657, %v2764
    %v2791 = vmul.f32 %v2658, %v2763
    %v2792 = vmul.f32 %v2659, %v2764
    %v2793 = vmul.f32 %v2660, %v2763
    %v2794 = vmul.f32 %v2661, %v2764
    %v2795 = vmul.f32 %v2662, %v2763
    %v2796 = vmul.f32 %v2663, %v2764
    %v2797 = vmul.f32 %v2664, %v2763
    %v2798 = vmul.f32 %v2665, %v2764
    %v2799 = vmul.f32 %v2666, %v2763
    %v2800 = vmul.f32 %v2667, %v2764
    %v2801 = vmul.f32 %v2668, %v2763
    %v2802 = vmul.f32 %v2669, %v2764
    %v2803 = vmul.f32 %v2670, %v2763
    %v2804 = vmul.f32 %v2671, %v2764
    %v2805 = vmul.f32 %v2672, %v2763
    %v2806 = vmul.f32 %v2673, %v2764
    %v2807 = vmul.f32 %v2674, %v2763
    %v2808 = vmul.f32 %v2675, %v2764
    %v2809 = vmul.f32 %v2676, %v2763
    %v2810 = vmul.f32 %v2677, %v2764
    %v2811 = vmul.f32 %v2678, %v2763
    %v2812 = vmul.f32 %v2679, %v2764
    %v2813 = vmul.f32 %v2680, %v2763
    %v2814 = vmul.f32 %v2681, %v2764
    %v2815 = vmul.f32 %v2682, %v2763
    %v2816 = vmul.f32 %v2683, %v2764
    %v2817 = vmul.f32 %v2684, %v2763
    %v2818 = vmul.f32 %v2685, %v2764
    %v2819 = vmul.f32 %v2686, %v2763
    %v2820 = vmul.f32 %v2687, %v2764
    %v2821 = vmul.f32 %v2688, %v2763
    %v2822 = vmul.f32 %v2689, %v2764
    %v2823 = vmul.f32 %v2690, %v2763
    %v2824 = vmul.f32 %v2691, %v2764
    %v2825 = vmul.f32 %v2692, %v2763
    %v2826 = vmul.f32 %v2693, %v2764
    %v2827 = vmul.f32 %v2694, %v2763
    %v2828 = vmul.f32 %v2695, %v2764
    %v2829 = vmul.f32 %v2696, %v2763
    %v2830 = vmul.f32 %v2697, %v2764
    %v2831 = vmul.f32 %v2698, %v2763
    %v2832 = vmul.f32 %v2699, %v2764
    %v2833 = vmul.f32 %v2700, %v2763
    %v2834 = vmul.f32 %v2701, %v2764
    %v2835 = vmul.f32 %v2702, %v2763
    %v2836 = vmul.f32 %v2703, %v2764
    %v2837 = vmul.f32 %v2704, %v2763
    %v2838 = vmul.f32 %v2705, %v2764
    %v2839 = vmul.f32 %v2706, %v2763
    %v2840 = vmul.f32 %v2707, %v2764
    %v2841 = vmul.f32 %v2708, %v2763
    %v2842 = vmul.f32 %v2709, %v2764
    %v2843 = vmul.f32 %v2710, %v2763
    %v2844 = vmul.f32 %v2711, %v2764
    %v2845 = vmul.f32 %v2712, %v2763
    %v2846 = vmul.f32 %v2713, %v2764
    %v2847 = vmul.f32 %v2714, %v2763
    %v2848 = vmul.f32 %v2715, %v2764
    %v2849 = vmul.f32 %v2716, %v2763
    %v2850 = vmul.f32 %v2717, %v2764
    %v2851 = vmul.f32 %v2718, %v2763
    %v2852 = vmul.f32 %v2719, %v2764
    %v2853 = vmul.f32 %v2720, %v2763
    %v2854 = vmul.f32 %v2721, %v2764
    %v2855 = vmul.f32 %v2722, %v2763
    %v2856 = vmul.f32 %v2723, %v2764
    %v2857 = vmul.f32 %v2724, %v2763
    %v2858 = vmul.f32 %v2725, %v2764
    %v2859 = vmul.f32 %v2726, %v2763
    %v2860 = vmul.f32 %v2727, %v2764
    %v2861 = vmul.f32 %v2728, %v2763
    %v2862 = vmul.f32 %v2729, %v2764
    %v2863 = vmul.f32 %v2730, %v2763
    %v2864 = vmul.f32 %v2731, %v2764
    %v2865 = vmul.f32 %v2732, %v2763
    %v2866 = vmul.f32 %v2733, %v2764
    %v2867 = vmul.f32 %v2734, %v2763
    %v2868 = vmul.f32 %v2735, %v2764
    %v2869 = vmul.f32 %v2736, %v2763
    %v2870 = vmul.f32 %v2737, %v2764
    %v2871 = vmul.f32 %v2738, %v2763
    %v2872 = vmul.f32 %v2739, %v2764
    %v2873 = vmul.f32 %v2740, %v2763
    %v2874 = vmul.f32 %v2741, %v2764
    %v2875 = vmul.f32 %v2742, %v2763
    %v2876 = vmul.f32 %v2743, %v2764
    %v2877 = vmul.f32 %v2744, %v2763
    %v2878 = vmul.f32 %v2745, %v2764
    %v2879 = vmul.f32 %v2746, %v2763
    %v2880 = vmul.f32 %v2747, %v2764
    %v2881 = vmul.f32 %v2748, %v2763
    %v2882 = vmul.f32 %v2749, %v2764
    %v2883 = vmul.f32 %v2750, %v2763
    %v2884 = vmul.f32 %v2751, %v2764
    %v2885 = vmul.f32 %v2752, %v2763
    %v2886 = vmul.f32 %v2753, %v2764
    %v2887 = vmul.f32 %v2754, %v2763
    %v2888 = vmul.f32 %v2755, %v2764
    %v2889 = vmul.f32 %v2756, %v2763
    %v2890 = vmul.f32 %v2757, %v2764
    %v2891 = vmul.f32 %v2758, %v2763
    %v2892 = vmul.f32 %v2759, %v2764
    %v2893 = vmul.f32 %v2760, %v2763
    %v2894 = vmul.f32 %v2761, %v2764
    %v2896 = vperm.slane %v211, 0
    %v2897 = vperm.slane %v211, 1
    %v2900 = vadd.f32 %v2767, %v2896
    %v2901 = vadd.f32 %v2768, %v2897
    %v2902 = vadd.f32 %v2769, %v2896
    %v2903 = vadd.f32 %v2770, %v2897
    %v2904 = vadd.f32 %v2771, %v2896
    %v2905 = vadd.f32 %v2772, %v2897
    %v2906 = vadd.f32 %v2773, %v2896
    %v2907 = vadd.f32 %v2774, %v2897
    %v2908 = vadd.f32 %v2775, %v2896
    %v2909 = vadd.f32 %v2776, %v2897
    %v2910 = vadd.f32 %v2777, %v2896
    %v2911 = vadd.f32 %v2778, %v2897
    %v2912 = vadd.f32 %v2779, %v2896
    %v2913 = vadd.f32 %v2780, %v2897
    %v2914 = vadd.f32 %v2781, %v2896
    %v2915 = vadd.f32 %v2782, %v2897
    %v2916 = vadd.f32 %v2783, %v2896
    %v2917 = vadd.f32 %v2784, %v2897
    %v2918 = vadd.f32 %v2785, %v2896
    %v2919 = vadd.f32 %v2786, %v2897
    %v2920 = vadd.f32 %v2787, %v2896
    %v2921 = vadd.f32 %v2788, %v2897
    %v2922 = vadd.f32 %v2789, %v2896
    %v2923 = vadd.f32 %v2790, %v2897
    %v2924 = vadd.f32 %v2791, %v2896
    %v2925 = vadd.f32 %v2792, %v2897
    %v2926 = vadd.f32 %v2793, %v2896
    %v2927 = vadd.f32 %v2794, %v2897
    %v2928 = vadd.f32 %v2795, %v2896
    %v2929 = vadd.f32 %v2796, %v2897
    %v2930 = vadd.f32 %v2797, %v2896
    %v2931 = vadd.f32 %v2798, %v2897
    %v2932 = vadd.f32 %v2799, %v2896
    %v2933 = vadd.f32 %v2800, %v2897
    %v2934 = vadd.f32 %v2801, %v2896
    %v2935 = vadd.f32 %v2802, %v2897
    %v2936 = vadd.f32 %v2803, %v2896
    %v2937 = vadd.f32 %v2804, %v2897
    %v2938 = vadd.f32 %v2805, %v2896
    %v2939 = vadd.f32 %v2806, %v2897
    %v2940 = vadd.f32 %v2807, %v2896
    %v2941 = vadd.f32 %v2808, %v2897
    %v2942 = vadd.f32 %v2809, %v2896
    %v2943 = vadd.f32 %v2810, %v2897
    %v2944 = vadd.f32 %v2811, %v2896
    %v2945 = vadd.f32 %v2812, %v2897
    %v2946 = vadd.f32 %v2813, %v2896
    %v2947 = vadd.f32 %v2814, %v2897
    %v2948 = vadd.f32 %v2815, %v2896
    %v2949 = vadd.f32 %v2816, %v2897
    %v2950 = vadd.f32 %v2817, %v2896
    %v2951 = vadd.f32 %v2818, %v2897
    %v2952 = vadd.f32 %v2819, %v2896
    %v2953 = vadd.f32 %v2820, %v2897
    %v2954 = vadd.f32 %v2821, %v2896
    %v2955 = vadd.f32 %v2822, %v2897
    %v2956 = vadd.f32 %v2823, %v2896
    %v2957 = vadd.f32 %v2824, %v2897
    %v2958 = vadd.f32 %v2825, %v2896
    %v2959 = vadd.f32 %v2826, %v2897
    %v2960 = vadd.f32 %v2827, %v2896
    %v2961 = vadd.f32 %v2828, %v2897
    %v2962 = vadd.f32 %v2829, %v2896
    %v2963 = vadd.f32 %v2830, %v2897
    %v2964 = vadd.f32 %v2831, %v2896
    %v2965 = vadd.f32 %v2832, %v2897
    %v2966 = vadd.f32 %v2833, %v2896
    %v2967 = vadd.f32 %v2834, %v2897
    %v2968 = vadd.f32 %v2835, %v2896
    %v2969 = vadd.f32 %v2836, %v2897
    %v2970 = vadd.f32 %v2837, %v2896
    %v2971 = vadd.f32 %v2838, %v2897
    %v2972 = vadd.f32 %v2839, %v2896
    %v2973 = vadd.f32 %v2840, %v2897
    %v2974 = vadd.f32 %v2841, %v2896
    %v2975 = vadd.f32 %v2842, %v2897
    %v2976 = vadd.f32 %v2843, %v2896
    %v2977 = vadd.f32 %v2844, %v2897
    %v2978 = vadd.f32 %v2845, %v2896
    %v2979 = vadd.f32 %v2846, %v2897
    %v2980 = vadd.f32 %v2847, %v2896
    %v2981 = vadd.f32 %v2848, %v2897
    %v2982 = vadd.f32 %v2849, %v2896
    %v2983 = vadd.f32 %v2850, %v2897
    %v2984 = vadd.f32 %v2851, %v2896
    %v2985 = vadd.f32 %v2852, %v2897
    %v2986 = vadd.f32 %v2853, %v2896
    %v2987 = vadd.f32 %v2854, %v2897
    %v2988 = vadd.f32 %v2855, %v2896
    %v2989 = vadd.f32 %v2856, %v2897
    %v2990 = vadd.f32 %v2857, %v2896
    %v2991 = vadd.f32 %v2858, %v2897
    %v2992 = vadd.f32 %v2859, %v2896
    %v2993 = vadd.f32 %v2860, %v2897
    %v2994 = vadd.f32 %v2861, %v2896
    %v2995 = vadd.f32 %v2862, %v2897
    %v2996 = vadd.f32 %v2863, %v2896
    %v2997 = vadd.f32 %v2864, %v2897
    %v2998 = vadd.f32 %v2865, %v2896
    %v2999 = vadd.f32 %v2866, %v2897
    %v3000 = vadd.f32 %v2867, %v2896
    %v3001 = vadd.f32 %v2868, %v2897
    %v3002 = vadd.f32 %v2869, %v2896
    %v3003 = vadd.f32 %v2870, %v2897
    %v3004 = vadd.f32 %v2871, %v2896
    %v3005 = vadd.f32 %v2872, %v2897
    %v3006 = vadd.f32 %v2873, %v2896
    %v3007 = vadd.f32 %v2874, %v2897
    %v3008 = vadd.f32 %v2875, %v2896
    %v3009 = vadd.f32 %v2876, %v2897
    %v3010 = vadd.f32 %v2877, %v2896
    %v3011 = vadd.f32 %v2878, %v2897
    %v3012 = vadd.f32 %v2879, %v2896
    %v3013 = vadd.f32 %v2880, %v2897
    %v3014 = vadd.f32 %v2881, %v2896
    %v3015 = vadd.f32 %v2882, %v2897
    %v3016 = vadd.f32 %v2883, %v2896
    %v3017 = vadd.f32 %v2884, %v2897
    %v3018 = vadd.f32 %v2885, %v2896
    %v3019 = vadd.f32 %v2886, %v2897
    %v3020 = vadd.f32 %v2887, %v2896
    %v3021 = vadd.f32 %v2888, %v2897
    %v3022 = vadd.f32 %v2889, %v2896
    %v3023 = vadd.f32 %v2890, %v2897
    %v3024 = vadd.f32 %v2891, %v2896
    %v3025 = vadd.f32 %v2892, %v2897
    %v3026 = vadd.f32 %v2893, %v2896
    %v3027 = vadd.f32 %v2894, %v2897
    %v3028 = vmax.f32 %v2900, 0.0
    %v3029 = vmax.f32 %v2901, 0.0
    %v3030 = vmax.f32 %v2902, 0.0
    %v3031 = vmax.f32 %v2903, 0.0
    %v3032 = vmax.f32 %v2904, 0.0
    %v3033 = vmax.f32 %v2905, 0.0
    %v3034 = vmax.f32 %v2906, 0.0
    %v3035 = vmax.f32 %v2907, 0.0
    %v3036 = vmax.f32 %v2908, 0.0
    %v3037 = vmax.f32 %v2909, 0.0
    %v3038 = vmax.f32 %v2910, 0.0
    %v3039 = vmax.f32 %v2911, 0.0
    %v3040 = vmax.f32 %v2912, 0.0
    %v3041 = vmax.f32 %v2913, 0.0
    %v3042 = vmax.f32 %v2914, 0.0
    %v3043 = vmax.f32 %v2915, 0.0
    %v3044 = vmax.f32 %v2916, 0.0
    %v3045 = vmax.f32 %v2917, 0.0
    %v3046 = vmax.f32 %v2918, 0.0
    %v3047 = vmax.f32 %v2919, 0.0
    %v3048 = vmax.f32 %v2920, 0.0
    %v3049 = vmax.f32 %v2921, 0.0
    %v3050 = vmax.f32 %v2922, 0.0
    %v3051 = vmax.f32 %v2923, 0.0
    %v3052 = vmax.f32 %v2924, 0.0
    %v3053 = vmax.f32 %v2925, 0.0
    %v3054 = vmax.f32 %v2926, 0.0
    %v3055 = vmax.f32 %v2927, 0.0
    %v3056 = vmax.f32 %v2928, 0.0
    %v3057 = vmax.f32 %v2929, 0.0
    %v3058 = vmax.f32 %v2930, 0.0
    %v3059 = vmax.f32 %v2931, 0.0
    %v3060 = vmax.f32 %v2932, 0.0
    %v3061 = vmax.f32 %v2933, 0.0
    %v3062 = vmax.f32 %v2934, 0.0
    %v3063 = vmax.f32 %v2935, 0.0
    %v3064 = vmax.f32 %v2936, 0.0
    %v3065 = vmax.f32 %v2937, 0.0
    %v3066 = vmax.f32 %v2938, 0.0
    %v3067 = vmax.f32 %v2939, 0.0
    %v3068 = vmax.f32 %v2940, 0.0
    %v3069 = vmax.f32 %v2941, 0.0
    %v3070 = vmax.f32 %v2942, 0.0
    %v3071 = vmax.f32 %v2943, 0.0
    %v3072 = vmax.f32 %v2944, 0.0
    %v3073 = vmax.f32 %v2945, 0.0
    %v3074 = vmax.f32 %v2946, 0.0
    %v3075 = vmax.f32 %v2947, 0.0
    %v3076 = vmax.f32 %v2948, 0.0
    %v3077 = vmax.f32 %v2949, 0.0
    %v3078 = vmax.f32 %v2950, 0.0
    %v3079 = vmax.f32 %v2951, 0.0
    %v3080 = vmax.f32 %v2952, 0.0
    %v3081 = vmax.f32 %v2953, 0.0
    %v3082 = vmax.f32 %v2954, 0.0
    %v3083 = vmax.f32 %v2955, 0.0
    %v3084 = vmax.f32 %v2956, 0.0
    %v3085 = vmax.f32 %v2957, 0.0
    %v3086 = vmax.f32 %v2958, 0.0
    %v3087 = vmax.f32 %v2959, 0.0
    %v3088 = vmax.f32 %v2960, 0.0
    %v3089 = vmax.f32 %v2961, 0.0
    %v3090 = vmax.f32 %v2962, 0.0
    %v3091 = vmax.f32 %v2963, 0.0
    %v3092 = vmax.f32 %v2964, 0.0
    %v3093 = vmax.f32 %v2965, 0.0
    %v3094 = vmax.f32 %v2966, 0.0
    %v3095 = vmax.f32 %v2967, 0.0
    %v3096 = vmax.f32 %v2968, 0.0
    %v3097 = vmax.f32 %v2969, 0.0
    %v3098 = vmax.f32 %v2970, 0.0
    %v3099 = vmax.f32 %v2971, 0.0
    %v3100 = vmax.f32 %v2972, 0.0
    %v3101 = vmax.f32 %v2973, 0.0
    %v3102 = vmax.f32 %v2974, 0.0
    %v3103 = vmax.f32 %v2975, 0.0
    %v3104 = vmax.f32 %v2976, 0.0
    %v3105 = vmax.f32 %v2977, 0.0
    %v3106 = vmax.f32 %v2978, 0.0
    %v3107 = vmax.f32 %v2979, 0.0
    %v3108 = vmax.f32 %v2980, 0.0
    %v3109 = vmax.f32 %v2981, 0.0
    %v3110 = vmax.f32 %v2982, 0.0
    %v3111 = vmax.f32 %v2983, 0.0
    %v3112 = vmax.f32 %v2984, 0.0
    %v3113 = vmax.f32 %v2985, 0.0
    %v3114 = vmax.f32 %v2986, 0.0
    %v3115 = vmax.f32 %v2987, 0.0
    %v3116 = vmax.f32 %v2988, 0.0
    %v3117 = vmax.f32 %v2989, 0.0
    %v3118 = vmax.f32 %v2990, 0.0
    %v3119 = vmax.f32 %v2991, 0.0
    %v3120 = vmax.f32 %v2992, 0.0
    %v3121 = vmax.f32 %v2993, 0.0
    %v3122 = vmax.f32 %v2994, 0.0
    %v3123 = vmax.f32 %v2995, 0.0
    %v3124 = vmax.f32 %v2996, 0.0
    %v3125 = vmax.f32 %v2997, 0.0
    %v3126 = vmax.f32 %v2998, 0.0
    %v3127 = vmax.f32 %v2999, 0.0
    %v3128 = vmax.f32 %v3000, 0.0
    %v3129 = vmax.f32 %v3001, 0.0
    %v3130 = vmax.f32 %v3002, 0.0
    %v3131 = vmax.f32 %v3003, 0.0
    %v3132 = vmax.f32 %v3004, 0.0
    %v3133 = vmax.f32 %v3005, 0.0
    %v3134 = vmax.f32 %v3006, 0.0
    %v3135 = vmax.f32 %v3007, 0.0
    %v3136 = vmax.f32 %v3008, 0.0
    %v3137 = vmax.f32 %v3009, 0.0
    %v3138 = vmax.f32 %v3010, 0.0
    %v3139 = vmax.f32 %v3011, 0.0
    %v3140 = vmax.f32 %v3012, 0.0
    %v3141 = vmax.f32 %v3013, 0.0
    %v3142 = vmax.f32 %v3014, 0.0
    %v3143 = vmax.f32 %v3015, 0.0
    %v3144 = vmax.f32 %v3016, 0.0
    %v3145 = vmax.f32 %v3017, 0.0
    %v3146 = vmax.f32 %v3018, 0.0
    %v3147 = vmax.f32 %v3019, 0.0
    %v3148 = vmax.f32 %v3020, 0.0
    %v3149 = vmax.f32 %v3021, 0.0
    %v3150 = vmax.f32 %v3022, 0.0
    %v3151 = vmax.f32 %v3023, 0.0
    %v3152 = vmax.f32 %v3024, 0.0
    %v3153 = vmax.f32 %v3025, 0.0
    %v3154 = vmax.f32 %v3026, 0.0
    %v3155 = vmax.f32 %v3027, 0.0
    %v3156 = vpack.c.bf16 %v3030, %v3028
    %v3157 = vpack.c.bf16 %v3031, %v3029
    %v3158 = vpack.c.bf16 %v3034, %v3032
    %v3159 = vpack.c.bf16 %v3035, %v3033
    %v3160 = vpack.c.bf16 %v3038, %v3036
    %v3161 = vpack.c.bf16 %v3039, %v3037
    %v3162 = vpack.c.bf16 %v3042, %v3040
    %v3163 = vpack.c.bf16 %v3043, %v3041
    %v3164 = vpack.c.bf16 %v3046, %v3044
    %v3165 = vpack.c.bf16 %v3047, %v3045
    %v3166 = vpack.c.bf16 %v3050, %v3048
    %v3167 = vpack.c.bf16 %v3051, %v3049
    %v3168 = vpack.c.bf16 %v3054, %v3052
    %v3169 = vpack.c.bf16 %v3055, %v3053
    %v3170 = vpack.c.bf16 %v3058, %v3056
    %v3171 = vpack.c.bf16 %v3059, %v3057
    %v3172 = vpack.c.bf16 %v3062, %v3060
    %v3173 = vpack.c.bf16 %v3063, %v3061
    %v3174 = vpack.c.bf16 %v3066, %v3064
    %v3175 = vpack.c.bf16 %v3067, %v3065
    %v3176 = vpack.c.bf16 %v3070, %v3068
    %v3177 = vpack.c.bf16 %v3071, %v3069
    %v3178 = vpack.c.bf16 %v3074, %v3072
    %v3179 = vpack.c.bf16 %v3075, %v3073
    %v3180 = vpack.c.bf16 %v3078, %v3076
    %v3181 = vpack.c.bf16 %v3079, %v3077
    %v3182 = vpack.c.bf16 %v3082, %v3080
    %v3183 = vpack.c.bf16 %v3083, %v3081
    %v3184 = vpack.c.bf16 %v3086, %v3084
    %v3185 = vpack.c.bf16 %v3087, %v3085
    %v3186 = vpack.c.bf16 %v3090, %v3088
    %v3187 = vpack.c.bf16 %v3091, %v3089
    %v3188 = vpack.c.bf16 %v3094, %v3092
    %v3189 = vpack.c.bf16 %v3095, %v3093
    %v3190 = vpack.c.bf16 %v3098, %v3096
    %v3191 = vpack.c.bf16 %v3099, %v3097
    %v3192 = vpack.c.bf16 %v3102, %v3100
    %v3193 = vpack.c.bf16 %v3103, %v3101
    %v3194 = vpack.c.bf16 %v3106, %v3104
    %v3195 = vpack.c.bf16 %v3107, %v3105
    %v3196 = vpack.c.bf16 %v3110, %v3108
    %v3197 = vpack.c.bf16 %v3111, %v3109
    %v3198 = vpack.c.bf16 %v3114, %v3112
    %v3199 = vpack.c.bf16 %v3115, %v3113
    %v3200 = vpack.c.bf16 %v3118, %v3116
    %v3201 = vpack.c.bf16 %v3119, %v3117
    %v3202 = vpack.c.bf16 %v3122, %v3120
    %v3203 = vpack.c.bf16 %v3123, %v3121
    %v3204 = vpack.c.bf16 %v3126, %v3124
    %v3205 = vpack.c.bf16 %v3127, %v3125
    %v3206 = vpack.c.bf16 %v3130, %v3128
    %v3207 = vpack.c.bf16 %v3131, %v3129
    %v3208 = vpack.c.bf16 %v3134, %v3132
    %v3209 = vpack.c.bf16 %v3135, %v3133
    %v3210 = vpack.c.bf16 %v3138, %v3136
    %v3211 = vpack.c.bf16 %v3139, %v3137
    %v3212 = vpack.c.bf16 %v3142, %v3140
    %v3213 = vpack.c.bf16 %v3143, %v3141
    %v3214 = vpack.c.bf16 %v3146, %v3144
    %v3215 = vpack.c.bf16 %v3147, %v3145
    %v3216 = vpack.c.bf16 %v3150, %v3148
    %v3217 = vpack.c.bf16 %v3151, %v3149
    %v3218 = vpack.c.bf16 %v3154, %v3152
    %v3219 = vpack.c.bf16 %v3155, %v3153
    %v3220 = vld [vmem:[#allocation7] sm:$0xff]
    %v3221 = vld [vmem:[#allocation7 + $0x8] sm:$0xff]
    %v3222 = vld [vmem:[#allocation7 + $0x10] sm:$0xff]
    %v3223 = vld [vmem:[#allocation7 + $0x18] sm:$0xff]
    %v3224 = vld [vmem:[#allocation7 + $0x20] sm:$0xff]
    %v3225 = vld [vmem:[#allocation7 + $0x28] sm:$0xff]
    %v3226 = vld [vmem:[#allocation7 + $0x30] sm:$0xff]
    %v3227 = vld [vmem:[#allocation7 + $0x38] sm:$0xff]
    %v3228 = vld [vmem:[#allocation7 + $0x40] sm:$0xff]
    %v3229 = vld [vmem:[#allocation7 + $0x48] sm:$0xff]
    %v3230 = vld [vmem:[#allocation7 + $0x50] sm:$0xff]
    %v3231 = vld [vmem:[#allocation7 + $0x58] sm:$0xff]
    %v3232 = vld [vmem:[#allocation7 + $0x60] sm:$0xff]
    %v3233 = vld [vmem:[#allocation7 + $0x68] sm:$0xff]
    %v3234 = vld [vmem:[#allocation7 + $0x70] sm:$0xff]
    %v3235 = vld [vmem:[#allocation7 + $0x78] sm:$0xff]
    %v3236 = vld [vmem:[#allocation7 + $0x80] sm:$0xff]
    %v3237 = vld [vmem:[#allocation7 + $0x88] sm:$0xff]
    %v3238 = vld [vmem:[#allocation7 + $0x90] sm:$0xff]
    %v3239 = vld [vmem:[#allocation7 + $0x98] sm:$0xff]
    %v3240 = vld [vmem:[#allocation7 + $0xa0] sm:$0xff]
    %v3241 = vld [vmem:[#allocation7 + $0xa8] sm:$0xff]
    %v3242 = vld [vmem:[#allocation7 + $0xb0] sm:$0xff]
    %v3243 = vld [vmem:[#allocation7 + $0xb8] sm:$0xff]
    %v3244 = vld [vmem:[#allocation7 + $0xc0] sm:$0xff]
    %v3245 = vld [vmem:[#allocation7 + $0xc8] sm:$0xff]
    %v3246 = vld [vmem:[#allocation7 + $0xd0] sm:$0xff]
    %v3247 = vld [vmem:[#allocation7 + $0xd8] sm:$0xff]
    %v3248 = vld [vmem:[#allocation7 + $0xe0] sm:$0xff]
    %v3249 = vld [vmem:[#allocation7 + $0xe8] sm:$0xff]
    %v3250 = vld [vmem:[#allocation7 + $0xf0] sm:$0xff]
    %v3251 = vld [vmem:[#allocation7 + $0xf8] sm:$0xff]
    %v3253 = vperm.slane %v213, 0
    %v3254 = vperm.slane %v213, 1
    %v3289 = vunpack.c.l.b16 %v3220
    %v3290 = vunpack.c.h.b16 %v3220
    %v3291 = vunpack.c.l.b16 %v3221
    %v3292 = vunpack.c.h.b16 %v3221
    %v3293 = vunpack.c.l.b16 %v3222
    %v3294 = vunpack.c.h.b16 %v3222
    %v3295 = vunpack.c.l.b16 %v3223
    %v3296 = vunpack.c.h.b16 %v3223
    %v3297 = vunpack.c.l.b16 %v3224
    %v3298 = vunpack.c.h.b16 %v3224
    %v3299 = vunpack.c.l.b16 %v3225
    %v3300 = vunpack.c.h.b16 %v3225
    %v3301 = vunpack.c.l.b16 %v3226
    %v3302 = vunpack.c.h.b16 %v3226
    %v3303 = vunpack.c.l.b16 %v3227
    %v3304 = vunpack.c.h.b16 %v3227
    %v3305 = vunpack.c.l.b16 %v3228
    %v3306 = vunpack.c.h.b16 %v3228
    %v3307 = vunpack.c.l.b16 %v3229
    %v3308 = vunpack.c.h.b16 %v3229
    %v3309 = vunpack.c.l.b16 %v3230
    %v3310 = vunpack.c.h.b16 %v3230
    %v3311 = vunpack.c.l.b16 %v3231
    %v3312 = vunpack.c.h.b16 %v3231
    %v3313 = vunpack.c.l.b16 %v3232
    %v3314 = vunpack.c.h.b16 %v3232
    %v3315 = vunpack.c.l.b16 %v3233
    %v3316 = vunpack.c.h.b16 %v3233
    %v3317 = vunpack.c.l.b16 %v3234
    %v3318 = vunpack.c.h.b16 %v3234
    %v3319 = vunpack.c.l.b16 %v3235
    %v3320 = vunpack.c.h.b16 %v3235
    %v3321 = vunpack.c.l.b16 %v3236
    %v3322 = vunpack.c.h.b16 %v3236
    %v3323 = vunpack.c.l.b16 %v3237
    %v3324 = vunpack.c.h.b16 %v3237
    %v3325 = vunpack.c.l.b16 %v3238
    %v3326 = vunpack.c.h.b16 %v3238
    %v3327 = vunpack.c.l.b16 %v3239
    %v3328 = vunpack.c.h.b16 %v3239
    %v3329 = vunpack.c.l.b16 %v3240
    %v3330 = vunpack.c.h.b16 %v3240
    %v3331 = vunpack.c.l.b16 %v3241
    %v3332 = vunpack.c.h.b16 %v3241
    %v3333 = vunpack.c.l.b16 %v3242
    %v3334 = vunpack.c.h.b16 %v3242
    %v3335 = vunpack.c.l.b16 %v3243
    %v3336 = vunpack.c.h.b16 %v3243
    %v3337 = vunpack.c.l.b16 %v3244
    %v3338 = vunpack.c.h.b16 %v3244
    %v3339 = vunpack.c.l.b16 %v3245
    %v3340 = vunpack.c.h.b16 %v3245
    %v3341 = vunpack.c.l.b16 %v3246
    %v3342 = vunpack.c.h.b16 %v3246
    %v3343 = vunpack.c.l.b16 %v3247
    %v3344 = vunpack.c.h.b16 %v3247
    %v3345 = vunpack.c.l.b16 %v3248
    %v3346 = vunpack.c.h.b16 %v3248
    %v3347 = vunpack.c.l.b16 %v3249
    %v3348 = vunpack.c.h.b16 %v3249
    %v3349 = vunpack.c.l.b16 %v3250
    %v3350 = vunpack.c.h.b16 %v3250
    %v3351 = vunpack.c.l.b16 %v3251
    %v3352 = vunpack.c.h.b16 %v3251
    %v3353 = vpack.c.b16 %v3291, %v3289
    %v3354 = vpack.c.b16 %v3292, %v3290
    %v3355 = vpack.c.b16 %v3295, %v3293
    %v3356 = vpack.c.b16 %v3296, %v3294
    %v3357 = vpack.c.b16 %v3299, %v3297
    %v3358 = vpack.c.b16 %v3300, %v3298
    %v3359 = vpack.c.b16 %v3303, %v3301
    %v3360 = vpack.c.b16 %v3304, %v3302
    %v3361 = vpack.c.b16 %v3307, %v3305
    %v3362 = vpack.c.b16 %v3308, %v3306
    %v3363 = vpack.c.b16 %v3311, %v3309
    %v3364 = vpack.c.b16 %v3312, %v3310
    %v3365 = vpack.c.b16 %v3315, %v3313
    %v3366 = vpack.c.b16 %v3316, %v3314
    %v3367 = vpack.c.b16 %v3319, %v3317
    %v3368 = vpack.c.b16 %v3320, %v3318
    %v3369 = vpack.c.b16 %v3323, %v3321
    %v3370 = vpack.c.b16 %v3324, %v3322
    %v3371 = vpack.c.b16 %v3327, %v3325
    %v3372 = vpack.c.b16 %v3328, %v3326
    %v3373 = vpack.c.b16 %v3331, %v3329
    %v3374 = vpack.c.b16 %v3332, %v3330
    %v3375 = vpack.c.b16 %v3335, %v3333
    %v3376 = vpack.c.b16 %v3336, %v3334
    %v3377 = vpack.c.b16 %v3339, %v3337
    %v3378 = vpack.c.b16 %v3340, %v3338
    %v3379 = vpack.c.b16 %v3343, %v3341
    %v3380 = vpack.c.b16 %v3344, %v3342
    %v3381 = vpack.c.b16 %v3347, %v3345
    %v3382 = vpack.c.b16 %v3348, %v3346
    %v3383 = vpack.c.b16 %v3351, %v3349
    %v3384 = vpack.c.b16 %v3352, %v3350
    %3417 = vmatpush.bf16.msra.mxu0 %v3367
    %3418 = vmatpush.bf16.msra.mxu0 %v3365
    %3419 = vmatpush.bf16.msra.mxu0 %v3363
    %3420 = vmatpush.bf16.msra.mxu0 %v3361
    %3421 = vmatpush.bf16.msra.mxu0 %v3359
    %3422 = vmatpush.bf16.msra.mxu0 %v3357
    %3423 = vmatpush.bf16.msra.mxu0 %v3355
    %3424 = vmatpush.bf16.msra.mxu0 %v3353
    %3425 = vmatmul.bf16.gmra.mxu0 %v3156
    %v3426 = vpop.f32.mrf.mxu0
    %v3427 = vadd.f32 %v3253, %v3426
    %v3428 = vpop.f32.mrf.mxu0
    %v3429 = vadd.f32 %v3253, %v3428
    %3430 = vmatmul.bf16.gmra.mxu0 %v3158
    %v3431 = vpop.f32.mrf.mxu0
    %v3432 = vadd.f32 %v3253, %v3431
    %v3433 = vpop.f32.mrf.mxu0
    %v3434 = vadd.f32 %v3253, %v3433
    %3435 = vmatmul.bf16.gmra.mxu0 %v3160
    %v3436 = vpop.f32.mrf.mxu0
    %v3437 = vadd.f32 %v3253, %v3436
    %v3438 = vpop.f32.mrf.mxu0
    %v3439 = vadd.f32 %v3253, %v3438
    %3440 = vmatmul.bf16.gmra.mxu0 %v3162
    %v3441 = vpop.f32.mrf.mxu0
    %v3442 = vadd.f32 %v3253, %v3441
    %v3443 = vpop.f32.mrf.mxu0
    %v3444 = vadd.f32 %v3253, %v3443
    %3445 = vmatmul.bf16.gmra.mxu0 %v3164
    %v3446 = vpop.f32.mrf.mxu0
    %v3447 = vadd.f32 %v3253, %v3446
    %v3448 = vpop.f32.mrf.mxu0
    %v3449 = vadd.f32 %v3253, %v3448
    %3450 = vmatmul.bf16.gmra.mxu0 %v3166
    %v3451 = vpop.f32.mrf.mxu0
    %v3452 = vadd.f32 %v3253, %v3451
    %v3453 = vpop.f32.mrf.mxu0
    %v3454 = vadd.f32 %v3253, %v3453
    %3455 = vmatmul.bf16.gmra.mxu0 %v3168
    %v3456 = vpop.f32.mrf.mxu0
    %v3457 = vadd.f32 %v3253, %v3456
    %v3458 = vpop.f32.mrf.mxu0
    %v3459 = vadd.f32 %v3253, %v3458
    %3460 = vmatmul.bf16.gmra.mxu0 %v3170
    %v3461 = vpop.f32.mrf.mxu0
    %v3462 = vadd.f32 %v3253, %v3461
    %v3463 = vpop.f32.mrf.mxu0
    %v3464 = vadd.f32 %v3253, %v3463
    %3465 = vmatmul.bf16.gmra.mxu0 %v3172
    %v3466 = vpop.f32.mrf.mxu0
    %v3467 = vadd.f32 %v3253, %v3466
    %v3468 = vpop.f32.mrf.mxu0
    %v3469 = vadd.f32 %v3253, %v3468
    %3470 = vmatmul.bf16.gmra.mxu0 %v3174
    %v3471 = vpop.f32.mrf.mxu0
    %v3472 = vadd.f32 %v3253, %v3471
    %v3473 = vpop.f32.mrf.mxu0
    %v3474 = vadd.f32 %v3253, %v3473
    %3475 = vmatmul.bf16.gmra.mxu0 %v3176
    %v3476 = vpop.f32.mrf.mxu0
    %v3477 = vadd.f32 %v3253, %v3476
    %v3478 = vpop.f32.mrf.mxu0
    %v3479 = vadd.f32 %v3253, %v3478
    %3480 = vmatmul.bf16.gmra.mxu0 %v3178
    %v3481 = vpop.f32.mrf.mxu0
    %v3482 = vadd.f32 %v3253, %v3481
    %v3483 = vpop.f32.mrf.mxu0
    %v3484 = vadd.f32 %v3253, %v3483
    %3485 = vmatmul.bf16.gmra.mxu0 %v3180
    %v3486 = vpop.f32.mrf.mxu0
    %v3487 = vadd.f32 %v3253, %v3486
    %v3488 = vpop.f32.mrf.mxu0
    %v3489 = vadd.f32 %v3253, %v3488
    %3490 = vmatmul.bf16.gmra.mxu0 %v3182
    %v3491 = vpop.f32.mrf.mxu0
    %v3492 = vadd.f32 %v3253, %v3491
    %v3493 = vpop.f32.mrf.mxu0
    %v3494 = vadd.f32 %v3253, %v3493
    %3495 = vmatmul.bf16.gmra.mxu0 %v3184
    %v3496 = vpop.f32.mrf.mxu0
    %v3497 = vadd.f32 %v3253, %v3496
    %v3498 = vpop.f32.mrf.mxu0
    %v3499 = vadd.f32 %v3253, %v3498
    %3500 = vmatmul.bf16.gmra.mxu0 %v3186
    %v3501 = vpop.f32.mrf.mxu0
    %v3502 = vadd.f32 %v3253, %v3501
    %v3503 = vpop.f32.mrf.mxu0
    %v3504 = vadd.f32 %v3253, %v3503
    %3505 = vmatmul.bf16.gmra.mxu0 %v3188
    %v3506 = vpop.f32.mrf.mxu0
    %v3507 = vadd.f32 %v3253, %v3506
    %v3508 = vpop.f32.mrf.mxu0
    %v3509 = vadd.f32 %v3253, %v3508
    %3510 = vmatmul.bf16.gmra.mxu0 %v3190
    %v3511 = vpop.f32.mrf.mxu0
    %v3512 = vadd.f32 %v3253, %v3511
    %v3513 = vpop.f32.mrf.mxu0
    %v3514 = vadd.f32 %v3253, %v3513
    %3515 = vmatmul.bf16.gmra.mxu0 %v3192
    %v3516 = vpop.f32.mrf.mxu0
    %v3517 = vadd.f32 %v3253, %v3516
    %v3518 = vpop.f32.mrf.mxu0
    %v3519 = vadd.f32 %v3253, %v3518
    %3520 = vmatmul.bf16.gmra.mxu0 %v3194
    %v3521 = vpop.f32.mrf.mxu0
    %v3522 = vadd.f32 %v3253, %v3521
    %v3523 = vpop.f32.mrf.mxu0
    %v3524 = vadd.f32 %v3253, %v3523
    %3525 = vmatmul.bf16.gmra.mxu0 %v3196
    %v3526 = vpop.f32.mrf.mxu0
    %v3527 = vadd.f32 %v3253, %v3526
    %v3528 = vpop.f32.mrf.mxu0
    %v3529 = vadd.f32 %v3253, %v3528
    %3530 = vmatmul.bf16.gmra.mxu0 %v3198
    %v3531 = vpop.f32.mrf.mxu0
    %v3532 = vadd.f32 %v3253, %v3531
    %v3533 = vpop.f32.mrf.mxu0
    %v3534 = vadd.f32 %v3253, %v3533
    %3535 = vmatmul.bf16.gmra.mxu0 %v3200
    %v3536 = vpop.f32.mrf.mxu0
    %v3537 = vadd.f32 %v3253, %v3536
    %v3538 = vpop.f32.mrf.mxu0
    %v3539 = vadd.f32 %v3253, %v3538
    %3540 = vmatmul.bf16.gmra.mxu0 %v3202
    %v3541 = vpop.f32.mrf.mxu0
    %v3542 = vadd.f32 %v3253, %v3541
    %v3543 = vpop.f32.mrf.mxu0
    %v3544 = vadd.f32 %v3253, %v3543
    %3545 = vmatmul.bf16.gmra.mxu0 %v3204
    %v3546 = vpop.f32.mrf.mxu0
    %v3547 = vadd.f32 %v3253, %v3546
    %v3548 = vpop.f32.mrf.mxu0
    %v3549 = vadd.f32 %v3253, %v3548
    %3550 = vmatmul.bf16.gmra.mxu0 %v3206
    %v3551 = vpop.f32.mrf.mxu0
    %v3552 = vadd.f32 %v3253, %v3551
    %v3553 = vpop.f32.mrf.mxu0
    %v3554 = vadd.f32 %v3253, %v3553
    %3555 = vmatmul.bf16.gmra.mxu0 %v3208
    %v3556 = vpop.f32.mrf.mxu0
    %v3557 = vadd.f32 %v3253, %v3556
    %v3558 = vpop.f32.mrf.mxu0
    %v3559 = vadd.f32 %v3253, %v3558
    %3560 = vmatmul.bf16.gmra.mxu0 %v3210
    %v3561 = vpop.f32.mrf.mxu0
    %v3562 = vadd.f32 %v3253, %v3561
    %v3563 = vpop.f32.mrf.mxu0
    %v3564 = vadd.f32 %v3253, %v3563
    %3565 = vmatmul.bf16.gmra.mxu0 %v3212
    %v3566 = vpop.f32.mrf.mxu0
    %v3567 = vadd.f32 %v3253, %v3566
    %v3568 = vpop.f32.mrf.mxu0
    %v3569 = vadd.f32 %v3253, %v3568
    %3570 = vmatmul.bf16.gmra.mxu0 %v3214
    %v3571 = vpop.f32.mrf.mxu0
    %v3572 = vadd.f32 %v3253, %v3571
    %v3573 = vpop.f32.mrf.mxu0
    %v3574 = vadd.f32 %v3253, %v3573
    %3575 = vmatmul.bf16.gmra.mxu0 %v3216
    %v3576 = vpop.f32.mrf.mxu0
    %v3577 = vadd.f32 %v3253, %v3576
    %v3578 = vpop.f32.mrf.mxu0
    %v3579 = vadd.f32 %v3253, %v3578
    %3580 = vmatmul.bf16.gmra.mxu0 %v3218
    %v3581 = vpop.f32.mrf.mxu0
    %v3582 = vadd.f32 %v3253, %v3581
    %v3583 = vpop.f32.mrf.mxu0
    %v3584 = vadd.f32 %v3253, %v3583
    %3585 = vdwg.mxu0
    %3586 = vmatpush.bf16.msra.mxu0 %v3383
    %3587 = vmatpush.bf16.msra.mxu0 %v3381
    %3588 = vmatpush.bf16.msra.mxu0 %v3379
    %3589 = vmatpush.bf16.msra.mxu0 %v3377
    %3590 = vmatpush.bf16.msra.mxu0 %v3375
    %3591 = vmatpush.bf16.msra.mxu0 %v3373
    %3592 = vmatpush.bf16.msra.mxu0 %v3371
    %3593 = vmatpush.bf16.msra.mxu0 %v3369
    %3594 = vmatmul.bf16.gmra.mxu0 %v3157
    %v3595 = vpop.f32.mrf.mxu0
    %v3596 = vadd.f32 %v3427, %v3595
    %v3597 = vpop.f32.mrf.mxu0
    %v3598 = vadd.f32 %v3429, %v3597
    %3599 = vmatmul.bf16.gmra.mxu0 %v3159
    %v3600 = vpop.f32.mrf.mxu0
    %v3601 = vadd.f32 %v3432, %v3600
    %v3602 = vpop.f32.mrf.mxu0
    %v3603 = vadd.f32 %v3434, %v3602
    %3604 = vmatmul.bf16.gmra.mxu0 %v3161
    %v3605 = vpop.f32.mrf.mxu0
    %v3606 = vadd.f32 %v3437, %v3605
    %v3607 = vpop.f32.mrf.mxu0
    %v3608 = vadd.f32 %v3439, %v3607
    %3609 = vmatmul.bf16.gmra.mxu0 %v3163
    %v3610 = vpop.f32.mrf.mxu0
    %v3611 = vadd.f32 %v3442, %v3610
    %v3612 = vpop.f32.mrf.mxu0
    %v3613 = vadd.f32 %v3444, %v3612
    %3614 = vmatmul.bf16.gmra.mxu0 %v3165
    %v3615 = vpop.f32.mrf.mxu0
    %v3616 = vadd.f32 %v3447, %v3615
    %v3617 = vpop.f32.mrf.mxu0
    %v3618 = vadd.f32 %v3449, %v3617
    %3619 = vmatmul.bf16.gmra.mxu0 %v3167
    %v3620 = vpop.f32.mrf.mxu0
    %v3621 = vadd.f32 %v3452, %v3620
    %v3622 = vpop.f32.mrf.mxu0
    %v3623 = vadd.f32 %v3454, %v3622
    %3624 = vmatmul.bf16.gmra.mxu0 %v3169
    %v3625 = vpop.f32.mrf.mxu0
    %v3626 = vadd.f32 %v3457, %v3625
    %v3627 = vpop.f32.mrf.mxu0
    %v3628 = vadd.f32 %v3459, %v3627
    %3629 = vmatmul.bf16.gmra.mxu0 %v3171
    %v3630 = vpop.f32.mrf.mxu0
    %v3631 = vadd.f32 %v3462, %v3630
    %v3632 = vpop.f32.mrf.mxu0
    %v3633 = vadd.f32 %v3464, %v3632
    %3634 = vmatmul.bf16.gmra.mxu0 %v3173
    %v3635 = vpop.f32.mrf.mxu0
    %v3636 = vadd.f32 %v3467, %v3635
    %v3637 = vpop.f32.mrf.mxu0
    %v3638 = vadd.f32 %v3469, %v3637
    %3639 = vmatmul.bf16.gmra.mxu0 %v3175
    %v3640 = vpop.f32.mrf.mxu0
    %v3641 = vadd.f32 %v3472, %v3640
    %v3642 = vpop.f32.mrf.mxu0
    %v3643 = vadd.f32 %v3474, %v3642
    %3644 = vmatmul.bf16.gmra.mxu0 %v3177
    %v3645 = vpop.f32.mrf.mxu0
    %v3646 = vadd.f32 %v3477, %v3645
    %v3647 = vpop.f32.mrf.mxu0
    %v3648 = vadd.f32 %v3479, %v3647
    %3649 = vmatmul.bf16.gmra.mxu0 %v3179
    %v3650 = vpop.f32.mrf.mxu0
    %v3651 = vadd.f32 %v3482, %v3650
    %v3652 = vpop.f32.mrf.mxu0
    %v3653 = vadd.f32 %v3484, %v3652
    %3654 = vmatmul.bf16.gmra.mxu0 %v3181
    %v3655 = vpop.f32.mrf.mxu0
    %v3656 = vadd.f32 %v3487, %v3655
    %v3657 = vpop.f32.mrf.mxu0
    %v3658 = vadd.f32 %v3489, %v3657
    %3659 = vmatmul.bf16.gmra.mxu0 %v3183
    %v3660 = vpop.f32.mrf.mxu0
    %v3661 = vadd.f32 %v3492, %v3660
    %v3662 = vpop.f32.mrf.mxu0
    %v3663 = vadd.f32 %v3494, %v3662
    %3664 = vmatmul.bf16.gmra.mxu0 %v3185
    %v3665 = vpop.f32.mrf.mxu0
    %v3666 = vadd.f32 %v3497, %v3665
    %v3667 = vpop.f32.mrf.mxu0
    %v3668 = vadd.f32 %v3499, %v3667
    %3669 = vmatmul.bf16.gmra.mxu0 %v3187
    %v3670 = vpop.f32.mrf.mxu0
    %v3671 = vadd.f32 %v3502, %v3670
    %v3672 = vpop.f32.mrf.mxu0
    %v3673 = vadd.f32 %v3504, %v3672
    %3674 = vmatmul.bf16.gmra.mxu0 %v3189
    %v3675 = vpop.f32.mrf.mxu0
    %v3676 = vadd.f32 %v3507, %v3675
    %v3677 = vpop.f32.mrf.mxu0
    %v3678 = vadd.f32 %v3509, %v3677
    %3679 = vmatmul.bf16.gmra.mxu0 %v3191
    %v3680 = vpop.f32.mrf.mxu0
    %v3681 = vadd.f32 %v3512, %v3680
    %v3682 = vpop.f32.mrf.mxu0
    %v3683 = vadd.f32 %v3514, %v3682
    %3684 = vmatmul.bf16.gmra.mxu0 %v3193
    %v3685 = vpop.f32.mrf.mxu0
    %v3686 = vadd.f32 %v3517, %v3685
    %v3687 = vpop.f32.mrf.mxu0
    %v3688 = vadd.f32 %v3519, %v3687
    %3689 = vmatmul.bf16.gmra.mxu0 %v3195
    %v3690 = vpop.f32.mrf.mxu0
    %v3691 = vadd.f32 %v3522, %v3690
    %v3692 = vpop.f32.mrf.mxu0
    %v3693 = vadd.f32 %v3524, %v3692
    %3694 = vmatmul.bf16.gmra.mxu0 %v3197
    %v3695 = vpop.f32.mrf.mxu0
    %v3696 = vadd.f32 %v3527, %v3695
    %v3697 = vpop.f32.mrf.mxu0
    %v3698 = vadd.f32 %v3529, %v3697
    %3699 = vmatmul.bf16.gmra.mxu0 %v3199
    %v3700 = vpop.f32.mrf.mxu0
    %v3701 = vadd.f32 %v3532, %v3700
    %v3702 = vpop.f32.mrf.mxu0
    %v3703 = vadd.f32 %v3534, %v3702
    %3704 = vmatmul.bf16.gmra.mxu0 %v3201
    %v3705 = vpop.f32.mrf.mxu0
    %v3706 = vadd.f32 %v3537, %v3705
    %v3707 = vpop.f32.mrf.mxu0
    %v3708 = vadd.f32 %v3539, %v3707
    %3709 = vmatmul.bf16.gmra.mxu0 %v3203
    %v3710 = vpop.f32.mrf.mxu0
    %v3711 = vadd.f32 %v3542, %v3710
    %v3712 = vpop.f32.mrf.mxu0
    %v3713 = vadd.f32 %v3544, %v3712
    %3714 = vmatmul.bf16.gmra.mxu0 %v3205
    %v3715 = vpop.f32.mrf.mxu0
    %v3716 = vadd.f32 %v3547, %v3715
    %v3717 = vpop.f32.mrf.mxu0
    %v3718 = vadd.f32 %v3549, %v3717
    %3719 = vmatmul.bf16.gmra.mxu0 %v3207
    %v3720 = vpop.f32.mrf.mxu0
    %v3721 = vadd.f32 %v3552, %v3720
    %v3722 = vpop.f32.mrf.mxu0
    %v3723 = vadd.f32 %v3554, %v3722
    %3724 = vmatmul.bf16.gmra.mxu0 %v3209
    %v3725 = vpop.f32.mrf.mxu0
    %v3726 = vadd.f32 %v3557, %v3725
    %v3727 = vpop.f32.mrf.mxu0
    %v3728 = vadd.f32 %v3559, %v3727
    %3729 = vmatmul.bf16.gmra.mxu0 %v3211
    %v3730 = vpop.f32.mrf.mxu0
    %v3731 = vadd.f32 %v3562, %v3730
    %v3732 = vpop.f32.mrf.mxu0
    %v3733 = vadd.f32 %v3564, %v3732
    %3734 = vmatmul.bf16.gmra.mxu0 %v3213
    %v3735 = vpop.f32.mrf.mxu0
    %v3736 = vadd.f32 %v3567, %v3735
    %v3737 = vpop.f32.mrf.mxu0
    %v3738 = vadd.f32 %v3569, %v3737
    %3739 = vmatmul.bf16.gmra.mxu0 %v3215
    %v3740 = vpop.f32.mrf.mxu0
    %v3741 = vadd.f32 %v3572, %v3740
    %v3742 = vpop.f32.mrf.mxu0
    %v3743 = vadd.f32 %v3574, %v3742
    %3744 = vmatmul.bf16.gmra.mxu0 %v3217
    %v3745 = vpop.f32.mrf.mxu0
    %v3746 = vadd.f32 %v3577, %v3745
    %v3747 = vpop.f32.mrf.mxu0
    %v3748 = vadd.f32 %v3579, %v3747
    %3749 = vmatmul.bf16.gmra.mxu0 %v3219
    %v3750 = vpop.f32.mrf.mxu0
    %v3751 = vadd.f32 %v3582, %v3750
    %v3752 = vpop.f32.mrf.mxu0
    %v3753 = vadd.f32 %v3584, %v3752
    %3754 = vdwg.mxu0
    %3755 = vmatpush.bf16.msra.mxu0 %v3368
    %3756 = vmatpush.bf16.msra.mxu0 %v3366
    %3757 = vmatpush.bf16.msra.mxu0 %v3364
    %3758 = vmatpush.bf16.msra.mxu0 %v3362
    %3759 = vmatpush.bf16.msra.mxu0 %v3360
    %3760 = vmatpush.bf16.msra.mxu0 %v3358
    %3761 = vmatpush.bf16.msra.mxu0 %v3356
    %3762 = vmatpush.bf16.msra.mxu0 %v3354
    %3763 = vmatmul.bf16.gmra.mxu0 %v3156
    %v3764 = vpop.f32.mrf.mxu0
    %v3765 = vadd.f32 %v3254, %v3764
    %v3766 = vpop.f32.mrf.mxu0
    %v3767 = vadd.f32 %v3254, %v3766
    %3768 = vmatmul.bf16.gmra.mxu0 %v3158
    %v3769 = vpop.f32.mrf.mxu0
    %v3770 = vadd.f32 %v3254, %v3769
    %v3771 = vpop.f32.mrf.mxu0
    %v3772 = vadd.f32 %v3254, %v3771
    %3773 = vmatmul.bf16.gmra.mxu0 %v3160
    %v3774 = vpop.f32.mrf.mxu0
    %v3775 = vadd.f32 %v3254, %v3774
    %v3776 = vpop.f32.mrf.mxu0
    %v3777 = vadd.f32 %v3254, %v3776
    %3778 = vmatmul.bf16.gmra.mxu0 %v3162
    %v3779 = vpop.f32.mrf.mxu0
    %v3780 = vadd.f32 %v3254, %v3779
    %v3781 = vpop.f32.mrf.mxu0
    %v3782 = vadd.f32 %v3254, %v3781
    %3783 = vmatmul.bf16.gmra.mxu0 %v3164
    %v3784 = vpop.f32.mrf.mxu0
    %v3785 = vadd.f32 %v3254, %v3784
    %v3786 = vpop.f32.mrf.mxu0
    %v3787 = vadd.f32 %v3254, %v3786
    %3788 = vmatmul.bf16.gmra.mxu0 %v3166
    %v3789 = vpop.f32.mrf.mxu0
    %v3790 = vadd.f32 %v3254, %v3789
    %v3791 = vpop.f32.mrf.mxu0
    %v3792 = vadd.f32 %v3254, %v3791
    %3793 = vmatmul.bf16.gmra.mxu0 %v3168
    %v3794 = vpop.f32.mrf.mxu0
    %v3795 = vadd.f32 %v3254, %v3794
    %v3796 = vpop.f32.mrf.mxu0
    %v3797 = vadd.f32 %v3254, %v3796
    %3798 = vmatmul.bf16.gmra.mxu0 %v3170
    %v3799 = vpop.f32.mrf.mxu0
    %v3800 = vadd.f32 %v3254, %v3799
    %v3801 = vpop.f32.mrf.mxu0
    %v3802 = vadd.f32 %v3254, %v3801
    %3803 = vmatmul.bf16.gmra.mxu0 %v3172
    %v3804 = vpop.f32.mrf.mxu0
    %v3805 = vadd.f32 %v3254, %v3804
    %v3806 = vpop.f32.mrf.mxu0
    %v3807 = vadd.f32 %v3254, %v3806
    %3808 = vmatmul.bf16.gmra.mxu0 %v3174
    %v3809 = vpop.f32.mrf.mxu0
    %v3810 = vadd.f32 %v3254, %v3809
    %v3811 = vpop.f32.mrf.mxu0
    %v3812 = vadd.f32 %v3254, %v3811
    %3813 = vmatmul.bf16.gmra.mxu0 %v3176
    %v3814 = vpop.f32.mrf.mxu0
    %v3815 = vadd.f32 %v3254, %v3814
    %v3816 = vpop.f32.mrf.mxu0
    %v3817 = vadd.f32 %v3254, %v3816
    %3818 = vmatmul.bf16.gmra.mxu0 %v3178
    %v3819 = vpop.f32.mrf.mxu0
    %v3820 = vadd.f32 %v3254, %v3819
    %v3821 = vpop.f32.mrf.mxu0
    %v3822 = vadd.f32 %v3254, %v3821
    %3823 = vmatmul.bf16.gmra.mxu0 %v3180
    %v3824 = vpop.f32.mrf.mxu0
    %v3825 = vadd.f32 %v3254, %v3824
    %v3826 = vpop.f32.mrf.mxu0
    %v3827 = vadd.f32 %v3254, %v3826
    %3828 = vmatmul.bf16.gmra.mxu0 %v3182
    %v3829 = vpop.f32.mrf.mxu0
    %v3830 = vadd.f32 %v3254, %v3829
    %v3831 = vpop.f32.mrf.mxu0
    %v3832 = vadd.f32 %v3254, %v3831
    %3833 = vmatmul.bf16.gmra.mxu0 %v3184
    %v3834 = vpop.f32.mrf.mxu0
    %v3835 = vadd.f32 %v3254, %v3834
    %v3836 = vpop.f32.mrf.mxu0
    %v3837 = vadd.f32 %v3254, %v3836
    %3838 = vmatmul.bf16.gmra.mxu0 %v3186
    %v3839 = vpop.f32.mrf.mxu0
    %v3840 = vadd.f32 %v3254, %v3839
    %v3841 = vpop.f32.mrf.mxu0
    %v3842 = vadd.f32 %v3254, %v3841
    %3843 = vmatmul.bf16.gmra.mxu0 %v3188
    %v3844 = vpop.f32.mrf.mxu0
    %v3845 = vadd.f32 %v3254, %v3844
    %v3846 = vpop.f32.mrf.mxu0
    %v3847 = vadd.f32 %v3254, %v3846
    %3848 = vmatmul.bf16.gmra.mxu0 %v3190
    %v3849 = vpop.f32.mrf.mxu0
    %v3850 = vadd.f32 %v3254, %v3849
    %v3851 = vpop.f32.mrf.mxu0
    %v3852 = vadd.f32 %v3254, %v3851
    %3853 = vmatmul.bf16.gmra.mxu0 %v3192
    %v3854 = vpop.f32.mrf.mxu0
    %v3855 = vadd.f32 %v3254, %v3854
    %v3856 = vpop.f32.mrf.mxu0
    %v3857 = vadd.f32 %v3254, %v3856
    %3858 = vmatmul.bf16.gmra.mxu0 %v3194
    %v3859 = vpop.f32.mrf.mxu0
    %v3860 = vadd.f32 %v3254, %v3859
    %v3861 = vpop.f32.mrf.mxu0
    %v3862 = vadd.f32 %v3254, %v3861
    %3863 = vmatmul.bf16.gmra.mxu0 %v3196
    %v3864 = vpop.f32.mrf.mxu0
    %v3865 = vadd.f32 %v3254, %v3864
    %v3866 = vpop.f32.mrf.mxu0
    %v3867 = vadd.f32 %v3254, %v3866
    %3868 = vmatmul.bf16.gmra.mxu0 %v3198
    %v3869 = vpop.f32.mrf.mxu0
    %v3870 = vadd.f32 %v3254, %v3869
    %v3871 = vpop.f32.mrf.mxu0
    %v3872 = vadd.f32 %v3254, %v3871
    %3873 = vmatmul.bf16.gmra.mxu0 %v3200
    %v3874 = vpop.f32.mrf.mxu0
    %v3875 = vadd.f32 %v3254, %v3874
    %v3876 = vpop.f32.mrf.mxu0
    %v3877 = vadd.f32 %v3254, %v3876
    %3878 = vmatmul.bf16.gmra.mxu0 %v3202
    %v3879 = vpop.f32.mrf.mxu0
    %v3880 = vadd.f32 %v3254, %v3879
    %v3881 = vpop.f32.mrf.mxu0
    %v3882 = vadd.f32 %v3254, %v3881
    %3883 = vmatmul.bf16.gmra.mxu0 %v3204
    %v3884 = vpop.f32.mrf.mxu0
    %v3885 = vadd.f32 %v3254, %v3884
    %v3886 = vpop.f32.mrf.mxu0
    %v3887 = vadd.f32 %v3254, %v3886
    %3888 = vmatmul.bf16.gmra.mxu0 %v3206
    %v3889 = vpop.f32.mrf.mxu0
    %v3890 = vadd.f32 %v3254, %v3889
    %v3891 = vpop.f32.mrf.mxu0
    %v3892 = vadd.f32 %v3254, %v3891
    %3893 = vmatmul.bf16.gmra.mxu0 %v3208
    %v3894 = vpop.f32.mrf.mxu0
    %v3895 = vadd.f32 %v3254, %v3894
    %v3896 = vpop.f32.mrf.mxu0
    %v3897 = vadd.f32 %v3254, %v3896
    %3898 = vmatmul.bf16.gmra.mxu0 %v3210
    %v3899 = vpop.f32.mrf.mxu0
    %v3900 = vadd.f32 %v3254, %v3899
    %v3901 = vpop.f32.mrf.mxu0
    %v3902 = vadd.f32 %v3254, %v3901
    %3903 = vmatmul.bf16.gmra.mxu0 %v3212
    %v3904 = vpop.f32.mrf.mxu0
    %v3905 = vadd.f32 %v3254, %v3904
    %v3906 = vpop.f32.mrf.mxu0
    %v3907 = vadd.f32 %v3254, %v3906
    %3908 = vmatmul.bf16.gmra.mxu0 %v3214
    %v3909 = vpop.f32.mrf.mxu0
    %v3910 = vadd.f32 %v3254, %v3909
    %v3911 = vpop.f32.mrf.mxu0
    %v3912 = vadd.f32 %v3254, %v3911
    %3913 = vmatmul.bf16.gmra.mxu0 %v3216
    %v3914 = vpop.f32.mrf.mxu0
    %v3915 = vadd.f32 %v3254, %v3914
    %v3916 = vpop.f32.mrf.mxu0
    %v3917 = vadd.f32 %v3254, %v3916
    %3918 = vmatmul.bf16.gmra.mxu0 %v3218
    %v3919 = vpop.f32.mrf.mxu0
    %v3920 = vadd.f32 %v3254, %v3919
    %v3921 = vpop.f32.mrf.mxu0
    %v3922 = vadd.f32 %v3254, %v3921
    %3923 = vdwg.mxu0
    %3924 = vmatpush.bf16.msra.mxu0 %v3384
    %3925 = vmatpush.bf16.msra.mxu0 %v3382
    %3926 = vmatpush.bf16.msra.mxu0 %v3380
    %3927 = vmatpush.bf16.msra.mxu0 %v3378
    %3928 = vmatpush.bf16.msra.mxu0 %v3376
    %3929 = vmatpush.bf16.msra.mxu0 %v3374
    %3930 = vmatpush.bf16.msra.mxu0 %v3372
    %3931 = vmatpush.bf16.msra.mxu0 %v3370
    %3932 = vmatmul.bf16.gmra.mxu0 %v3157
    %v3933 = vpop.f32.mrf.mxu0
    %v3934 = vadd.f32 %v3765, %v3933
    %v3935 = vpop.f32.mrf.mxu0
    %v3936 = vadd.f32 %v3767, %v3935
    %3937 = vmatmul.bf16.gmra.mxu0 %v3159
    %v3938 = vpop.f32.mrf.mxu0
    %v3939 = vadd.f32 %v3770, %v3938
    %v3940 = vpop.f32.mrf.mxu0
    %v3941 = vadd.f32 %v3772, %v3940
    %3942 = vmatmul.bf16.gmra.mxu0 %v3161
    %v3943 = vpop.f32.mrf.mxu0
    %v3944 = vadd.f32 %v3775, %v3943
    %v3945 = vpop.f32.mrf.mxu0
    %v3946 = vadd.f32 %v3777, %v3945
    %3947 = vmatmul.bf16.gmra.mxu0 %v3163
    %v3948 = vpop.f32.mrf.mxu0
    %v3949 = vadd.f32 %v3780, %v3948
    %v3950 = vpop.f32.mrf.mxu0
    %v3951 = vadd.f32 %v3782, %v3950
    %3952 = vmatmul.bf16.gmra.mxu0 %v3165
    %v3953 = vpop.f32.mrf.mxu0
    %v3954 = vadd.f32 %v3785, %v3953
    %v3955 = vpop.f32.mrf.mxu0
    %v3956 = vadd.f32 %v3787, %v3955
    %3957 = vmatmul.bf16.gmra.mxu0 %v3167
    %v3958 = vpop.f32.mrf.mxu0
    %v3959 = vadd.f32 %v3790, %v3958
    %v3960 = vpop.f32.mrf.mxu0
    %v3961 = vadd.f32 %v3792, %v3960
    %3962 = vmatmul.bf16.gmra.mxu0 %v3169
    %v3963 = vpop.f32.mrf.mxu0
    %v3964 = vadd.f32 %v3795, %v3963
    %v3965 = vpop.f32.mrf.mxu0
    %v3966 = vadd.f32 %v3797, %v3965
    %3967 = vmatmul.bf16.gmra.mxu0 %v3171
    %v3968 = vpop.f32.mrf.mxu0
    %v3969 = vadd.f32 %v3800, %v3968
    %v3970 = vpop.f32.mrf.mxu0
    %v3971 = vadd.f32 %v3802, %v3970
    %3972 = vmatmul.bf16.gmra.mxu0 %v3173
    %v3973 = vpop.f32.mrf.mxu0
    %v3974 = vadd.f32 %v3805, %v3973
    %v3975 = vpop.f32.mrf.mxu0
    %v3976 = vadd.f32 %v3807, %v3975
    %3977 = vmatmul.bf16.gmra.mxu0 %v3175
    %v3978 = vpop.f32.mrf.mxu0
    %v3979 = vadd.f32 %v3810, %v3978
    %v3980 = vpop.f32.mrf.mxu0
    %v3981 = vadd.f32 %v3812, %v3980
    %3982 = vmatmul.bf16.gmra.mxu0 %v3177
    %v3983 = vpop.f32.mrf.mxu0
    %v3984 = vadd.f32 %v3815, %v3983
    %v3985 = vpop.f32.mrf.mxu0
    %v3986 = vadd.f32 %v3817, %v3985
    %3987 = vmatmul.bf16.gmra.mxu0 %v3179
    %v3988 = vpop.f32.mrf.mxu0
    %v3989 = vadd.f32 %v3820, %v3988
    %v3990 = vpop.f32.mrf.mxu0
    %v3991 = vadd.f32 %v3822, %v3990
    %3992 = vmatmul.bf16.gmra.mxu0 %v3181
    %v3993 = vpop.f32.mrf.mxu0
    %v3994 = vadd.f32 %v3825, %v3993
    %v3995 = vpop.f32.mrf.mxu0
    %v3996 = vadd.f32 %v3827, %v3995
    %3997 = vmatmul.bf16.gmra.mxu0 %v3183
    %v3998 = vpop.f32.mrf.mxu0
    %v3999 = vadd.f32 %v3830, %v3998
    %v4000 = vpop.f32.mrf.mxu0
    %v4001 = vadd.f32 %v3832, %v4000
    %4002 = vmatmul.bf16.gmra.mxu0 %v3185
    %v4003 = vpop.f32.mrf.mxu0
    %v4004 = vadd.f32 %v3835, %v4003
    %v4005 = vpop.f32.mrf.mxu0
    %v4006 = vadd.f32 %v3837, %v4005
    %4007 = vmatmul.bf16.gmra.mxu0 %v3187
    %v4008 = vpop.f32.mrf.mxu0
    %v4009 = vadd.f32 %v3840, %v4008
    %v4010 = vpop.f32.mrf.mxu0
    %v4011 = vadd.f32 %v3842, %v4010
    %4012 = vmatmul.bf16.gmra.mxu0 %v3189
    %v4013 = vpop.f32.mrf.mxu0
    %v4014 = vadd.f32 %v3845, %v4013
    %v4015 = vpop.f32.mrf.mxu0
    %v4016 = vadd.f32 %v3847, %v4015
    %4017 = vmatmul.bf16.gmra.mxu0 %v3191
    %v4018 = vpop.f32.mrf.mxu0
    %v4019 = vadd.f32 %v3850, %v4018
    %v4020 = vpop.f32.mrf.mxu0
    %v4021 = vadd.f32 %v3852, %v4020
    %4022 = vmatmul.bf16.gmra.mxu0 %v3193
    %v4023 = vpop.f32.mrf.mxu0
    %v4024 = vadd.f32 %v3855, %v4023
    %v4025 = vpop.f32.mrf.mxu0
    %v4026 = vadd.f32 %v3857, %v4025
    %4027 = vmatmul.bf16.gmra.mxu0 %v3195
    %v4028 = vpop.f32.mrf.mxu0
    %v4029 = vadd.f32 %v3860, %v4028
    %v4030 = vpop.f32.mrf.mxu0
    %v4031 = vadd.f32 %v3862, %v4030
    %4032 = vmatmul.bf16.gmra.mxu0 %v3197
    %v4033 = vpop.f32.mrf.mxu0
    %v4034 = vadd.f32 %v3865, %v4033
    %v4035 = vpop.f32.mrf.mxu0
    %v4036 = vadd.f32 %v3867, %v4035
    %4037 = vmatmul.bf16.gmra.mxu0 %v3199
    %v4038 = vpop.f32.mrf.mxu0
    %v4039 = vadd.f32 %v3870, %v4038
    %v4040 = vpop.f32.mrf.mxu0
    %v4041 = vadd.f32 %v3872, %v4040
    %4042 = vmatmul.bf16.gmra.mxu0 %v3201
    %v4043 = vpop.f32.mrf.mxu0
    %v4044 = vadd.f32 %v3875, %v4043
    %v4045 = vpop.f32.mrf.mxu0
    %v4046 = vadd.f32 %v3877, %v4045
    %4047 = vmatmul.bf16.gmra.mxu0 %v3203
    %v4048 = vpop.f32.mrf.mxu0
    %v4049 = vadd.f32 %v3880, %v4048
    %v4050 = vpop.f32.mrf.mxu0
    %v4051 = vadd.f32 %v3882, %v4050
    %4052 = vmatmul.bf16.gmra.mxu0 %v3205
    %v4053 = vpop.f32.mrf.mxu0
    %v4054 = vadd.f32 %v3885, %v4053
    %v4055 = vpop.f32.mrf.mxu0
    %v4056 = vadd.f32 %v3887, %v4055
    %4057 = vmatmul.bf16.gmra.mxu0 %v3207
    %v4058 = vpop.f32.mrf.mxu0
    %v4059 = vadd.f32 %v3890, %v4058
    %v4060 = vpop.f32.mrf.mxu0
    %v4061 = vadd.f32 %v3892, %v4060
    %4062 = vmatmul.bf16.gmra.mxu0 %v3209
    %v4063 = vpop.f32.mrf.mxu0
    %v4064 = vadd.f32 %v3895, %v4063
    %v4065 = vpop.f32.mrf.mxu0
    %v4066 = vadd.f32 %v3897, %v4065
    %4067 = vmatmul.bf16.gmra.mxu0 %v3211
    %v4068 = vpop.f32.mrf.mxu0
    %v4069 = vadd.f32 %v3900, %v4068
    %v4070 = vpop.f32.mrf.mxu0
    %v4071 = vadd.f32 %v3902, %v4070
    %4072 = vmatmul.bf16.gmra.mxu0 %v3213
    %v4073 = vpop.f32.mrf.mxu0
    %v4074 = vadd.f32 %v3905, %v4073
    %v4075 = vpop.f32.mrf.mxu0
    %v4076 = vadd.f32 %v3907, %v4075
    %4077 = vmatmul.bf16.gmra.mxu0 %v3215
    %v4078 = vpop.f32.mrf.mxu0
    %v4079 = vadd.f32 %v3910, %v4078
    %v4080 = vpop.f32.mrf.mxu0
    %v4081 = vadd.f32 %v3912, %v4080
    %4082 = vmatmul.bf16.gmra.mxu0 %v3217
    %v4083 = vpop.f32.mrf.mxu0
    %v4084 = vadd.f32 %v3915, %v4083
    %v4085 = vpop.f32.mrf.mxu0
    %v4086 = vadd.f32 %v3917, %v4085
    %4087 = vmatmul.bf16.gmra.mxu0 %v3219
    %v4088 = vpop.f32.mrf.mxu0
    %v4089 = vadd.f32 %v3920, %v4088
    %v4090 = vpop.f32.mrf.mxu0
    %v4091 = vadd.f32 %v3922, %v4090
    %4092 = vdwg.mxu0
    %v4093 = vadd.f32 %v3596, %v3934
    %4094 = vadd.xlane.f32.xlu0 %v4093
    %v4095 = vpop.xlane.xlu0 %4094
    %v4096 = vadd.f32 %v3598, %v3936
    %4097 = vadd.xlane.f32.xlu0 %v4096
    %v4098 = vpop.xlane.xlu0 %4097
    %v4099 = vadd.f32 %v3601, %v3939
    %4100 = vadd.xlane.f32.xlu0 %v4099
    %v4101 = vpop.xlane.xlu0 %4100
    %v4102 = vadd.f32 %v3603, %v3941
    %4103 = vadd.xlane.f32.xlu0 %v4102
    %v4104 = vpop.xlane.xlu0 %4103
    %v4105 = vadd.f32 %v3606, %v3944
    %4106 = vadd.xlane.f32.xlu0 %v4105
    %v4107 = vpop.xlane.xlu0 %4106
    %v4108 = vadd.f32 %v3608, %v3946
    %4109 = vadd.xlane.f32.xlu0 %v4108
    %v4110 = vpop.xlane.xlu0 %4109
    %v4111 = vadd.f32 %v3611, %v3949
    %4112 = vadd.xlane.f32.xlu0 %v4111
    %v4113 = vpop.xlane.xlu0 %4112
    %v4114 = vadd.f32 %v3613, %v3951
    %4115 = vadd.xlane.f32.xlu0 %v4114
    %v4116 = vpop.xlane.xlu0 %4115
    %v4117 = vadd.f32 %v3616, %v3954
    %4118 = vadd.xlane.f32.xlu0 %v4117
    %v4119 = vpop.xlane.xlu0 %4118
    %v4120 = vadd.f32 %v3618, %v3956
    %4121 = vadd.xlane.f32.xlu0 %v4120
    %v4122 = vpop.xlane.xlu0 %4121
    %v4123 = vadd.f32 %v3621, %v3959
    %4124 = vadd.xlane.f32.xlu0 %v4123
    %v4125 = vpop.xlane.xlu0 %4124
    %v4126 = vadd.f32 %v3623, %v3961
    %4127 = vadd.xlane.f32.xlu0 %v4126
    %v4128 = vpop.xlane.xlu0 %4127
    %v4129 = vadd.f32 %v3626, %v3964
    %4130 = vadd.xlane.f32.xlu0 %v4129
    %v4131 = vpop.xlane.xlu0 %4130
    %v4132 = vadd.f32 %v3628, %v3966
    %4133 = vadd.xlane.f32.xlu0 %v4132
    %v4134 = vpop.xlane.xlu0 %4133
    %v4135 = vadd.f32 %v3631, %v3969
    %4136 = vadd.xlane.f32.xlu0 %v4135
    %v4137 = vpop.xlane.xlu0 %4136
    %v4138 = vadd.f32 %v3633, %v3971
    %4139 = vadd.xlane.f32.xlu0 %v4138
    %v4140 = vpop.xlane.xlu0 %4139
    %v4141 = vadd.f32 %v3636, %v3974
    %4142 = vadd.xlane.f32.xlu0 %v4141
    %v4143 = vpop.xlane.xlu0 %4142
    %v4144 = vadd.f32 %v3638, %v3976
    %4145 = vadd.xlane.f32.xlu0 %v4144
    %v4146 = vpop.xlane.xlu0 %4145
    %v4147 = vadd.f32 %v3641, %v3979
    %4148 = vadd.xlane.f32.xlu0 %v4147
    %v4149 = vpop.xlane.xlu0 %4148
    %v4150 = vadd.f32 %v3643, %v3981
    %4151 = vadd.xlane.f32.xlu0 %v4150
    %v4152 = vpop.xlane.xlu0 %4151
    %v4153 = vadd.f32 %v3646, %v3984
    %4154 = vadd.xlane.f32.xlu0 %v4153
    %v4155 = vpop.xlane.xlu0 %4154
    %v4156 = vadd.f32 %v3648, %v3986
    %4157 = vadd.xlane.f32.xlu0 %v4156
    %v4158 = vpop.xlane.xlu0 %4157
    %v4159 = vadd.f32 %v3651, %v3989
    %4160 = vadd.xlane.f32.xlu0 %v4159
    %v4161 = vpop.xlane.xlu0 %4160
    %v4162 = vadd.f32 %v3653, %v3991
    %4163 = vadd.xlane.f32.xlu0 %v4162
    %v4164 = vpop.xlane.xlu0 %4163
    %v4165 = vadd.f32 %v3656, %v3994
    %4166 = vadd.xlane.f32.xlu0 %v4165
    %v4167 = vpop.xlane.xlu0 %4166
    %v4168 = vadd.f32 %v3658, %v3996
    %4169 = vadd.xlane.f32.xlu0 %v4168
    %v4170 = vpop.xlane.xlu0 %4169
    %v4171 = vadd.f32 %v3661, %v3999
    %4172 = vadd.xlane.f32.xlu0 %v4171
    %v4173 = vpop.xlane.xlu0 %4172
    %v4174 = vadd.f32 %v3663, %v4001
    %4175 = vadd.xlane.f32.xlu0 %v4174
    %v4176 = vpop.xlane.xlu0 %4175
    %v4177 = vadd.f32 %v3666, %v4004
    %4178 = vadd.xlane.f32.xlu0 %v4177
    %v4179 = vpop.xlane.xlu0 %4178
    %v4180 = vadd.f32 %v3668, %v4006
    %4181 = vadd.xlane.f32.xlu0 %v4180
    %v4182 = vpop.xlane.xlu0 %4181
    %v4183 = vadd.f32 %v3671, %v4009
    %4184 = vadd.xlane.f32.xlu0 %v4183
    %v4185 = vpop.xlane.xlu0 %4184
    %v4186 = vadd.f32 %v3673, %v4011
    %4187 = vadd.xlane.f32.xlu0 %v4186
    %v4188 = vpop.xlane.xlu0 %4187
    %v4189 = vadd.f32 %v3676, %v4014
    %4190 = vadd.xlane.f32.xlu0 %v4189
    %v4191 = vpop.xlane.xlu0 %4190
    %v4192 = vadd.f32 %v3678, %v4016
    %4193 = vadd.xlane.f32.xlu0 %v4192
    %v4194 = vpop.xlane.xlu0 %4193
    %v4195 = vadd.f32 %v3681, %v4019
    %4196 = vadd.xlane.f32.xlu0 %v4195
    %v4197 = vpop.xlane.xlu0 %4196
    %v4198 = vadd.f32 %v3683, %v4021
    %4199 = vadd.xlane.f32.xlu0 %v4198
    %v4200 = vpop.xlane.xlu0 %4199
    %v4201 = vadd.f32 %v3686, %v4024
    %4202 = vadd.xlane.f32.xlu0 %v4201
    %v4203 = vpop.xlane.xlu0 %4202
    %v4204 = vadd.f32 %v3688, %v4026
    %4205 = vadd.xlane.f32.xlu0 %v4204
    %v4206 = vpop.xlane.xlu0 %4205
    %v4207 = vadd.f32 %v3691, %v4029
    %4208 = vadd.xlane.f32.xlu0 %v4207
    %v4209 = vpop.xlane.xlu0 %4208
    %v4210 = vadd.f32 %v3693, %v4031
    %4211 = vadd.xlane.f32.xlu0 %v4210
    %v4212 = vpop.xlane.xlu0 %4211
    %v4213 = vadd.f32 %v3696, %v4034
    %4214 = vadd.xlane.f32.xlu0 %v4213
    %v4215 = vpop.xlane.xlu0 %4214
    %v4216 = vadd.f32 %v3698, %v4036
    %4217 = vadd.xlane.f32.xlu0 %v4216
    %v4218 = vpop.xlane.xlu0 %4217
    %v4219 = vadd.f32 %v3701, %v4039
    %4220 = vadd.xlane.f32.xlu0 %v4219
    %v4221 = vpop.xlane.xlu0 %4220
    %v4222 = vadd.f32 %v3703, %v4041
    %4223 = vadd.xlane.f32.xlu0 %v4222
    %v4224 = vpop.xlane.xlu0 %4223
    %v4225 = vadd.f32 %v3706, %v4044
    %4226 = vadd.xlane.f32.xlu0 %v4225
    %v4227 = vpop.xlane.xlu0 %4226
    %v4228 = vadd.f32 %v3708, %v4046
    %4229 = vadd.xlane.f32.xlu0 %v4228
    %v4230 = vpop.xlane.xlu0 %4229
    %v4231 = vadd.f32 %v3711, %v4049
    %4232 = vadd.xlane.f32.xlu0 %v4231
    %v4233 = vpop.xlane.xlu0 %4232
    %v4234 = vadd.f32 %v3713, %v4051
    %4235 = vadd.xlane.f32.xlu0 %v4234
    %v4236 = vpop.xlane.xlu0 %4235
    %v4237 = vadd.f32 %v3716, %v4054
    %4238 = vadd.xlane.f32.xlu0 %v4237
    %v4239 = vpop.xlane.xlu0 %4238
    %v4240 = vadd.f32 %v3718, %v4056
    %4241 = vadd.xlane.f32.xlu0 %v4240
    %v4242 = vpop.xlane.xlu0 %4241
    %v4243 = vadd.f32 %v3721, %v4059
    %4244 = vadd.xlane.f32.xlu0 %v4243
    %v4245 = vpop.xlane.xlu0 %4244
    %v4246 = vadd.f32 %v3723, %v4061
    %4247 = vadd.xlane.f32.xlu0 %v4246
    %v4248 = vpop.xlane.xlu0 %4247
    %v4249 = vadd.f32 %v3726, %v4064
    %4250 = vadd.xlane.f32.xlu0 %v4249
    %v4251 = vpop.xlane.xlu0 %4250
    %v4252 = vadd.f32 %v3728, %v4066
    %4253 = vadd.xlane.f32.xlu0 %v4252
    %v4254 = vpop.xlane.xlu0 %4253
    %v4255 = vadd.f32 %v3731, %v4069
    %4256 = vadd.xlane.f32.xlu0 %v4255
    %v4257 = vpop.xlane.xlu0 %4256
    %v4258 = vadd.f32 %v3733, %v4071
    %4259 = vadd.xlane.f32.xlu0 %v4258
    %v4260 = vpop.xlane.xlu0 %4259
    %v4261 = vadd.f32 %v3736, %v4074
    %4262 = vadd.xlane.f32.xlu0 %v4261
    %v4263 = vpop.xlane.xlu0 %4262
    %v4264 = vadd.f32 %v3738, %v4076
    %4265 = vadd.xlane.f32.xlu0 %v4264
    %v4266 = vpop.xlane.xlu0 %4265
    %v4267 = vadd.f32 %v3741, %v4079
    %4268 = vadd.xlane.f32.xlu0 %v4267
    %v4269 = vpop.xlane.xlu0 %4268
    %v4270 = vadd.f32 %v3743, %v4081
    %4271 = vadd.xlane.f32.xlu0 %v4270
    %v4272 = vpop.xlane.xlu0 %4271
    %v4273 = vadd.f32 %v3746, %v4084
    %4274 = vadd.xlane.f32.xlu0 %v4273
    %v4275 = vpop.xlane.xlu0 %4274
    %v4276 = vadd.f32 %v3748, %v4086
    %4277 = vadd.xlane.f32.xlu0 %v4276
    %v4278 = vpop.xlane.xlu0 %4277
    %v4279 = vadd.f32 %v3751, %v4089
    %4280 = vadd.xlane.f32.xlu0 %v4279
    %v4281 = vpop.xlane.xlu0 %4280
    %v4282 = vadd.f32 %v3753, %v4091
    %4283 = vadd.xlane.f32.xlu0 %v4282
    %v4284 = vpop.xlane.xlu0 %4283
    %v4285 = vmul.f32 %v4095, %v1353
    %v4286 = vmul.f32 %v4098, %v1353
    %v4287 = vmul.f32 %v4101, %v1353
    %v4288 = vmul.f32 %v4104, %v1353
    %v4289 = vmul.f32 %v4107, %v1353
    %v4290 = vmul.f32 %v4110, %v1353
    %v4291 = vmul.f32 %v4113, %v1353
    %v4292 = vmul.f32 %v4116, %v1353
    %v4293 = vmul.f32 %v4119, %v1353
    %v4294 = vmul.f32 %v4122, %v1353
    %v4295 = vmul.f32 %v4125, %v1353
    %v4296 = vmul.f32 %v4128, %v1353
    %v4297 = vmul.f32 %v4131, %v1353
    %v4298 = vmul.f32 %v4134, %v1353
    %v4299 = vmul.f32 %v4137, %v1353
    %v4300 = vmul.f32 %v4140, %v1353
    %v4301 = vmul.f32 %v4143, %v1353
    %v4302 = vmul.f32 %v4146, %v1353
    %v4303 = vmul.f32 %v4149, %v1353
    %v4304 = vmul.f32 %v4152, %v1353
    %v4305 = vmul.f32 %v4155, %v1353
    %v4306 = vmul.f32 %v4158, %v1353
    %v4307 = vmul.f32 %v4161, %v1353
    %v4308 = vmul.f32 %v4164, %v1353
    %v4309 = vmul.f32 %v4167, %v1353
    %v4310 = vmul.f32 %v4170, %v1353
    %v4311 = vmul.f32 %v4173, %v1353
    %v4312 = vmul.f32 %v4176, %v1353
    %v4313 = vmul.f32 %v4179, %v1353
    %v4314 = vmul.f32 %v4182, %v1353
    %v4315 = vmul.f32 %v4185, %v1353
    %v4316 = vmul.f32 %v4188, %v1353
    %v4317 = vmul.f32 %v4191, %v1353
    %v4318 = vmul.f32 %v4194, %v1353
    %v4319 = vmul.f32 %v4197, %v1353
    %v4320 = vmul.f32 %v4200, %v1353
    %v4321 = vmul.f32 %v4203, %v1353
    %v4322 = vmul.f32 %v4206, %v1353
    %v4323 = vmul.f32 %v4209, %v1353
    %v4324 = vmul.f32 %v4212, %v1353
    %v4325 = vmul.f32 %v4215, %v1353
    %v4326 = vmul.f32 %v4218, %v1353
    %v4327 = vmul.f32 %v4221, %v1353
    %v4328 = vmul.f32 %v4224, %v1353
    %v4329 = vmul.f32 %v4227, %v1353
    %v4330 = vmul.f32 %v4230, %v1353
    %v4331 = vmul.f32 %v4233, %v1353
    %v4332 = vmul.f32 %v4236, %v1353
    %v4333 = vmul.f32 %v4239, %v1353
    %v4334 = vmul.f32 %v4242, %v1353
    %v4335 = vmul.f32 %v4245, %v1353
    %v4336 = vmul.f32 %v4248, %v1353
    %v4337 = vmul.f32 %v4251, %v1353
    %v4338 = vmul.f32 %v4254, %v1353
    %v4339 = vmul.f32 %v4257, %v1353
    %v4340 = vmul.f32 %v4260, %v1353
    %v4341 = vmul.f32 %v4263, %v1353
    %v4342 = vmul.f32 %v4266, %v1353
    %v4343 = vmul.f32 %v4269, %v1353
    %v4344 = vmul.f32 %v4272, %v1353
    %v4345 = vmul.f32 %v4275, %v1353
    %v4346 = vmul.f32 %v4278, %v1353
    %v4347 = vmul.f32 %v4281, %v1353
    %v4348 = vmul.f32 %v4284, %v1353
    %v4349 = vsub.f32 %v3596, %v4285
    %v4350 = vsub.f32 %v3934, %v4285
    %v4351 = vsub.f32 %v3598, %v4286
    %v4352 = vsub.f32 %v3936, %v4286
    %v4353 = vsub.f32 %v3601, %v4287
    %v4354 = vsub.f32 %v3939, %v4287
    %v4355 = vsub.f32 %v3603, %v4288
    %v4356 = vsub.f32 %v3941, %v4288
    %v4357 = vsub.f32 %v3606, %v4289
    %v4358 = vsub.f32 %v3944, %v4289
    %v4359 = vsub.f32 %v3608, %v4290
    %v4360 = vsub.f32 %v3946, %v4290
    %v4361 = vsub.f32 %v3611, %v4291
    %v4362 = vsub.f32 %v3949, %v4291
    %v4363 = vsub.f32 %v3613, %v4292
    %v4364 = vsub.f32 %v3951, %v4292
    %v4365 = vsub.f32 %v3616, %v4293
    %v4366 = vsub.f32 %v3954, %v4293
    %v4367 = vsub.f32 %v3618, %v4294
    %v4368 = vsub.f32 %v3956, %v4294
    %v4369 = vsub.f32 %v3621, %v4295
    %v4370 = vsub.f32 %v3959, %v4295
    %v4371 = vsub.f32 %v3623, %v4296
    %v4372 = vsub.f32 %v3961, %v4296
    %v4373 = vsub.f32 %v3626, %v4297
    %v4374 = vsub.f32 %v3964, %v4297
    %v4375 = vsub.f32 %v3628, %v4298
    %v4376 = vsub.f32 %v3966, %v4298
    %v4377 = vsub.f32 %v3631, %v4299
    %v4378 = vsub.f32 %v3969, %v4299
    %v4379 = vsub.f32 %v3633, %v4300
    %v4380 = vsub.f32 %v3971, %v4300
    %v4381 = vsub.f32 %v3636, %v4301
    %v4382 = vsub.f32 %v3974, %v4301
    %v4383 = vsub.f32 %v3638, %v4302
    %v4384 = vsub.f32 %v3976, %v4302
    %v4385 = vsub.f32 %v3641, %v4303
    %v4386 = vsub.f32 %v3979, %v4303
    %v4387 = vsub.f32 %v3643, %v4304
    %v4388 = vsub.f32 %v3981, %v4304
    %v4389 = vsub.f32 %v3646, %v4305
    %v4390 = vsub.f32 %v3984, %v4305
    %v4391 = vsub.f32 %v3648, %v4306
    %v4392 = vsub.f32 %v3986, %v4306
    %v4393 = vsub.f32 %v3651, %v4307
    %v4394 = vsub.f32 %v3989, %v4307
    %v4395 = vsub.f32 %v3653, %v4308
    %v4396 = vsub.f32 %v3991, %v4308
    %v4397 = vsub.f32 %v3656, %v4309
    %v4398 = vsub.f32 %v3994, %v4309
    %v4399 = vsub.f32 %v3658, %v4310
    %v4400 = vsub.f32 %v3996, %v4310
    %v4401 = vsub.f32 %v3661, %v4311
    %v4402 = vsub.f32 %v3999, %v4311
    %v4403 = vsub.f32 %v3663, %v4312
    %v4404 = vsub.f32 %v4001, %v4312
    %v4405 = vsub.f32 %v3666, %v4313
    %v4406 = vsub.f32 %v4004, %v4313
    %v4407 = vsub.f32 %v3668, %v4314
    %v4408 = vsub.f32 %v4006, %v4314
    %v4409 = vsub.f32 %v3671, %v4315
    %v4410 = vsub.f32 %v4009, %v4315
    %v4411 = vsub.f32 %v3673, %v4316
    %v4412 = vsub.f32 %v4011, %v4316
    %v4413 = vsub.f32 %v3676, %v4317
    %v4414 = vsub.f32 %v4014, %v4317
    %v4415 = vsub.f32 %v3678, %v4318
    %v4416 = vsub.f32 %v4016, %v4318
    %v4417 = vsub.f32 %v3681, %v4319
    %v4418 = vsub.f32 %v4019, %v4319
    %v4419 = vsub.f32 %v3683, %v4320
    %v4420 = vsub.f32 %v4021, %v4320
    %v4421 = vsub.f32 %v3686, %v4321
    %v4422 = vsub.f32 %v4024, %v4321
    %v4423 = vsub.f32 %v3688, %v4322
    %v4424 = vsub.f32 %v4026, %v4322
    %v4425 = vsub.f32 %v3691, %v4323
    %v4426 = vsub.f32 %v4029, %v4323
    %v4427 = vsub.f32 %v3693, %v4324
    %v4428 = vsub.f32 %v4031, %v4324
    %v4429 = vsub.f32 %v3696, %v4325
    %v4430 = vsub.f32 %v4034, %v4325
    %v4431 = vsub.f32 %v3698, %v4326
    %v4432 = vsub.f32 %v4036, %v4326
    %v4433 = vsub.f32 %v3701, %v4327
    %v4434 = vsub.f32 %v4039, %v4327
    %v4435 = vsub.f32 %v3703, %v4328
    %v4436 = vsub.f32 %v4041, %v4328
    %v4437 = vsub.f32 %v3706, %v4329
    %v4438 = vsub.f32 %v4044, %v4329
    %v4439 = vsub.f32 %v3708, %v4330
    %v4440 = vsub.f32 %v4046, %v4330
    %v4441 = vsub.f32 %v3711, %v4331
    %v4442 = vsub.f32 %v4049, %v4331
    %v4443 = vsub.f32 %v3713, %v4332
    %v4444 = vsub.f32 %v4051, %v4332
    %v4445 = vsub.f32 %v3716, %v4333
    %v4446 = vsub.f32 %v4054, %v4333
    %v4447 = vsub.f32 %v3718, %v4334
    %v4448 = vsub.f32 %v4056, %v4334
    %v4449 = vsub.f32 %v3721, %v4335
    %v4450 = vsub.f32 %v4059, %v4335
    %v4451 = vsub.f32 %v3723, %v4336
    %v4452 = vsub.f32 %v4061, %v4336
    %v4453 = vsub.f32 %v3726, %v4337
    %v4454 = vsub.f32 %v4064, %v4337
    %v4455 = vsub.f32 %v3728, %v4338
    %v4456 = vsub.f32 %v4066, %v4338
    %v4457 = vsub.f32 %v3731, %v4339
    %v4458 = vsub.f32 %v4069, %v4339
    %v4459 = vsub.f32 %v3733, %v4340
    %v4460 = vsub.f32 %v4071, %v4340
    %v4461 = vsub.f32 %v3736, %v4341
    %v4462 = vsub.f32 %v4074, %v4341
    %v4463 = vsub.f32 %v3738, %v4342
    %v4464 = vsub.f32 %v4076, %v4342
    %v4465 = vsub.f32 %v3741, %v4343
    %v4466 = vsub.f32 %v4079, %v4343
    %v4467 = vsub.f32 %v3743, %v4344
    %v4468 = vsub.f32 %v4081, %v4344
    %v4469 = vsub.f32 %v3746, %v4345
    %v4470 = vsub.f32 %v4084, %v4345
    %v4471 = vsub.f32 %v3748, %v4346
    %v4472 = vsub.f32 %v4086, %v4346
    %v4473 = vsub.f32 %v3751, %v4347
    %v4474 = vsub.f32 %v4089, %v4347
    %v4475 = vsub.f32 %v3753, %v4348
    %v4476 = vsub.f32 %v4091, %v4348
    %v4477 = vmul.f32 %v4349, %v4349
    %v4478 = vmul.f32 %v4350, %v4350
    %v4479 = vmul.f32 %v4351, %v4351
    %v4480 = vmul.f32 %v4352, %v4352
    %v4481 = vmul.f32 %v4353, %v4353
    %v4482 = vmul.f32 %v4354, %v4354
    %v4483 = vmul.f32 %v4355, %v4355
    %v4484 = vmul.f32 %v4356, %v4356
    %v4485 = vmul.f32 %v4357, %v4357
    %v4486 = vmul.f32 %v4358, %v4358
    %v4487 = vmul.f32 %v4359, %v4359
    %v4488 = vmul.f32 %v4360, %v4360
    %v4489 = vmul.f32 %v4361, %v4361
    %v4490 = vmul.f32 %v4362, %v4362
    %v4491 = vmul.f32 %v4363, %v4363
    %v4492 = vmul.f32 %v4364, %v4364
    %v4493 = vmul.f32 %v4365, %v4365
    %v4494 = vmul.f32 %v4366, %v4366
    %v4495 = vmul.f32 %v4367, %v4367
    %v4496 = vmul.f32 %v4368, %v4368
    %v4497 = vmul.f32 %v4369, %v4369
    %v4498 = vmul.f32 %v4370, %v4370
    %v4499 = vmul.f32 %v4371, %v4371
    %v4500 = vmul.f32 %v4372, %v4372
    %v4501 = vmul.f32 %v4373, %v4373
    %v4502 = vmul.f32 %v4374, %v4374
    %v4503 = vmul.f32 %v4375, %v4375
    %v4504 = vmul.f32 %v4376, %v4376
    %v4505 = vmul.f32 %v4377, %v4377
    %v4506 = vmul.f32 %v4378, %v4378
    %v4507 = vmul.f32 %v4379, %v4379
    %v4508 = vmul.f32 %v4380, %v4380
    %v4509 = vmul.f32 %v4381, %v4381
    %v4510 = vmul.f32 %v4382, %v4382
    %v4511 = vmul.f32 %v4383, %v4383
    %v4512 = vmul.f32 %v4384, %v4384
    %v4513 = vmul.f32 %v4385, %v4385
    %v4514 = vmul.f32 %v4386, %v4386
    %v4515 = vmul.f32 %v4387, %v4387
    %v4516 = vmul.f32 %v4388, %v4388
    %v4517 = vmul.f32 %v4389, %v4389
    %v4518 = vmul.f32 %v4390, %v4390
    %v4519 = vmul.f32 %v4391, %v4391
    %v4520 = vmul.f32 %v4392, %v4392
    %v4521 = vmul.f32 %v4393, %v4393
    %v4522 = vmul.f32 %v4394, %v4394
    %v4523 = vmul.f32 %v4395, %v4395
    %v4524 = vmul.f32 %v4396, %v4396
    %v4525 = vmul.f32 %v4397, %v4397
    %v4526 = vmul.f32 %v4398, %v4398
    %v4527 = vmul.f32 %v4399, %v4399
    %v4528 = vmul.f32 %v4400, %v4400
    %v4529 = vmul.f32 %v4401, %v4401
    %v4530 = vmul.f32 %v4402, %v4402
    %v4531 = vmul.f32 %v4403, %v4403
    %v4532 = vmul.f32 %v4404, %v4404
    %v4533 = vmul.f32 %v4405, %v4405
    %v4534 = vmul.f32 %v4406, %v4406
    %v4535 = vmul.f32 %v4407, %v4407
    %v4536 = vmul.f32 %v4408, %v4408
    %v4537 = vmul.f32 %v4409, %v4409
    %v4538 = vmul.f32 %v4410, %v4410
    %v4539 = vmul.f32 %v4411, %v4411
    %v4540 = vmul.f32 %v4412, %v4412
    %v4541 = vmul.f32 %v4413, %v4413
    %v4542 = vmul.f32 %v4414, %v4414
    %v4543 = vmul.f32 %v4415, %v4415
    %v4544 = vmul.f32 %v4416, %v4416
    %v4545 = vmul.f32 %v4417, %v4417
    %v4546 = vmul.f32 %v4418, %v4418
    %v4547 = vmul.f32 %v4419, %v4419
    %v4548 = vmul.f32 %v4420, %v4420
    %v4549 = vmul.f32 %v4421, %v4421
    %v4550 = vmul.f32 %v4422, %v4422
    %v4551 = vmul.f32 %v4423, %v4423
    %v4552 = vmul.f32 %v4424, %v4424
    %v4553 = vmul.f32 %v4425, %v4425
    %v4554 = vmul.f32 %v4426, %v4426
    %v4555 = vmul.f32 %v4427, %v4427
    %v4556 = vmul.f32 %v4428, %v4428
    %v4557 = vmul.f32 %v4429, %v4429
    %v4558 = vmul.f32 %v4430, %v4430
    %v4559 = vmul.f32 %v4431, %v4431
    %v4560 = vmul.f32 %v4432, %v4432
    %v4561 = vmul.f32 %v4433, %v4433
    %v4562 = vmul.f32 %v4434, %v4434
    %v4563 = vmul.f32 %v4435, %v4435
    %v4564 = vmul.f32 %v4436, %v4436
    %v4565 = vmul.f32 %v4437, %v4437
    %v4566 = vmul.f32 %v4438, %v4438
    %v4567 = vmul.f32 %v4439, %v4439
    %v4568 = vmul.f32 %v4440, %v4440
    %v4569 = vmul.f32 %v4441, %v4441
    %v4570 = vmul.f32 %v4442, %v4442
    %v4571 = vmul.f32 %v4443, %v4443
    %v4572 = vmul.f32 %v4444, %v4444
    %v4573 = vmul.f32 %v4445, %v4445
    %v4574 = vmul.f32 %v4446, %v4446
    %v4575 = vmul.f32 %v4447, %v4447
    %v4576 = vmul.f32 %v4448, %v4448
    %v4577 = vmul.f32 %v4449, %v4449
    %v4578 = vmul.f32 %v4450, %v4450
    %v4579 = vmul.f32 %v4451, %v4451
    %v4580 = vmul.f32 %v4452, %v4452
    %v4581 = vmul.f32 %v4453, %v4453
    %v4582 = vmul.f32 %v4454, %v4454
    %v4583 = vmul.f32 %v4455, %v4455
    %v4584 = vmul.f32 %v4456, %v4456
    %v4585 = vmul.f32 %v4457, %v4457
    %v4586 = vmul.f32 %v4458, %v4458
    %v4587 = vmul.f32 %v4459, %v4459
    %v4588 = vmul.f32 %v4460, %v4460
    %v4589 = vmul.f32 %v4461, %v4461
    %v4590 = vmul.f32 %v4462, %v4462
    %v4591 = vmul.f32 %v4463, %v4463
    %v4592 = vmul.f32 %v4464, %v4464
    %v4593 = vmul.f32 %v4465, %v4465
    %v4594 = vmul.f32 %v4466, %v4466
    %v4595 = vmul.f32 %v4467, %v4467
    %v4596 = vmul.f32 %v4468, %v4468
    %v4597 = vmul.f32 %v4469, %v4469
    %v4598 = vmul.f32 %v4470, %v4470
    %v4599 = vmul.f32 %v4471, %v4471
    %v4600 = vmul.f32 %v4472, %v4472
    %v4601 = vmul.f32 %v4473, %v4473
    %v4602 = vmul.f32 %v4474, %v4474
    %v4603 = vmul.f32 %v4475, %v4475
    %v4604 = vmul.f32 %v4476, %v4476
    %v4605 = vadd.f32 %v4477, %v4478
    %4606 = vadd.xlane.f32.xlu0 %v4605
    %v4607 = vpop.xlane.xlu0 %4606
    %v4608 = vadd.f32 %v4479, %v4480
    %4609 = vadd.xlane.f32.xlu0 %v4608
    %v4610 = vpop.xlane.xlu0 %4609
    %v4611 = vadd.f32 %v4481, %v4482
    %4612 = vadd.xlane.f32.xlu0 %v4611
    %v4613 = vpop.xlane.xlu0 %4612
    %v4614 = vadd.f32 %v4483, %v4484
    %4615 = vadd.xlane.f32.xlu0 %v4614
    %v4616 = vpop.xlane.xlu0 %4615
    %v4617 = vadd.f32 %v4485, %v4486
    %4618 = vadd.xlane.f32.xlu0 %v4617
    %v4619 = vpop.xlane.xlu0 %4618
    %v4620 = vadd.f32 %v4487, %v4488
    %4621 = vadd.xlane.f32.xlu0 %v4620
    %v4622 = vpop.xlane.xlu0 %4621
    %v4623 = vadd.f32 %v4489, %v4490
    %4624 = vadd.xlane.f32.xlu0 %v4623
    %v4625 = vpop.xlane.xlu0 %4624
    %v4626 = vadd.f32 %v4491, %v4492
    %4627 = vadd.xlane.f32.xlu0 %v4626
    %v4628 = vpop.xlane.xlu0 %4627
    %v4629 = vadd.f32 %v4493, %v4494
    %4630 = vadd.xlane.f32.xlu0 %v4629
    %v4631 = vpop.xlane.xlu0 %4630
    %v4632 = vadd.f32 %v4495, %v4496
    %4633 = vadd.xlane.f32.xlu0 %v4632
    %v4634 = vpop.xlane.xlu0 %4633
    %v4635 = vadd.f32 %v4497, %v4498
    %4636 = vadd.xlane.f32.xlu0 %v4635
    %v4637 = vpop.xlane.xlu0 %4636
    %v4638 = vadd.f32 %v4499, %v4500
    %4639 = vadd.xlane.f32.xlu0 %v4638
    %v4640 = vpop.xlane.xlu0 %4639
    %v4641 = vadd.f32 %v4501, %v4502
    %4642 = vadd.xlane.f32.xlu0 %v4641
    %v4643 = vpop.xlane.xlu0 %4642
    %v4644 = vadd.f32 %v4503, %v4504
    %4645 = vadd.xlane.f32.xlu0 %v4644
    %v4646 = vpop.xlane.xlu0 %4645
    %v4647 = vadd.f32 %v4505, %v4506
    %4648 = vadd.xlane.f32.xlu0 %v4647
    %v4649 = vpop.xlane.xlu0 %4648
    %v4650 = vadd.f32 %v4507, %v4508
    %4651 = vadd.xlane.f32.xlu0 %v4650
    %v4652 = vpop.xlane.xlu0 %4651
    %v4653 = vadd.f32 %v4509, %v4510
    %4654 = vadd.xlane.f32.xlu0 %v4653
    %v4655 = vpop.xlane.xlu0 %4654
    %v4656 = vadd.f32 %v4511, %v4512
    %4657 = vadd.xlane.f32.xlu0 %v4656
    %v4658 = vpop.xlane.xlu0 %4657
    %v4659 = vadd.f32 %v4513, %v4514
    %4660 = vadd.xlane.f32.xlu0 %v4659
    %v4661 = vpop.xlane.xlu0 %4660
    %v4662 = vadd.f32 %v4515, %v4516
    %4663 = vadd.xlane.f32.xlu0 %v4662
    %v4664 = vpop.xlane.xlu0 %4663
    %v4665 = vadd.f32 %v4517, %v4518
    %4666 = vadd.xlane.f32.xlu0 %v4665
    %v4667 = vpop.xlane.xlu0 %4666
    %v4668 = vadd.f32 %v4519, %v4520
    %4669 = vadd.xlane.f32.xlu0 %v4668
    %v4670 = vpop.xlane.xlu0 %4669
    %v4671 = vadd.f32 %v4521, %v4522
    %4672 = vadd.xlane.f32.xlu0 %v4671
    %v4673 = vpop.xlane.xlu0 %4672
    %v4674 = vadd.f32 %v4523, %v4524
    %4675 = vadd.xlane.f32.xlu0 %v4674
    %v4676 = vpop.xlane.xlu0 %4675
    %v4677 = vadd.f32 %v4525, %v4526
    %4678 = vadd.xlane.f32.xlu0 %v4677
    %v4679 = vpop.xlane.xlu0 %4678
    %v4680 = vadd.f32 %v4527, %v4528
    %4681 = vadd.xlane.f32.xlu0 %v4680
    %v4682 = vpop.xlane.xlu0 %4681
    %v4683 = vadd.f32 %v4529, %v4530
    %4684 = vadd.xlane.f32.xlu0 %v4683
    %v4685 = vpop.xlane.xlu0 %4684
    %v4686 = vadd.f32 %v4531, %v4532
    %4687 = vadd.xlane.f32.xlu0 %v4686
    %v4688 = vpop.xlane.xlu0 %4687
    %v4689 = vadd.f32 %v4533, %v4534
    %4690 = vadd.xlane.f32.xlu0 %v4689
    %v4691 = vpop.xlane.xlu0 %4690
    %v4692 = vadd.f32 %v4535, %v4536
    %4693 = vadd.xlane.f32.xlu0 %v4692
    %v4694 = vpop.xlane.xlu0 %4693
    %v4695 = vadd.f32 %v4537, %v4538
    %4696 = vadd.xlane.f32.xlu0 %v4695
    %v4697 = vpop.xlane.xlu0 %4696
    %v4698 = vadd.f32 %v4539, %v4540
    %4699 = vadd.xlane.f32.xlu0 %v4698
    %v4700 = vpop.xlane.xlu0 %4699
    %v4701 = vadd.f32 %v4541, %v4542
    %4702 = vadd.xlane.f32.xlu0 %v4701
    %v4703 = vpop.xlane.xlu0 %4702
    %v4704 = vadd.f32 %v4543, %v4544
    %4705 = vadd.xlane.f32.xlu0 %v4704
    %v4706 = vpop.xlane.xlu0 %4705
    %v4707 = vadd.f32 %v4545, %v4546
    %4708 = vadd.xlane.f32.xlu0 %v4707
    %v4709 = vpop.xlane.xlu0 %4708
    %v4710 = vadd.f32 %v4547, %v4548
    %4711 = vadd.xlane.f32.xlu0 %v4710
    %v4712 = vpop.xlane.xlu0 %4711
    %v4713 = vadd.f32 %v4549, %v4550
    %4714 = vadd.xlane.f32.xlu0 %v4713
    %v4715 = vpop.xlane.xlu0 %4714
    %v4716 = vadd.f32 %v4551, %v4552
    %4717 = vadd.xlane.f32.xlu0 %v4716
    %v4718 = vpop.xlane.xlu0 %4717
    %v4719 = vadd.f32 %v4553, %v4554
    %4720 = vadd.xlane.f32.xlu0 %v4719
    %v4721 = vpop.xlane.xlu0 %4720
    %v4722 = vadd.f32 %v4555, %v4556
    %4723 = vadd.xlane.f32.xlu0 %v4722
    %v4724 = vpop.xlane.xlu0 %4723
    %v4725 = vadd.f32 %v4557, %v4558
    %4726 = vadd.xlane.f32.xlu0 %v4725
    %v4727 = vpop.xlane.xlu0 %4726
    %v4728 = vadd.f32 %v4559, %v4560
    %4729 = vadd.xlane.f32.xlu0 %v4728
    %v4730 = vpop.xlane.xlu0 %4729
    %v4731 = vadd.f32 %v4561, %v4562
    %4732 = vadd.xlane.f32.xlu0 %v4731
    %v4733 = vpop.xlane.xlu0 %4732
    %v4734 = vadd.f32 %v4563, %v4564
    %4735 = vadd.xlane.f32.xlu0 %v4734
    %v4736 = vpop.xlane.xlu0 %4735
    %v4737 = vadd.f32 %v4565, %v4566
    %4738 = vadd.xlane.f32.xlu0 %v4737
    %v4739 = vpop.xlane.xlu0 %4738
    %v4740 = vadd.f32 %v4567, %v4568
    %4741 = vadd.xlane.f32.xlu0 %v4740
    %v4742 = vpop.xlane.xlu0 %4741
    %v4743 = vadd.f32 %v4569, %v4570
    %4744 = vadd.xlane.f32.xlu0 %v4743
    %v4745 = vpop.xlane.xlu0 %4744
    %v4746 = vadd.f32 %v4571, %v4572
    %4747 = vadd.xlane.f32.xlu0 %v4746
    %v4748 = vpop.xlane.xlu0 %4747
    %v4749 = vadd.f32 %v4573, %v4574
    %4750 = vadd.xlane.f32.xlu0 %v4749
    %v4751 = vpop.xlane.xlu0 %4750
    %v4752 = vadd.f32 %v4575, %v4576
    %4753 = vadd.xlane.f32.xlu0 %v4752
    %v4754 = vpop.xlane.xlu0 %4753
    %v4755 = vadd.f32 %v4577, %v4578
    %4756 = vadd.xlane.f32.xlu0 %v4755
    %v4757 = vpop.xlane.xlu0 %4756
    %v4758 = vadd.f32 %v4579, %v4580
    %4759 = vadd.xlane.f32.xlu0 %v4758
    %v4760 = vpop.xlane.xlu0 %4759
    %v4761 = vadd.f32 %v4581, %v4582
    %4762 = vadd.xlane.f32.xlu0 %v4761
    %v4763 = vpop.xlane.xlu0 %4762
    %v4764 = vadd.f32 %v4583, %v4584
    %4765 = vadd.xlane.f32.xlu0 %v4764
    %v4766 = vpop.xlane.xlu0 %4765
    %v4767 = vadd.f32 %v4585, %v4586
    %4768 = vadd.xlane.f32.xlu0 %v4767
    %v4769 = vpop.xlane.xlu0 %4768
    %v4770 = vadd.f32 %v4587, %v4588
    %4771 = vadd.xlane.f32.xlu0 %v4770
    %v4772 = vpop.xlane.xlu0 %4771
    %v4773 = vadd.f32 %v4589, %v4590
    %4774 = vadd.xlane.f32.xlu0 %v4773
    %v4775 = vpop.xlane.xlu0 %4774
    %v4776 = vadd.f32 %v4591, %v4592
    %4777 = vadd.xlane.f32.xlu0 %v4776
    %v4778 = vpop.xlane.xlu0 %4777
    %v4779 = vadd.f32 %v4593, %v4594
    %4780 = vadd.xlane.f32.xlu0 %v4779
    %v4781 = vpop.xlane.xlu0 %4780
    %v4782 = vadd.f32 %v4595, %v4596
    %4783 = vadd.xlane.f32.xlu0 %v4782
    %v4784 = vpop.xlane.xlu0 %4783
    %v4785 = vadd.f32 %v4597, %v4598
    %4786 = vadd.xlane.f32.xlu0 %v4785
    %v4787 = vpop.xlane.xlu0 %4786
    %v4788 = vadd.f32 %v4599, %v4600
    %4789 = vadd.xlane.f32.xlu0 %v4788
    %v4790 = vpop.xlane.xlu0 %4789
    %v4791 = vadd.f32 %v4601, %v4602
    %4792 = vadd.xlane.f32.xlu0 %v4791
    %v4793 = vpop.xlane.xlu0 %4792
    %v4794 = vadd.f32 %v4603, %v4604
    %4795 = vadd.xlane.f32.xlu0 %v4794
    %v4796 = vpop.xlane.xlu0 %4795
    %v4797 = vmul.f32 %v4607, %v1353
    %v4798 = vmul.f32 %v4610, %v1353
    %v4799 = vmul.f32 %v4613, %v1353
    %v4800 = vmul.f32 %v4616, %v1353
    %v4801 = vmul.f32 %v4619, %v1353
    %v4802 = vmul.f32 %v4622, %v1353
    %v4803 = vmul.f32 %v4625, %v1353
    %v4804 = vmul.f32 %v4628, %v1353
    %v4805 = vmul.f32 %v4631, %v1353
    %v4806 = vmul.f32 %v4634, %v1353
    %v4807 = vmul.f32 %v4637, %v1353
    %v4808 = vmul.f32 %v4640, %v1353
    %v4809 = vmul.f32 %v4643, %v1353
    %v4810 = vmul.f32 %v4646, %v1353
    %v4811 = vmul.f32 %v4649, %v1353
    %v4812 = vmul.f32 %v4652, %v1353
    %v4813 = vmul.f32 %v4655, %v1353
    %v4814 = vmul.f32 %v4658, %v1353
    %v4815 = vmul.f32 %v4661, %v1353
    %v4816 = vmul.f32 %v4664, %v1353
    %v4817 = vmul.f32 %v4667, %v1353
    %v4818 = vmul.f32 %v4670, %v1353
    %v4819 = vmul.f32 %v4673, %v1353
    %v4820 = vmul.f32 %v4676, %v1353
    %v4821 = vmul.f32 %v4679, %v1353
    %v4822 = vmul.f32 %v4682, %v1353
    %v4823 = vmul.f32 %v4685, %v1353
    %v4824 = vmul.f32 %v4688, %v1353
    %v4825 = vmul.f32 %v4691, %v1353
    %v4826 = vmul.f32 %v4694, %v1353
    %v4827 = vmul.f32 %v4697, %v1353
    %v4828 = vmul.f32 %v4700, %v1353
    %v4829 = vmul.f32 %v4703, %v1353
    %v4830 = vmul.f32 %v4706, %v1353
    %v4831 = vmul.f32 %v4709, %v1353
    %v4832 = vmul.f32 %v4712, %v1353
    %v4833 = vmul.f32 %v4715, %v1353
    %v4834 = vmul.f32 %v4718, %v1353
    %v4835 = vmul.f32 %v4721, %v1353
    %v4836 = vmul.f32 %v4724, %v1353
    %v4837 = vmul.f32 %v4727, %v1353
    %v4838 = vmul.f32 %v4730, %v1353
    %v4839 = vmul.f32 %v4733, %v1353
    %v4840 = vmul.f32 %v4736, %v1353
    %v4841 = vmul.f32 %v4739, %v1353
    %v4842 = vmul.f32 %v4742, %v1353
    %v4843 = vmul.f32 %v4745, %v1353
    %v4844 = vmul.f32 %v4748, %v1353
    %v4845 = vmul.f32 %v4751, %v1353
    %v4846 = vmul.f32 %v4754, %v1353
    %v4847 = vmul.f32 %v4757, %v1353
    %v4848 = vmul.f32 %v4760, %v1353
    %v4849 = vmul.f32 %v4763, %v1353
    %v4850 = vmul.f32 %v4766, %v1353
    %v4851 = vmul.f32 %v4769, %v1353
    %v4852 = vmul.f32 %v4772, %v1353
    %v4853 = vmul.f32 %v4775, %v1353
    %v4854 = vmul.f32 %v4778, %v1353
    %v4855 = vmul.f32 %v4781, %v1353
    %v4856 = vmul.f32 %v4784, %v1353
    %v4857 = vmul.f32 %v4787, %v1353
    %v4858 = vmul.f32 %v4790, %v1353
    %v4859 = vmul.f32 %v4793, %v1353
    %v4860 = vmul.f32 %v4796, %v1353
    %v4861 = vadd.f32 %v4797, 1e-05
    %v4862 = vadd.f32 %v4798, 1e-05
    %v4863 = vadd.f32 %v4799, 1e-05
    %v4864 = vadd.f32 %v4800, 1e-05
    %v4865 = vadd.f32 %v4801, 1e-05
    %v4866 = vadd.f32 %v4802, 1e-05
    %v4867 = vadd.f32 %v4803, 1e-05
    %v4868 = vadd.f32 %v4804, 1e-05
    %v4869 = vadd.f32 %v4805, 1e-05
    %v4870 = vadd.f32 %v4806, 1e-05
    %v4871 = vadd.f32 %v4807, 1e-05
    %v4872 = vadd.f32 %v4808, 1e-05
    %v4873 = vadd.f32 %v4809, 1e-05
    %v4874 = vadd.f32 %v4810, 1e-05
    %v4875 = vadd.f32 %v4811, 1e-05
    %v4876 = vadd.f32 %v4812, 1e-05
    %v4877 = vadd.f32 %v4813, 1e-05
    %v4878 = vadd.f32 %v4814, 1e-05
    %v4879 = vadd.f32 %v4815, 1e-05
    %v4880 = vadd.f32 %v4816, 1e-05
    %v4881 = vadd.f32 %v4817, 1e-05
    %v4882 = vadd.f32 %v4818, 1e-05
    %v4883 = vadd.f32 %v4819, 1e-05
    %v4884 = vadd.f32 %v4820, 1e-05
    %v4885 = vadd.f32 %v4821, 1e-05
    %v4886 = vadd.f32 %v4822, 1e-05
    %v4887 = vadd.f32 %v4823, 1e-05
    %v4888 = vadd.f32 %v4824, 1e-05
    %v4889 = vadd.f32 %v4825, 1e-05
    %v4890 = vadd.f32 %v4826, 1e-05
    %v4891 = vadd.f32 %v4827, 1e-05
    %v4892 = vadd.f32 %v4828, 1e-05
    %v4893 = vadd.f32 %v4829, 1e-05
    %v4894 = vadd.f32 %v4830, 1e-05
    %v4895 = vadd.f32 %v4831, 1e-05
    %v4896 = vadd.f32 %v4832, 1e-05
    %v4897 = vadd.f32 %v4833, 1e-05
    %v4898 = vadd.f32 %v4834, 1e-05
    %v4899 = vadd.f32 %v4835, 1e-05
    %v4900 = vadd.f32 %v4836, 1e-05
    %v4901 = vadd.f32 %v4837, 1e-05
    %v4902 = vadd.f32 %v4838, 1e-05
    %v4903 = vadd.f32 %v4839, 1e-05
    %v4904 = vadd.f32 %v4840, 1e-05
    %v4905 = vadd.f32 %v4841, 1e-05
    %v4906 = vadd.f32 %v4842, 1e-05
    %v4907 = vadd.f32 %v4843, 1e-05
    %v4908 = vadd.f32 %v4844, 1e-05
    %v4909 = vadd.f32 %v4845, 1e-05
    %v4910 = vadd.f32 %v4846, 1e-05
    %v4911 = vadd.f32 %v4847, 1e-05
    %v4912 = vadd.f32 %v4848, 1e-05
    %v4913 = vadd.f32 %v4849, 1e-05
    %v4914 = vadd.f32 %v4850, 1e-05
    %v4915 = vadd.f32 %v4851, 1e-05
    %v4916 = vadd.f32 %v4852, 1e-05
    %v4917 = vadd.f32 %v4853, 1e-05
    %v4918 = vadd.f32 %v4854, 1e-05
    %v4919 = vadd.f32 %v4855, 1e-05
    %v4920 = vadd.f32 %v4856, 1e-05
    %v4921 = vadd.f32 %v4857, 1e-05
    %v4922 = vadd.f32 %v4858, 1e-05
    %v4923 = vadd.f32 %v4859, 1e-05
    %v4924 = vadd.f32 %v4860, 1e-05
    %v4925 = vrsqrt.pop %v4861
    %v4926 = vmul.f32 %v4925, %v4861
    %v4927 = vmul.f32 %v4926, %v4925
    %v4928 = vmul.f32 0.5, %v4927
    %v4929 = vsub.f32 1.5, %v4928
    %v4930 = vmul.f32 %v4925, %v4929
    %vm4931 = vweird.f32 %v4861
    %vm4932 = vweird.f32 %v4925
    %vm4933 = vmor %vm4931, %vm4932
    %v4934 = vsel %vm4933, %v4925, %v4930
    %v4935 = vrsqrt.pop %v4862
    %v4936 = vmul.f32 %v4935, %v4862
    %v4937 = vmul.f32 %v4936, %v4935
    %v4938 = vmul.f32 0.5, %v4937
    %v4939 = vsub.f32 1.5, %v4938
    %v4940 = vmul.f32 %v4935, %v4939
    %vm4941 = vweird.f32 %v4862
    %vm4942 = vweird.f32 %v4935
    %vm4943 = vmor %vm4941, %vm4942
    %v4944 = vsel %vm4943, %v4935, %v4940
    %v4945 = vrsqrt.pop %v4863
    %v4946 = vmul.f32 %v4945, %v4863
    %v4947 = vmul.f32 %v4946, %v4945
    %v4948 = vmul.f32 0.5, %v4947
    %v4949 = vsub.f32 1.5, %v4948
    %v4950 = vmul.f32 %v4945, %v4949
    %vm4951 = vweird.f32 %v4863
    %vm4952 = vweird.f32 %v4945
    %vm4953 = vmor %vm4951, %vm4952
    %v4954 = vsel %vm4953, %v4945, %v4950
    %v4955 = vrsqrt.pop %v4864
    %v4956 = vmul.f32 %v4955, %v4864
    %v4957 = vmul.f32 %v4956, %v4955
    %v4958 = vmul.f32 0.5, %v4957
    %v4959 = vsub.f32 1.5, %v4958
    %v4960 = vmul.f32 %v4955, %v4959
    %vm4961 = vweird.f32 %v4864
    %vm4962 = vweird.f32 %v4955
    %vm4963 = vmor %vm4961, %vm4962
    %v4964 = vsel %vm4963, %v4955, %v4960
    %v4965 = vrsqrt.pop %v4865
    %v4966 = vmul.f32 %v4965, %v4865
    %v4967 = vmul.f32 %v4966, %v4965
    %v4968 = vmul.f32 0.5, %v4967
    %v4969 = vsub.f32 1.5, %v4968
    %v4970 = vmul.f32 %v4965, %v4969
    %vm4971 = vweird.f32 %v4865
    %vm4972 = vweird.f32 %v4965
    %vm4973 = vmor %vm4971, %vm4972
    %v4974 = vsel %vm4973, %v4965, %v4970
    %v4975 = vrsqrt.pop %v4866
    %v4976 = vmul.f32 %v4975, %v4866
    %v4977 = vmul.f32 %v4976, %v4975
    %v4978 = vmul.f32 0.5, %v4977
    %v4979 = vsub.f32 1.5, %v4978
    %v4980 = vmul.f32 %v4975, %v4979
    %vm4981 = vweird.f32 %v4866
    %vm4982 = vweird.f32 %v4975
    %vm4983 = vmor %vm4981, %vm4982
    %v4984 = vsel %vm4983, %v4975, %v4980
    %v4985 = vrsqrt.pop %v4867
    %v4986 = vmul.f32 %v4985, %v4867
    %v4987 = vmul.f32 %v4986, %v4985
    %v4988 = vmul.f32 0.5, %v4987
    %v4989 = vsub.f32 1.5, %v4988
    %v4990 = vmul.f32 %v4985, %v4989
    %vm4991 = vweird.f32 %v4867
    %vm4992 = vweird.f32 %v4985
    %vm4993 = vmor %vm4991, %vm4992
    %v4994 = vsel %vm4993, %v4985, %v4990
    %v4995 = vrsqrt.pop %v4868
    %v4996 = vmul.f32 %v4995, %v4868
    %v4997 = vmul.f32 %v4996, %v4995
    %v4998 = vmul.f32 0.5, %v4997
    %v4999 = vsub.f32 1.5, %v4998
    %v5000 = vmul.f32 %v4995, %v4999
    %vm5001 = vweird.f32 %v4868
    %vm5002 = vweird.f32 %v4995
    %vm5003 = vmor %vm5001, %vm5002
    %v5004 = vsel %vm5003, %v4995, %v5000
    %v5005 = vrsqrt.pop %v4869
    %v5006 = vmul.f32 %v5005, %v4869
    %v5007 = vmul.f32 %v5006, %v5005
    %v5008 = vmul.f32 0.5, %v5007
    %v5009 = vsub.f32 1.5, %v5008
    %v5010 = vmul.f32 %v5005, %v5009
    %vm5011 = vweird.f32 %v4869
    %vm5012 = vweird.f32 %v5005
    %vm5013 = vmor %vm5011, %vm5012
    %v5014 = vsel %vm5013, %v5005, %v5010
    %v5015 = vrsqrt.pop %v4870
    %v5016 = vmul.f32 %v5015, %v4870
    %v5017 = vmul.f32 %v5016, %v5015
    %v5018 = vmul.f32 0.5, %v5017
    %v5019 = vsub.f32 1.5, %v5018
    %v5020 = vmul.f32 %v5015, %v5019
    %vm5021 = vweird.f32 %v4870
    %vm5022 = vweird.f32 %v5015
    %vm5023 = vmor %vm5021, %vm5022
    %v5024 = vsel %vm5023, %v5015, %v5020
    %v5025 = vrsqrt.pop %v4871
    %v5026 = vmul.f32 %v5025, %v4871
    %v5027 = vmul.f32 %v5026, %v5025
    %v5028 = vmul.f32 0.5, %v5027
    %v5029 = vsub.f32 1.5, %v5028
    %v5030 = vmul.f32 %v5025, %v5029
    %vm5031 = vweird.f32 %v4871
    %vm5032 = vweird.f32 %v5025
    %vm5033 = vmor %vm5031, %vm5032
    %v5034 = vsel %vm5033, %v5025, %v5030
    %v5035 = vrsqrt.pop %v4872
    %v5036 = vmul.f32 %v5035, %v4872
    %v5037 = vmul.f32 %v5036, %v5035
    %v5038 = vmul.f32 0.5, %v5037
    %v5039 = vsub.f32 1.5, %v5038
    %v5040 = vmul.f32 %v5035, %v5039
    %vm5041 = vweird.f32 %v4872
    %vm5042 = vweird.f32 %v5035
    %vm5043 = vmor %vm5041, %vm5042
    %v5044 = vsel %vm5043, %v5035, %v5040
    %v5045 = vrsqrt.pop %v4873
    %v5046 = vmul.f32 %v5045, %v4873
    %v5047 = vmul.f32 %v5046, %v5045
    %v5048 = vmul.f32 0.5, %v5047
    %v5049 = vsub.f32 1.5, %v5048
    %v5050 = vmul.f32 %v5045, %v5049
    %vm5051 = vweird.f32 %v4873
    %vm5052 = vweird.f32 %v5045
    %vm5053 = vmor %vm5051, %vm5052
    %v5054 = vsel %vm5053, %v5045, %v5050
    %v5055 = vrsqrt.pop %v4874
    %v5056 = vmul.f32 %v5055, %v4874
    %v5057 = vmul.f32 %v5056, %v5055
    %v5058 = vmul.f32 0.5, %v5057
    %v5059 = vsub.f32 1.5, %v5058
    %v5060 = vmul.f32 %v5055, %v5059
    %vm5061 = vweird.f32 %v4874
    %vm5062 = vweird.f32 %v5055
    %vm5063 = vmor %vm5061, %vm5062
    %v5064 = vsel %vm5063, %v5055, %v5060
    %v5065 = vrsqrt.pop %v4875
    %v5066 = vmul.f32 %v5065, %v4875
    %v5067 = vmul.f32 %v5066, %v5065
    %v5068 = vmul.f32 0.5, %v5067
    %v5069 = vsub.f32 1.5, %v5068
    %v5070 = vmul.f32 %v5065, %v5069
    %vm5071 = vweird.f32 %v4875
    %vm5072 = vweird.f32 %v5065
    %vm5073 = vmor %vm5071, %vm5072
    %v5074 = vsel %vm5073, %v5065, %v5070
    %v5075 = vrsqrt.pop %v4876
    %v5076 = vmul.f32 %v5075, %v4876
    %v5077 = vmul.f32 %v5076, %v5075
    %v5078 = vmul.f32 0.5, %v5077
    %v5079 = vsub.f32 1.5, %v5078
    %v5080 = vmul.f32 %v5075, %v5079
    %vm5081 = vweird.f32 %v4876
    %vm5082 = vweird.f32 %v5075
    %vm5083 = vmor %vm5081, %vm5082
    %v5084 = vsel %vm5083, %v5075, %v5080
    %v5085 = vrsqrt.pop %v4877
    %v5086 = vmul.f32 %v5085, %v4877
    %v5087 = vmul.f32 %v5086, %v5085
    %v5088 = vmul.f32 0.5, %v5087
    %v5089 = vsub.f32 1.5, %v5088
    %v5090 = vmul.f32 %v5085, %v5089
    %vm5091 = vweird.f32 %v4877
    %vm5092 = vweird.f32 %v5085
    %vm5093 = vmor %vm5091, %vm5092
    %v5094 = vsel %vm5093, %v5085, %v5090
    %v5095 = vrsqrt.pop %v4878
    %v5096 = vmul.f32 %v5095, %v4878
    %v5097 = vmul.f32 %v5096, %v5095
    %v5098 = vmul.f32 0.5, %v5097
    %v5099 = vsub.f32 1.5, %v5098
    %v5100 = vmul.f32 %v5095, %v5099
    %vm5101 = vweird.f32 %v4878
    %vm5102 = vweird.f32 %v5095
    %vm5103 = vmor %vm5101, %vm5102
    %v5104 = vsel %vm5103, %v5095, %v5100
    %v5105 = vrsqrt.pop %v4879
    %v5106 = vmul.f32 %v5105, %v4879
    %v5107 = vmul.f32 %v5106, %v5105
    %v5108 = vmul.f32 0.5, %v5107
    %v5109 = vsub.f32 1.5, %v5108
    %v5110 = vmul.f32 %v5105, %v5109
    %vm5111 = vweird.f32 %v4879
    %vm5112 = vweird.f32 %v5105
    %vm5113 = vmor %vm5111, %vm5112
    %v5114 = vsel %vm5113, %v5105, %v5110
    %v5115 = vrsqrt.pop %v4880
    %v5116 = vmul.f32 %v5115, %v4880
    %v5117 = vmul.f32 %v5116, %v5115
    %v5118 = vmul.f32 0.5, %v5117
    %v5119 = vsub.f32 1.5, %v5118
    %v5120 = vmul.f32 %v5115, %v5119
    %vm5121 = vweird.f32 %v4880
    %vm5122 = vweird.f32 %v5115
    %vm5123 = vmor %vm5121, %vm5122
    %v5124 = vsel %vm5123, %v5115, %v5120
    %v5125 = vrsqrt.pop %v4881
    %v5126 = vmul.f32 %v5125, %v4881
    %v5127 = vmul.f32 %v5126, %v5125
    %v5128 = vmul.f32 0.5, %v5127
    %v5129 = vsub.f32 1.5, %v5128
    %v5130 = vmul.f32 %v5125, %v5129
    %vm5131 = vweird.f32 %v4881
    %vm5132 = vweird.f32 %v5125
    %vm5133 = vmor %vm5131, %vm5132
    %v5134 = vsel %vm5133, %v5125, %v5130
    %v5135 = vrsqrt.pop %v4882
    %v5136 = vmul.f32 %v5135, %v4882
    %v5137 = vmul.f32 %v5136, %v5135
    %v5138 = vmul.f32 0.5, %v5137
    %v5139 = vsub.f32 1.5, %v5138
    %v5140 = vmul.f32 %v5135, %v5139
    %vm5141 = vweird.f32 %v4882
    %vm5142 = vweird.f32 %v5135
    %vm5143 = vmor %vm5141, %vm5142
    %v5144 = vsel %vm5143, %v5135, %v5140
    %v5145 = vrsqrt.pop %v4883
    %v5146 = vmul.f32 %v5145, %v4883
    %v5147 = vmul.f32 %v5146, %v5145
    %v5148 = vmul.f32 0.5, %v5147
    %v5149 = vsub.f32 1.5, %v5148
    %v5150 = vmul.f32 %v5145, %v5149
    %vm5151 = vweird.f32 %v4883
    %vm5152 = vweird.f32 %v5145
    %vm5153 = vmor %vm5151, %vm5152
    %v5154 = vsel %vm5153, %v5145, %v5150
    %v5155 = vrsqrt.pop %v4884
    %v5156 = vmul.f32 %v5155, %v4884
    %v5157 = vmul.f32 %v5156, %v5155
    %v5158 = vmul.f32 0.5, %v5157
    %v5159 = vsub.f32 1.5, %v5158
    %v5160 = vmul.f32 %v5155, %v5159
    %vm5161 = vweird.f32 %v4884
    %vm5162 = vweird.f32 %v5155
    %vm5163 = vmor %vm5161, %vm5162
    %v5164 = vsel %vm5163, %v5155, %v5160
    %v5165 = vrsqrt.pop %v4885
    %v5166 = vmul.f32 %v5165, %v4885
    %v5167 = vmul.f32 %v5166, %v5165
    %v5168 = vmul.f32 0.5, %v5167
    %v5169 = vsub.f32 1.5, %v5168
    %v5170 = vmul.f32 %v5165, %v5169
    %vm5171 = vweird.f32 %v4885
    %vm5172 = vweird.f32 %v5165
    %vm5173 = vmor %vm5171, %vm5172
    %v5174 = vsel %vm5173, %v5165, %v5170
    %v5175 = vrsqrt.pop %v4886
    %v5176 = vmul.f32 %v5175, %v4886
    %v5177 = vmul.f32 %v5176, %v5175
    %v5178 = vmul.f32 0.5, %v5177
    %v5179 = vsub.f32 1.5, %v5178
    %v5180 = vmul.f32 %v5175, %v5179
    %vm5181 = vweird.f32 %v4886
    %vm5182 = vweird.f32 %v5175
    %vm5183 = vmor %vm5181, %vm5182
    %v5184 = vsel %vm5183, %v5175, %v5180
    %v5185 = vrsqrt.pop %v4887
    %v5186 = vmul.f32 %v5185, %v4887
    %v5187 = vmul.f32 %v5186, %v5185
    %v5188 = vmul.f32 0.5, %v5187
    %v5189 = vsub.f32 1.5, %v5188
    %v5190 = vmul.f32 %v5185, %v5189
    %vm5191 = vweird.f32 %v4887
    %vm5192 = vweird.f32 %v5185
    %vm5193 = vmor %vm5191, %vm5192
    %v5194 = vsel %vm5193, %v5185, %v5190
    %v5195 = vrsqrt.pop %v4888
    %v5196 = vmul.f32 %v5195, %v4888
    %v5197 = vmul.f32 %v5196, %v5195
    %v5198 = vmul.f32 0.5, %v5197
    %v5199 = vsub.f32 1.5, %v5198
    %v5200 = vmul.f32 %v5195, %v5199
    %vm5201 = vweird.f32 %v4888
    %vm5202 = vweird.f32 %v5195
    %vm5203 = vmor %vm5201, %vm5202
    %v5204 = vsel %vm5203, %v5195, %v5200
    %v5205 = vrsqrt.pop %v4889
    %v5206 = vmul.f32 %v5205, %v4889
    %v5207 = vmul.f32 %v5206, %v5205
    %v5208 = vmul.f32 0.5, %v5207
    %v5209 = vsub.f32 1.5, %v5208
    %v5210 = vmul.f32 %v5205, %v5209
    %vm5211 = vweird.f32 %v4889
    %vm5212 = vweird.f32 %v5205
    %vm5213 = vmor %vm5211, %vm5212
    %v5214 = vsel %vm5213, %v5205, %v5210
    %v5215 = vrsqrt.pop %v4890
    %v5216 = vmul.f32 %v5215, %v4890
    %v5217 = vmul.f32 %v5216, %v5215
    %v5218 = vmul.f32 0.5, %v5217
    %v5219 = vsub.f32 1.5, %v5218
    %v5220 = vmul.f32 %v5215, %v5219
    %vm5221 = vweird.f32 %v4890
    %vm5222 = vweird.f32 %v5215
    %vm5223 = vmor %vm5221, %vm5222
    %v5224 = vsel %vm5223, %v5215, %v5220
    %v5225 = vrsqrt.pop %v4891
    %v5226 = vmul.f32 %v5225, %v4891
    %v5227 = vmul.f32 %v5226, %v5225
    %v5228 = vmul.f32 0.5, %v5227
    %v5229 = vsub.f32 1.5, %v5228
    %v5230 = vmul.f32 %v5225, %v5229
    %vm5231 = vweird.f32 %v4891
    %vm5232 = vweird.f32 %v5225
    %vm5233 = vmor %vm5231, %vm5232
    %v5234 = vsel %vm5233, %v5225, %v5230
    %v5235 = vrsqrt.pop %v4892
    %v5236 = vmul.f32 %v5235, %v4892
    %v5237 = vmul.f32 %v5236, %v5235
    %v5238 = vmul.f32 0.5, %v5237
    %v5239 = vsub.f32 1.5, %v5238
    %v5240 = vmul.f32 %v5235, %v5239
    %vm5241 = vweird.f32 %v4892
    %vm5242 = vweird.f32 %v5235
    %vm5243 = vmor %vm5241, %vm5242
    %v5244 = vsel %vm5243, %v5235, %v5240
    %v5245 = vrsqrt.pop %v4893
    %v5246 = vmul.f32 %v5245, %v4893
    %v5247 = vmul.f32 %v5246, %v5245
    %v5248 = vmul.f32 0.5, %v5247
    %v5249 = vsub.f32 1.5, %v5248
    %v5250 = vmul.f32 %v5245, %v5249
    %vm5251 = vweird.f32 %v4893
    %vm5252 = vweird.f32 %v5245
    %vm5253 = vmor %vm5251, %vm5252
    %v5254 = vsel %vm5253, %v5245, %v5250
    %v5255 = vrsqrt.pop %v4894
    %v5256 = vmul.f32 %v5255, %v4894
    %v5257 = vmul.f32 %v5256, %v5255
    %v5258 = vmul.f32 0.5, %v5257
    %v5259 = vsub.f32 1.5, %v5258
    %v5260 = vmul.f32 %v5255, %v5259
    %vm5261 = vweird.f32 %v4894
    %vm5262 = vweird.f32 %v5255
    %vm5263 = vmor %vm5261, %vm5262
    %v5264 = vsel %vm5263, %v5255, %v5260
    %v5265 = vrsqrt.pop %v4895
    %v5266 = vmul.f32 %v5265, %v4895
    %v5267 = vmul.f32 %v5266, %v5265
    %v5268 = vmul.f32 0.5, %v5267
    %v5269 = vsub.f32 1.5, %v5268
    %v5270 = vmul.f32 %v5265, %v5269
    %vm5271 = vweird.f32 %v4895
    %vm5272 = vweird.f32 %v5265
    %vm5273 = vmor %vm5271, %vm5272
    %v5274 = vsel %vm5273, %v5265, %v5270
    %v5275 = vrsqrt.pop %v4896
    %v5276 = vmul.f32 %v5275, %v4896
    %v5277 = vmul.f32 %v5276, %v5275
    %v5278 = vmul.f32 0.5, %v5277
    %v5279 = vsub.f32 1.5, %v5278
    %v5280 = vmul.f32 %v5275, %v5279
    %vm5281 = vweird.f32 %v4896
    %vm5282 = vweird.f32 %v5275
    %vm5283 = vmor %vm5281, %vm5282
    %v5284 = vsel %vm5283, %v5275, %v5280
    %v5285 = vrsqrt.pop %v4897
    %v5286 = vmul.f32 %v5285, %v4897
    %v5287 = vmul.f32 %v5286, %v5285
    %v5288 = vmul.f32 0.5, %v5287
    %v5289 = vsub.f32 1.5, %v5288
    %v5290 = vmul.f32 %v5285, %v5289
    %vm5291 = vweird.f32 %v4897
    %vm5292 = vweird.f32 %v5285
    %vm5293 = vmor %vm5291, %vm5292
    %v5294 = vsel %vm5293, %v5285, %v5290
    %v5295 = vrsqrt.pop %v4898
    %v5296 = vmul.f32 %v5295, %v4898
    %v5297 = vmul.f32 %v5296, %v5295
    %v5298 = vmul.f32 0.5, %v5297
    %v5299 = vsub.f32 1.5, %v5298
    %v5300 = vmul.f32 %v5295, %v5299
    %vm5301 = vweird.f32 %v4898
    %vm5302 = vweird.f32 %v5295
    %vm5303 = vmor %vm5301, %vm5302
    %v5304 = vsel %vm5303, %v5295, %v5300
    %v5305 = vrsqrt.pop %v4899
    %v5306 = vmul.f32 %v5305, %v4899
    %v5307 = vmul.f32 %v5306, %v5305
    %v5308 = vmul.f32 0.5, %v5307
    %v5309 = vsub.f32 1.5, %v5308
    %v5310 = vmul.f32 %v5305, %v5309
    %vm5311 = vweird.f32 %v4899
    %vm5312 = vweird.f32 %v5305
    %vm5313 = vmor %vm5311, %vm5312
    %v5314 = vsel %vm5313, %v5305, %v5310
    %v5315 = vrsqrt.pop %v4900
    %v5316 = vmul.f32 %v5315, %v4900
    %v5317 = vmul.f32 %v5316, %v5315
    %v5318 = vmul.f32 0.5, %v5317
    %v5319 = vsub.f32 1.5, %v5318
    %v5320 = vmul.f32 %v5315, %v5319
    %vm5321 = vweird.f32 %v4900
    %vm5322 = vweird.f32 %v5315
    %vm5323 = vmor %vm5321, %vm5322
    %v5324 = vsel %vm5323, %v5315, %v5320
    %v5325 = vrsqrt.pop %v4901
    %v5326 = vmul.f32 %v5325, %v4901
    %v5327 = vmul.f32 %v5326, %v5325
    %v5328 = vmul.f32 0.5, %v5327
    %v5329 = vsub.f32 1.5, %v5328
    %v5330 = vmul.f32 %v5325, %v5329
    %vm5331 = vweird.f32 %v4901
    %vm5332 = vweird.f32 %v5325
    %vm5333 = vmor %vm5331, %vm5332
    %v5334 = vsel %vm5333, %v5325, %v5330
    %v5335 = vrsqrt.pop %v4902
    %v5336 = vmul.f32 %v5335, %v4902
    %v5337 = vmul.f32 %v5336, %v5335
    %v5338 = vmul.f32 0.5, %v5337
    %v5339 = vsub.f32 1.5, %v5338
    %v5340 = vmul.f32 %v5335, %v5339
    %vm5341 = vweird.f32 %v4902
    %vm5342 = vweird.f32 %v5335
    %vm5343 = vmor %vm5341, %vm5342
    %v5344 = vsel %vm5343, %v5335, %v5340
    %v5345 = vrsqrt.pop %v4903
    %v5346 = vmul.f32 %v5345, %v4903
    %v5347 = vmul.f32 %v5346, %v5345
    %v5348 = vmul.f32 0.5, %v5347
    %v5349 = vsub.f32 1.5, %v5348
    %v5350 = vmul.f32 %v5345, %v5349
    %vm5351 = vweird.f32 %v4903
    %vm5352 = vweird.f32 %v5345
    %vm5353 = vmor %vm5351, %vm5352
    %v5354 = vsel %vm5353, %v5345, %v5350
    %v5355 = vrsqrt.pop %v4904
    %v5356 = vmul.f32 %v5355, %v4904
    %v5357 = vmul.f32 %v5356, %v5355
    %v5358 = vmul.f32 0.5, %v5357
    %v5359 = vsub.f32 1.5, %v5358
    %v5360 = vmul.f32 %v5355, %v5359
    %vm5361 = vweird.f32 %v4904
    %vm5362 = vweird.f32 %v5355
    %vm5363 = vmor %vm5361, %vm5362
    %v5364 = vsel %vm5363, %v5355, %v5360
    %v5365 = vrsqrt.pop %v4905
    %v5366 = vmul.f32 %v5365, %v4905
    %v5367 = vmul.f32 %v5366, %v5365
    %v5368 = vmul.f32 0.5, %v5367
    %v5369 = vsub.f32 1.5, %v5368
    %v5370 = vmul.f32 %v5365, %v5369
    %vm5371 = vweird.f32 %v4905
    %vm5372 = vweird.f32 %v5365
    %vm5373 = vmor %vm5371, %vm5372
    %v5374 = vsel %vm5373, %v5365, %v5370
    %v5375 = vrsqrt.pop %v4906
    %v5376 = vmul.f32 %v5375, %v4906
    %v5377 = vmul.f32 %v5376, %v5375
    %v5378 = vmul.f32 0.5, %v5377
    %v5379 = vsub.f32 1.5, %v5378
    %v5380 = vmul.f32 %v5375, %v5379
    %vm5381 = vweird.f32 %v4906
    %vm5382 = vweird.f32 %v5375
    %vm5383 = vmor %vm5381, %vm5382
    %v5384 = vsel %vm5383, %v5375, %v5380
    %v5385 = vrsqrt.pop %v4907
    %v5386 = vmul.f32 %v5385, %v4907
    %v5387 = vmul.f32 %v5386, %v5385
    %v5388 = vmul.f32 0.5, %v5387
    %v5389 = vsub.f32 1.5, %v5388
    %v5390 = vmul.f32 %v5385, %v5389
    %vm5391 = vweird.f32 %v4907
    %vm5392 = vweird.f32 %v5385
    %vm5393 = vmor %vm5391, %vm5392
    %v5394 = vsel %vm5393, %v5385, %v5390
    %v5395 = vrsqrt.pop %v4908
    %v5396 = vmul.f32 %v5395, %v4908
    %v5397 = vmul.f32 %v5396, %v5395
    %v5398 = vmul.f32 0.5, %v5397
    %v5399 = vsub.f32 1.5, %v5398
    %v5400 = vmul.f32 %v5395, %v5399
    %vm5401 = vweird.f32 %v4908
    %vm5402 = vweird.f32 %v5395
    %vm5403 = vmor %vm5401, %vm5402
    %v5404 = vsel %vm5403, %v5395, %v5400
    %v5405 = vrsqrt.pop %v4909
    %v5406 = vmul.f32 %v5405, %v4909
    %v5407 = vmul.f32 %v5406, %v5405
    %v5408 = vmul.f32 0.5, %v5407
    %v5409 = vsub.f32 1.5, %v5408
    %v5410 = vmul.f32 %v5405, %v5409
    %vm5411 = vweird.f32 %v4909
    %vm5412 = vweird.f32 %v5405
    %vm5413 = vmor %vm5411, %vm5412
    %v5414 = vsel %vm5413, %v5405, %v5410
    %v5415 = vrsqrt.pop %v4910
    %v5416 = vmul.f32 %v5415, %v4910
    %v5417 = vmul.f32 %v5416, %v5415
    %v5418 = vmul.f32 0.5, %v5417
    %v5419 = vsub.f32 1.5, %v5418
    %v5420 = vmul.f32 %v5415, %v5419
    %vm5421 = vweird.f32 %v4910
    %vm5422 = vweird.f32 %v5415
    %vm5423 = vmor %vm5421, %vm5422
    %v5424 = vsel %vm5423, %v5415, %v5420
    %v5425 = vrsqrt.pop %v4911
    %v5426 = vmul.f32 %v5425, %v4911
    %v5427 = vmul.f32 %v5426, %v5425
    %v5428 = vmul.f32 0.5, %v5427
    %v5429 = vsub.f32 1.5, %v5428
    %v5430 = vmul.f32 %v5425, %v5429
    %vm5431 = vweird.f32 %v4911
    %vm5432 = vweird.f32 %v5425
    %vm5433 = vmor %vm5431, %vm5432
    %v5434 = vsel %vm5433, %v5425, %v5430
    %v5435 = vrsqrt.pop %v4912
    %v5436 = vmul.f32 %v5435, %v4912
    %v5437 = vmul.f32 %v5436, %v5435
    %v5438 = vmul.f32 0.5, %v5437
    %v5439 = vsub.f32 1.5, %v5438
    %v5440 = vmul.f32 %v5435, %v5439
    %vm5441 = vweird.f32 %v4912
    %vm5442 = vweird.f32 %v5435
    %vm5443 = vmor %vm5441, %vm5442
    %v5444 = vsel %vm5443, %v5435, %v5440
    %v5445 = vrsqrt.pop %v4913
    %v5446 = vmul.f32 %v5445, %v4913
    %v5447 = vmul.f32 %v5446, %v5445
    %v5448 = vmul.f32 0.5, %v5447
    %v5449 = vsub.f32 1.5, %v5448
    %v5450 = vmul.f32 %v5445, %v5449
    %vm5451 = vweird.f32 %v4913
    %vm5452 = vweird.f32 %v5445
    %vm5453 = vmor %vm5451, %vm5452
    %v5454 = vsel %vm5453, %v5445, %v5450
    %v5455 = vrsqrt.pop %v4914
    %v5456 = vmul.f32 %v5455, %v4914
    %v5457 = vmul.f32 %v5456, %v5455
    %v5458 = vmul.f32 0.5, %v5457
    %v5459 = vsub.f32 1.5, %v5458
    %v5460 = vmul.f32 %v5455, %v5459
    %vm5461 = vweird.f32 %v4914
    %vm5462 = vweird.f32 %v5455
    %vm5463 = vmor %vm5461, %vm5462
    %v5464 = vsel %vm5463, %v5455, %v5460
    %v5465 = vrsqrt.pop %v4915
    %v5466 = vmul.f32 %v5465, %v4915
    %v5467 = vmul.f32 %v5466, %v5465
    %v5468 = vmul.f32 0.5, %v5467
    %v5469 = vsub.f32 1.5, %v5468
    %v5470 = vmul.f32 %v5465, %v5469
    %vm5471 = vweird.f32 %v4915
    %vm5472 = vweird.f32 %v5465
    %vm5473 = vmor %vm5471, %vm5472
    %v5474 = vsel %vm5473, %v5465, %v5470
    %v5475 = vrsqrt.pop %v4916
    %v5476 = vmul.f32 %v5475, %v4916
    %v5477 = vmul.f32 %v5476, %v5475
    %v5478 = vmul.f32 0.5, %v5477
    %v5479 = vsub.f32 1.5, %v5478
    %v5480 = vmul.f32 %v5475, %v5479
    %vm5481 = vweird.f32 %v4916
    %vm5482 = vweird.f32 %v5475
    %vm5483 = vmor %vm5481, %vm5482
    %v5484 = vsel %vm5483, %v5475, %v5480
    %v5485 = vrsqrt.pop %v4917
    %v5486 = vmul.f32 %v5485, %v4917
    %v5487 = vmul.f32 %v5486, %v5485
    %v5488 = vmul.f32 0.5, %v5487
    %v5489 = vsub.f32 1.5, %v5488
    %v5490 = vmul.f32 %v5485, %v5489
    %vm5491 = vweird.f32 %v4917
    %vm5492 = vweird.f32 %v5485
    %vm5493 = vmor %vm5491, %vm5492
    %v5494 = vsel %vm5493, %v5485, %v5490
    %v5495 = vrsqrt.pop %v4918
    %v5496 = vmul.f32 %v5495, %v4918
    %v5497 = vmul.f32 %v5496, %v5495
    %v5498 = vmul.f32 0.5, %v5497
    %v5499 = vsub.f32 1.5, %v5498
    %v5500 = vmul.f32 %v5495, %v5499
    %vm5501 = vweird.f32 %v4918
    %vm5502 = vweird.f32 %v5495
    %vm5503 = vmor %vm5501, %vm5502
    %v5504 = vsel %vm5503, %v5495, %v5500
    %v5505 = vrsqrt.pop %v4919
    %v5506 = vmul.f32 %v5505, %v4919
    %v5507 = vmul.f32 %v5506, %v5505
    %v5508 = vmul.f32 0.5, %v5507
    %v5509 = vsub.f32 1.5, %v5508
    %v5510 = vmul.f32 %v5505, %v5509
    %vm5511 = vweird.f32 %v4919
    %vm5512 = vweird.f32 %v5505
    %vm5513 = vmor %vm5511, %vm5512
    %v5514 = vsel %vm5513, %v5505, %v5510
    %v5515 = vrsqrt.pop %v4920
    %v5516 = vmul.f32 %v5515, %v4920
    %v5517 = vmul.f32 %v5516, %v5515
    %v5518 = vmul.f32 0.5, %v5517
    %v5519 = vsub.f32 1.5, %v5518
    %v5520 = vmul.f32 %v5515, %v5519
    %vm5521 = vweird.f32 %v4920
    %vm5522 = vweird.f32 %v5515
    %vm5523 = vmor %vm5521, %vm5522
    %v5524 = vsel %vm5523, %v5515, %v5520
    %v5525 = vrsqrt.pop %v4921
    %v5526 = vmul.f32 %v5525, %v4921
    %v5527 = vmul.f32 %v5526, %v5525
    %v5528 = vmul.f32 0.5, %v5527
    %v5529 = vsub.f32 1.5, %v5528
    %v5530 = vmul.f32 %v5525, %v5529
    %vm5531 = vweird.f32 %v4921
    %vm5532 = vweird.f32 %v5525
    %vm5533 = vmor %vm5531, %vm5532
    %v5534 = vsel %vm5533, %v5525, %v5530
    %v5535 = vrsqrt.pop %v4922
    %v5536 = vmul.f32 %v5535, %v4922
    %v5537 = vmul.f32 %v5536, %v5535
    %v5538 = vmul.f32 0.5, %v5537
    %v5539 = vsub.f32 1.5, %v5538
    %v5540 = vmul.f32 %v5535, %v5539
    %vm5541 = vweird.f32 %v4922
    %vm5542 = vweird.f32 %v5535
    %vm5543 = vmor %vm5541, %vm5542
    %v5544 = vsel %vm5543, %v5535, %v5540
    %v5545 = vrsqrt.pop %v4923
    %v5546 = vmul.f32 %v5545, %v4923
    %v5547 = vmul.f32 %v5546, %v5545
    %v5548 = vmul.f32 0.5, %v5547
    %v5549 = vsub.f32 1.5, %v5548
    %v5550 = vmul.f32 %v5545, %v5549
    %vm5551 = vweird.f32 %v4923
    %vm5552 = vweird.f32 %v5545
    %vm5553 = vmor %vm5551, %vm5552
    %v5554 = vsel %vm5553, %v5545, %v5550
    %v5555 = vrsqrt.pop %v4924
    %v5556 = vmul.f32 %v5555, %v4924
    %v5557 = vmul.f32 %v5556, %v5555
    %v5558 = vmul.f32 0.5, %v5557
    %v5559 = vsub.f32 1.5, %v5558
    %v5560 = vmul.f32 %v5555, %v5559
    %vm5561 = vweird.f32 %v4924
    %vm5562 = vweird.f32 %v5555
    %vm5563 = vmor %vm5561, %vm5562
    %v5564 = vsel %vm5563, %v5555, %v5560
    %v5565 = vmul.f32 %v4349, %v4934
    %v5566 = vmul.f32 %v4350, %v4934
    %v5567 = vmul.f32 %v4351, %v4944
    %v5568 = vmul.f32 %v4352, %v4944
    %v5569 = vmul.f32 %v4353, %v4954
    %v5570 = vmul.f32 %v4354, %v4954
    %v5571 = vmul.f32 %v4355, %v4964
    %v5572 = vmul.f32 %v4356, %v4964
    %v5573 = vmul.f32 %v4357, %v4974
    %v5574 = vmul.f32 %v4358, %v4974
    %v5575 = vmul.f32 %v4359, %v4984
    %v5576 = vmul.f32 %v4360, %v4984
    %v5577 = vmul.f32 %v4361, %v4994
    %v5578 = vmul.f32 %v4362, %v4994
    %v5579 = vmul.f32 %v4363, %v5004
    %v5580 = vmul.f32 %v4364, %v5004
    %v5581 = vmul.f32 %v4365, %v5014
    %v5582 = vmul.f32 %v4366, %v5014
    %v5583 = vmul.f32 %v4367, %v5024
    %v5584 = vmul.f32 %v4368, %v5024
    %v5585 = vmul.f32 %v4369, %v5034
    %v5586 = vmul.f32 %v4370, %v5034
    %v5587 = vmul.f32 %v4371, %v5044
    %v5588 = vmul.f32 %v4372, %v5044
    %v5589 = vmul.f32 %v4373, %v5054
    %v5590 = vmul.f32 %v4374, %v5054
    %v5591 = vmul.f32 %v4375, %v5064
    %v5592 = vmul.f32 %v4376, %v5064
    %v5593 = vmul.f32 %v4377, %v5074
    %v5594 = vmul.f32 %v4378, %v5074
    %v5595 = vmul.f32 %v4379, %v5084
    %v5596 = vmul.f32 %v4380, %v5084
    %v5597 = vmul.f32 %v4381, %v5094
    %v5598 = vmul.f32 %v4382, %v5094
    %v5599 = vmul.f32 %v4383, %v5104
    %v5600 = vmul.f32 %v4384, %v5104
    %v5601 = vmul.f32 %v4385, %v5114
    %v5602 = vmul.f32 %v4386, %v5114
    %v5603 = vmul.f32 %v4387, %v5124
    %v5604 = vmul.f32 %v4388, %v5124
    %v5605 = vmul.f32 %v4389, %v5134
    %v5606 = vmul.f32 %v4390, %v5134
    %v5607 = vmul.f32 %v4391, %v5144
    %v5608 = vmul.f32 %v4392, %v5144
    %v5609 = vmul.f32 %v4393, %v5154
    %v5610 = vmul.f32 %v4394, %v5154
    %v5611 = vmul.f32 %v4395, %v5164
    %v5612 = vmul.f32 %v4396, %v5164
    %v5613 = vmul.f32 %v4397, %v5174
    %v5614 = vmul.f32 %v4398, %v5174
    %v5615 = vmul.f32 %v4399, %v5184
    %v5616 = vmul.f32 %v4400, %v5184
    %v5617 = vmul.f32 %v4401, %v5194
    %v5618 = vmul.f32 %v4402, %v5194
    %v5619 = vmul.f32 %v4403, %v5204
    %v5620 = vmul.f32 %v4404, %v5204
    %v5621 = vmul.f32 %v4405, %v5214
    %v5622 = vmul.f32 %v4406, %v5214
    %v5623 = vmul.f32 %v4407, %v5224
    %v5624 = vmul.f32 %v4408, %v5224
    %v5625 = vmul.f32 %v4409, %v5234
    %v5626 = vmul.f32 %v4410, %v5234
    %v5627 = vmul.f32 %v4411, %v5244
    %v5628 = vmul.f32 %v4412, %v5244
    %v5629 = vmul.f32 %v4413, %v5254
    %v5630 = vmul.f32 %v4414, %v5254
    %v5631 = vmul.f32 %v4415, %v5264
    %v5632 = vmul.f32 %v4416, %v5264
    %v5633 = vmul.f32 %v4417, %v5274
    %v5634 = vmul.f32 %v4418, %v5274
    %v5635 = vmul.f32 %v4419, %v5284
    %v5636 = vmul.f32 %v4420, %v5284
    %v5637 = vmul.f32 %v4421, %v5294
    %v5638 = vmul.f32 %v4422, %v5294
    %v5639 = vmul.f32 %v4423, %v5304
    %v5640 = vmul.f32 %v4424, %v5304
    %v5641 = vmul.f32 %v4425, %v5314
    %v5642 = vmul.f32 %v4426, %v5314
    %v5643 = vmul.f32 %v4427, %v5324
    %v5644 = vmul.f32 %v4428, %v5324
    %v5645 = vmul.f32 %v4429, %v5334
    %v5646 = vmul.f32 %v4430, %v5334
    %v5647 = vmul.f32 %v4431, %v5344
    %v5648 = vmul.f32 %v4432, %v5344
    %v5649 = vmul.f32 %v4433, %v5354
    %v5650 = vmul.f32 %v4434, %v5354
    %v5651 = vmul.f32 %v4435, %v5364
    %v5652 = vmul.f32 %v4436, %v5364
    %v5653 = vmul.f32 %v4437, %v5374
    %v5654 = vmul.f32 %v4438, %v5374
    %v5655 = vmul.f32 %v4439, %v5384
    %v5656 = vmul.f32 %v4440, %v5384
    %v5657 = vmul.f32 %v4441, %v5394
    %v5658 = vmul.f32 %v4442, %v5394
    %v5659 = vmul.f32 %v4443, %v5404
    %v5660 = vmul.f32 %v4444, %v5404
    %v5661 = vmul.f32 %v4445, %v5414
    %v5662 = vmul.f32 %v4446, %v5414
    %v5663 = vmul.f32 %v4447, %v5424
    %v5664 = vmul.f32 %v4448, %v5424
    %v5665 = vmul.f32 %v4449, %v5434
    %v5666 = vmul.f32 %v4450, %v5434
    %v5667 = vmul.f32 %v4451, %v5444
    %v5668 = vmul.f32 %v4452, %v5444
    %v5669 = vmul.f32 %v4453, %v5454
    %v5670 = vmul.f32 %v4454, %v5454
    %v5671 = vmul.f32 %v4455, %v5464
    %v5672 = vmul.f32 %v4456, %v5464
    %v5673 = vmul.f32 %v4457, %v5474
    %v5674 = vmul.f32 %v4458, %v5474
    %v5675 = vmul.f32 %v4459, %v5484
    %v5676 = vmul.f32 %v4460, %v5484
    %v5677 = vmul.f32 %v4461, %v5494
    %v5678 = vmul.f32 %v4462, %v5494
    %v5679 = vmul.f32 %v4463, %v5504
    %v5680 = vmul.f32 %v4464, %v5504
    %v5681 = vmul.f32 %v4465, %v5514
    %v5682 = vmul.f32 %v4466, %v5514
    %v5683 = vmul.f32 %v4467, %v5524
    %v5684 = vmul.f32 %v4468, %v5524
    %v5685 = vmul.f32 %v4469, %v5534
    %v5686 = vmul.f32 %v4470, %v5534
    %v5687 = vmul.f32 %v4471, %v5544
    %v5688 = vmul.f32 %v4472, %v5544
    %v5689 = vmul.f32 %v4473, %v5554
    %v5690 = vmul.f32 %v4474, %v5554
    %v5691 = vmul.f32 %v4475, %v5564
    %v5692 = vmul.f32 %v4476, %v5564
    %v5694 = vperm.slane %v215, 0
    %v5695 = vperm.slane %v215, 1
    %v5698 = vmul.f32 %v5565, %v5694
    %v5699 = vmul.f32 %v5566, %v5695
    %v5700 = vmul.f32 %v5567, %v5694
    %v5701 = vmul.f32 %v5568, %v5695
    %v5702 = vmul.f32 %v5569, %v5694
    %v5703 = vmul.f32 %v5570, %v5695
    %v5704 = vmul.f32 %v5571, %v5694
    %v5705 = vmul.f32 %v5572, %v5695
    %v5706 = vmul.f32 %v5573, %v5694
    %v5707 = vmul.f32 %v5574, %v5695
    %v5708 = vmul.f32 %v5575, %v5694
    %v5709 = vmul.f32 %v5576, %v5695
    %v5710 = vmul.f32 %v5577, %v5694
    %v5711 = vmul.f32 %v5578, %v5695
    %v5712 = vmul.f32 %v5579, %v5694
    %v5713 = vmul.f32 %v5580, %v5695
    %v5714 = vmul.f32 %v5581, %v5694
    %v5715 = vmul.f32 %v5582, %v5695
    %v5716 = vmul.f32 %v5583, %v5694
    %v5717 = vmul.f32 %v5584, %v5695
    %v5718 = vmul.f32 %v5585, %v5694
    %v5719 = vmul.f32 %v5586, %v5695
    %v5720 = vmul.f32 %v5587, %v5694
    %v5721 = vmul.f32 %v5588, %v5695
    %v5722 = vmul.f32 %v5589, %v5694
    %v5723 = vmul.f32 %v5590, %v5695
    %v5724 = vmul.f32 %v5591, %v5694
    %v5725 = vmul.f32 %v5592, %v5695
    %v5726 = vmul.f32 %v5593, %v5694
    %v5727 = vmul.f32 %v5594, %v5695
    %v5728 = vmul.f32 %v5595, %v5694
    %v5729 = vmul.f32 %v5596, %v5695
    %v5730 = vmul.f32 %v5597, %v5694
    %v5731 = vmul.f32 %v5598, %v5695
    %v5732 = vmul.f32 %v5599, %v5694
    %v5733 = vmul.f32 %v5600, %v5695
    %v5734 = vmul.f32 %v5601, %v5694
    %v5735 = vmul.f32 %v5602, %v5695
    %v5736 = vmul.f32 %v5603, %v5694
    %v5737 = vmul.f32 %v5604, %v5695
    %v5738 = vmul.f32 %v5605, %v5694
    %v5739 = vmul.f32 %v5606, %v5695
    %v5740 = vmul.f32 %v5607, %v5694
    %v5741 = vmul.f32 %v5608, %v5695
    %v5742 = vmul.f32 %v5609, %v5694
    %v5743 = vmul.f32 %v5610, %v5695
    %v5744 = vmul.f32 %v5611, %v5694
    %v5745 = vmul.f32 %v5612, %v5695
    %v5746 = vmul.f32 %v5613, %v5694
    %v5747 = vmul.f32 %v5614, %v5695
    %v5748 = vmul.f32 %v5615, %v5694
    %v5749 = vmul.f32 %v5616, %v5695
    %v5750 = vmul.f32 %v5617, %v5694
    %v5751 = vmul.f32 %v5618, %v5695
    %v5752 = vmul.f32 %v5619, %v5694
    %v5753 = vmul.f32 %v5620, %v5695
    %v5754 = vmul.f32 %v5621, %v5694
    %v5755 = vmul.f32 %v5622, %v5695
    %v5756 = vmul.f32 %v5623, %v5694
    %v5757 = vmul.f32 %v5624, %v5695
    %v5758 = vmul.f32 %v5625, %v5694
    %v5759 = vmul.f32 %v5626, %v5695
    %v5760 = vmul.f32 %v5627, %v5694
    %v5761 = vmul.f32 %v5628, %v5695
    %v5762 = vmul.f32 %v5629, %v5694
    %v5763 = vmul.f32 %v5630, %v5695
    %v5764 = vmul.f32 %v5631, %v5694
    %v5765 = vmul.f32 %v5632, %v5695
    %v5766 = vmul.f32 %v5633, %v5694
    %v5767 = vmul.f32 %v5634, %v5695
    %v5768 = vmul.f32 %v5635, %v5694
    %v5769 = vmul.f32 %v5636, %v5695
    %v5770 = vmul.f32 %v5637, %v5694
    %v5771 = vmul.f32 %v5638, %v5695
    %v5772 = vmul.f32 %v5639, %v5694
    %v5773 = vmul.f32 %v5640, %v5695
    %v5774 = vmul.f32 %v5641, %v5694
    %v5775 = vmul.f32 %v5642, %v5695
    %v5776 = vmul.f32 %v5643, %v5694
    %v5777 = vmul.f32 %v5644, %v5695
    %v5778 = vmul.f32 %v5645, %v5694
    %v5779 = vmul.f32 %v5646, %v5695
    %v5780 = vmul.f32 %v5647, %v5694
    %v5781 = vmul.f32 %v5648, %v5695
    %v5782 = vmul.f32 %v5649, %v5694
    %v5783 = vmul.f32 %v5650, %v5695
    %v5784 = vmul.f32 %v5651, %v5694
    %v5785 = vmul.f32 %v5652, %v5695
    %v5786 = vmul.f32 %v5653, %v5694
    %v5787 = vmul.f32 %v5654, %v5695
    %v5788 = vmul.f32 %v5655, %v5694
    %v5789 = vmul.f32 %v5656, %v5695
    %v5790 = vmul.f32 %v5657, %v5694
    %v5791 = vmul.f32 %v5658, %v5695
    %v5792 = vmul.f32 %v5659, %v5694
    %v5793 = vmul.f32 %v5660, %v5695
    %v5794 = vmul.f32 %v5661, %v5694
    %v5795 = vmul.f32 %v5662, %v5695
    %v5796 = vmul.f32 %v5663, %v5694
    %v5797 = vmul.f32 %v5664, %v5695
    %v5798 = vmul.f32 %v5665, %v5694
    %v5799 = vmul.f32 %v5666, %v5695
    %v5800 = vmul.f32 %v5667, %v5694
    %v5801 = vmul.f32 %v5668, %v5695
    %v5802 = vmul.f32 %v5669, %v5694
    %v5803 = vmul.f32 %v5670, %v5695
    %v5804 = vmul.f32 %v5671, %v5694
    %v5805 = vmul.f32 %v5672, %v5695
    %v5806 = vmul.f32 %v5673, %v5694
    %v5807 = vmul.f32 %v5674, %v5695
    %v5808 = vmul.f32 %v5675, %v5694
    %v5809 = vmul.f32 %v5676, %v5695
    %v5810 = vmul.f32 %v5677, %v5694
    %v5811 = vmul.f32 %v5678, %v5695
    %v5812 = vmul.f32 %v5679, %v5694
    %v5813 = vmul.f32 %v5680, %v5695
    %v5814 = vmul.f32 %v5681, %v5694
    %v5815 = vmul.f32 %v5682, %v5695
    %v5816 = vmul.f32 %v5683, %v5694
    %v5817 = vmul.f32 %v5684, %v5695
    %v5818 = vmul.f32 %v5685, %v5694
    %v5819 = vmul.f32 %v5686, %v5695
    %v5820 = vmul.f32 %v5687, %v5694
    %v5821 = vmul.f32 %v5688, %v5695
    %v5822 = vmul.f32 %v5689, %v5694
    %v5823 = vmul.f32 %v5690, %v5695
    %v5824 = vmul.f32 %v5691, %v5694
    %v5825 = vmul.f32 %v5692, %v5695
    %v5827 = vperm.slane %v217, 0
    %v5828 = vperm.slane %v217, 1
    %v5831 = vadd.f32 %v5698, %v5827
    %v5832 = vadd.f32 %v5699, %v5828
    %v5833 = vadd.f32 %v5700, %v5827
    %v5834 = vadd.f32 %v5701, %v5828
    %v5835 = vadd.f32 %v5702, %v5827
    %v5836 = vadd.f32 %v5703, %v5828
    %v5837 = vadd.f32 %v5704, %v5827
    %v5838 = vadd.f32 %v5705, %v5828
    %v5839 = vadd.f32 %v5706, %v5827
    %v5840 = vadd.f32 %v5707, %v5828
    %v5841 = vadd.f32 %v5708, %v5827
    %v5842 = vadd.f32 %v5709, %v5828
    %v5843 = vadd.f32 %v5710, %v5827
    %v5844 = vadd.f32 %v5711, %v5828
    %v5845 = vadd.f32 %v5712, %v5827
    %v5846 = vadd.f32 %v5713, %v5828
    %v5847 = vadd.f32 %v5714, %v5827
    %v5848 = vadd.f32 %v5715, %v5828
    %v5849 = vadd.f32 %v5716, %v5827
    %v5850 = vadd.f32 %v5717, %v5828
    %v5851 = vadd.f32 %v5718, %v5827
    %v5852 = vadd.f32 %v5719, %v5828
    %v5853 = vadd.f32 %v5720, %v5827
    %v5854 = vadd.f32 %v5721, %v5828
    %v5855 = vadd.f32 %v5722, %v5827
    %v5856 = vadd.f32 %v5723, %v5828
    %v5857 = vadd.f32 %v5724, %v5827
    %v5858 = vadd.f32 %v5725, %v5828
    %v5859 = vadd.f32 %v5726, %v5827
    %v5860 = vadd.f32 %v5727, %v5828
    %v5861 = vadd.f32 %v5728, %v5827
    %v5862 = vadd.f32 %v5729, %v5828
    %v5863 = vadd.f32 %v5730, %v5827
    %v5864 = vadd.f32 %v5731, %v5828
    %v5865 = vadd.f32 %v5732, %v5827
    %v5866 = vadd.f32 %v5733, %v5828
    %v5867 = vadd.f32 %v5734, %v5827
    %v5868 = vadd.f32 %v5735, %v5828
    %v5869 = vadd.f32 %v5736, %v5827
    %v5870 = vadd.f32 %v5737, %v5828
    %v5871 = vadd.f32 %v5738, %v5827
    %v5872 = vadd.f32 %v5739, %v5828
    %v5873 = vadd.f32 %v5740, %v5827
    %v5874 = vadd.f32 %v5741, %v5828
    %v5875 = vadd.f32 %v5742, %v5827
    %v5876 = vadd.f32 %v5743, %v5828
    %v5877 = vadd.f32 %v5744, %v5827
    %v5878 = vadd.f32 %v5745, %v5828
    %v5879 = vadd.f32 %v5746, %v5827
    %v5880 = vadd.f32 %v5747, %v5828
    %v5881 = vadd.f32 %v5748, %v5827
    %v5882 = vadd.f32 %v5749, %v5828
    %v5883 = vadd.f32 %v5750, %v5827
    %v5884 = vadd.f32 %v5751, %v5828
    %v5885 = vadd.f32 %v5752, %v5827
    %v5886 = vadd.f32 %v5753, %v5828
    %v5887 = vadd.f32 %v5754, %v5827
    %v5888 = vadd.f32 %v5755, %v5828
    %v5889 = vadd.f32 %v5756, %v5827
    %v5890 = vadd.f32 %v5757, %v5828
    %v5891 = vadd.f32 %v5758, %v5827
    %v5892 = vadd.f32 %v5759, %v5828
    %v5893 = vadd.f32 %v5760, %v5827
    %v5894 = vadd.f32 %v5761, %v5828
    %v5895 = vadd.f32 %v5762, %v5827
    %v5896 = vadd.f32 %v5763, %v5828
    %v5897 = vadd.f32 %v5764, %v5827
    %v5898 = vadd.f32 %v5765, %v5828
    %v5899 = vadd.f32 %v5766, %v5827
    %v5900 = vadd.f32 %v5767, %v5828
    %v5901 = vadd.f32 %v5768, %v5827
    %v5902 = vadd.f32 %v5769, %v5828
    %v5903 = vadd.f32 %v5770, %v5827
    %v5904 = vadd.f32 %v5771, %v5828
    %v5905 = vadd.f32 %v5772, %v5827
    %v5906 = vadd.f32 %v5773, %v5828
    %v5907 = vadd.f32 %v5774, %v5827
    %v5908 = vadd.f32 %v5775, %v5828
    %v5909 = vadd.f32 %v5776, %v5827
    %v5910 = vadd.f32 %v5777, %v5828
    %v5911 = vadd.f32 %v5778, %v5827
    %v5912 = vadd.f32 %v5779, %v5828
    %v5913 = vadd.f32 %v5780, %v5827
    %v5914 = vadd.f32 %v5781, %v5828
    %v5915 = vadd.f32 %v5782, %v5827
    %v5916 = vadd.f32 %v5783, %v5828
    %v5917 = vadd.f32 %v5784, %v5827
    %v5918 = vadd.f32 %v5785, %v5828
    %v5919 = vadd.f32 %v5786, %v5827
    %v5920 = vadd.f32 %v5787, %v5828
    %v5921 = vadd.f32 %v5788, %v5827
    %v5922 = vadd.f32 %v5789, %v5828
    %v5923 = vadd.f32 %v5790, %v5827
    %v5924 = vadd.f32 %v5791, %v5828
    %v5925 = vadd.f32 %v5792, %v5827
    %v5926 = vadd.f32 %v5793, %v5828
    %v5927 = vadd.f32 %v5794, %v5827
    %v5928 = vadd.f32 %v5795, %v5828
    %v5929 = vadd.f32 %v5796, %v5827
    %v5930 = vadd.f32 %v5797, %v5828
    %v5931 = vadd.f32 %v5798, %v5827
    %v5932 = vadd.f32 %v5799, %v5828
    %v5933 = vadd.f32 %v5800, %v5827
    %v5934 = vadd.f32 %v5801, %v5828
    %v5935 = vadd.f32 %v5802, %v5827
    %v5936 = vadd.f32 %v5803, %v5828
    %v5937 = vadd.f32 %v5804, %v5827
    %v5938 = vadd.f32 %v5805, %v5828
    %v5939 = vadd.f32 %v5806, %v5827
    %v5940 = vadd.f32 %v5807, %v5828
    %v5941 = vadd.f32 %v5808, %v5827
    %v5942 = vadd.f32 %v5809, %v5828
    %v5943 = vadd.f32 %v5810, %v5827
    %v5944 = vadd.f32 %v5811, %v5828
    %v5945 = vadd.f32 %v5812, %v5827
    %v5946 = vadd.f32 %v5813, %v5828
    %v5947 = vadd.f32 %v5814, %v5827
    %v5948 = vadd.f32 %v5815, %v5828
    %v5949 = vadd.f32 %v5816, %v5827
    %v5950 = vadd.f32 %v5817, %v5828
    %v5951 = vadd.f32 %v5818, %v5827
    %v5952 = vadd.f32 %v5819, %v5828
    %v5953 = vadd.f32 %v5820, %v5827
    %v5954 = vadd.f32 %v5821, %v5828
    %v5955 = vadd.f32 %v5822, %v5827
    %v5956 = vadd.f32 %v5823, %v5828
    %v5957 = vadd.f32 %v5824, %v5827
    %v5958 = vadd.f32 %v5825, %v5828
    %v5959 = vadd.f32 %v79, %v5831
    %v5960 = vadd.f32 %v80, %v5832
    %v5961 = vadd.f32 %v81, %v5833
    %v5962 = vadd.f32 %v82, %v5834
    %v5963 = vadd.f32 %v83, %v5835
    %v5964 = vadd.f32 %v84, %v5836
    %v5965 = vadd.f32 %v85, %v5837
    %v5966 = vadd.f32 %v86, %v5838
    %v5967 = vadd.f32 %v87, %v5839
    %v5968 = vadd.f32 %v88, %v5840
    %v5969 = vadd.f32 %v89, %v5841
    %v5970 = vadd.f32 %v90, %v5842
    %v5971 = vadd.f32 %v91, %v5843
    %v5972 = vadd.f32 %v92, %v5844
    %v5973 = vadd.f32 %v93, %v5845
    %v5974 = vadd.f32 %v94, %v5846
    %v5975 = vadd.f32 %v95, %v5847
    %v5976 = vadd.f32 %v96, %v5848
    %v5977 = vadd.f32 %v97, %v5849
    %v5978 = vadd.f32 %v98, %v5850
    %v5979 = vadd.f32 %v99, %v5851
    %v5980 = vadd.f32 %v100, %v5852
    %v5981 = vadd.f32 %v101, %v5853
    %v5982 = vadd.f32 %v102, %v5854
    %v5983 = vadd.f32 %v103, %v5855
    %v5984 = vadd.f32 %v104, %v5856
    %v5985 = vadd.f32 %v105, %v5857
    %v5986 = vadd.f32 %v106, %v5858
    %v5987 = vadd.f32 %v107, %v5859
    %v5988 = vadd.f32 %v108, %v5860
    %v5989 = vadd.f32 %v109, %v5861
    %v5990 = vadd.f32 %v110, %v5862
    %v5991 = vadd.f32 %v111, %v5863
    %v5992 = vadd.f32 %v112, %v5864
    %v5993 = vadd.f32 %v113, %v5865
    %v5994 = vadd.f32 %v114, %v5866
    %v5995 = vadd.f32 %v115, %v5867
    %v5996 = vadd.f32 %v116, %v5868
    %v5997 = vadd.f32 %v117, %v5869
    %v5998 = vadd.f32 %v118, %v5870
    %v5999 = vadd.f32 %v119, %v5871
    %v6000 = vadd.f32 %v120, %v5872
    %v6001 = vadd.f32 %v121, %v5873
    %v6002 = vadd.f32 %v122, %v5874
    %v6003 = vadd.f32 %v123, %v5875
    %v6004 = vadd.f32 %v124, %v5876
    %v6005 = vadd.f32 %v125, %v5877
    %v6006 = vadd.f32 %v126, %v5878
    %v6007 = vadd.f32 %v127, %v5879
    %v6008 = vadd.f32 %v128, %v5880
    %v6009 = vadd.f32 %v129, %v5881
    %v6010 = vadd.f32 %v130, %v5882
    %v6011 = vadd.f32 %v131, %v5883
    %v6012 = vadd.f32 %v132, %v5884
    %v6013 = vadd.f32 %v133, %v5885
    %v6014 = vadd.f32 %v134, %v5886
    %v6015 = vadd.f32 %v135, %v5887
    %v6016 = vadd.f32 %v136, %v5888
    %v6017 = vadd.f32 %v137, %v5889
    %v6018 = vadd.f32 %v138, %v5890
    %v6019 = vadd.f32 %v139, %v5891
    %v6020 = vadd.f32 %v140, %v5892
    %v6021 = vadd.f32 %v141, %v5893
    %v6022 = vadd.f32 %v142, %v5894
    %v6023 = vadd.f32 %v143, %v5895
    %v6024 = vadd.f32 %v144, %v5896
    %v6025 = vadd.f32 %v145, %v5897
    %v6026 = vadd.f32 %v146, %v5898
    %v6027 = vadd.f32 %v147, %v5899
    %v6028 = vadd.f32 %v148, %v5900
    %v6029 = vadd.f32 %v149, %v5901
    %v6030 = vadd.f32 %v150, %v5902
    %v6031 = vadd.f32 %v151, %v5903
    %v6032 = vadd.f32 %v152, %v5904
    %v6033 = vadd.f32 %v153, %v5905
    %v6034 = vadd.f32 %v154, %v5906
    %v6035 = vadd.f32 %v155, %v5907
    %v6036 = vadd.f32 %v156, %v5908
    %v6037 = vadd.f32 %v157, %v5909
    %v6038 = vadd.f32 %v158, %v5910
    %v6039 = vadd.f32 %v159, %v5911
    %v6040 = vadd.f32 %v160, %v5912
    %v6041 = vadd.f32 %v161, %v5913
    %v6042 = vadd.f32 %v162, %v5914
    %v6043 = vadd.f32 %v163, %v5915
    %v6044 = vadd.f32 %v164, %v5916
    %v6045 = vadd.f32 %v165, %v5917
    %v6046 = vadd.f32 %v166, %v5918
    %v6047 = vadd.f32 %v167, %v5919
    %v6048 = vadd.f32 %v168, %v5920
    %v6049 = vadd.f32 %v169, %v5921
    %v6050 = vadd.f32 %v170, %v5922
    %v6051 = vadd.f32 %v171, %v5923
    %v6052 = vadd.f32 %v172, %v5924
    %v6053 = vadd.f32 %v173, %v5925
    %v6054 = vadd.f32 %v174, %v5926
    %v6055 = vadd.f32 %v175, %v5927
    %v6056 = vadd.f32 %v176, %v5928
    %v6057 = vadd.f32 %v177, %v5929
    %v6058 = vadd.f32 %v178, %v5930
    %v6059 = vadd.f32 %v179, %v5931
    %v6060 = vadd.f32 %v180, %v5932
    %v6061 = vadd.f32 %v181, %v5933
    %v6062 = vadd.f32 %v182, %v5934
    %v6063 = vadd.f32 %v183, %v5935
    %v6064 = vadd.f32 %v184, %v5936
    %v6065 = vadd.f32 %v185, %v5937
    %v6066 = vadd.f32 %v186, %v5938
    %v6067 = vadd.f32 %v187, %v5939
    %v6068 = vadd.f32 %v188, %v5940
    %v6069 = vadd.f32 %v189, %v5941
    %v6070 = vadd.f32 %v190, %v5942
    %v6071 = vadd.f32 %v191, %v5943
    %v6072 = vadd.f32 %v192, %v5944
    %v6073 = vadd.f32 %v193, %v5945
    %v6074 = vadd.f32 %v194, %v5946
    %v6075 = vadd.f32 %v195, %v5947
    %v6076 = vadd.f32 %v196, %v5948
    %v6077 = vadd.f32 %v197, %v5949
    %v6078 = vadd.f32 %v198, %v5950
    %v6079 = vadd.f32 %v199, %v5951
    %v6080 = vadd.f32 %v200, %v5952
    %v6081 = vadd.f32 %v201, %v5953
    %v6082 = vadd.f32 %v202, %v5954
    %v6083 = vadd.f32 %v203, %v5955
    %v6084 = vadd.f32 %v204, %v5956
    %v6085 = vadd.f32 %v205, %v5957
    %v6086 = vadd.f32 %v206, %v5958
    %6087 = vst [vmem:[#allocation10] sm:$0xff] %v5959
    %6088 = vst [vmem:[#allocation10 + $0x8] sm:$0xff] %v5960
    %6089 = vst [vmem:[#allocation10 + $0x10] sm:$0xff] %v5961
    %6090 = vst [vmem:[#allocation10 + $0x18] sm:$0xff] %v5962
    %6091 = vst [vmem:[#allocation10 + $0x20] sm:$0xff] %v5963
    %6092 = vst [vmem:[#allocation10 + $0x28] sm:$0xff] %v5964
    %6093 = vst [vmem:[#allocation10 + $0x30] sm:$0xff] %v5965
    %6094 = vst [vmem:[#allocation10 + $0x38] sm:$0xff] %v5966
    %6095 = vst [vmem:[#allocation10 + $0x40] sm:$0xff] %v5967
    %6096 = vst [vmem:[#allocation10 + $0x48] sm:$0xff] %v5968
    %6097 = vst [vmem:[#allocation10 + $0x50] sm:$0xff] %v5969
    %6098 = vst [vmem:[#allocation10 + $0x58] sm:$0xff] %v5970
    %6099 = vst [vmem:[#allocation10 + $0x60] sm:$0xff] %v5971
    %6100 = vst [vmem:[#allocation10 + $0x68] sm:$0xff] %v5972
    %6101 = vst [vmem:[#allocation10 + $0x70] sm:$0xff] %v5973
    %6102 = vst [vmem:[#allocation10 + $0x78] sm:$0xff] %v5974
    %6103 = vst [vmem:[#allocation10 + $0x80] sm:$0xff] %v5975
    %6104 = vst [vmem:[#allocation10 + $0x88] sm:$0xff] %v5976
    %6105 = vst [vmem:[#allocation10 + $0x90] sm:$0xff] %v5977
    %6106 = vst [vmem:[#allocation10 + $0x98] sm:$0xff] %v5978
    %6107 = vst [vmem:[#allocation10 + $0xa0] sm:$0xff] %v5979
    %6108 = vst [vmem:[#allocation10 + $0xa8] sm:$0xff] %v5980
    %6109 = vst [vmem:[#allocation10 + $0xb0] sm:$0xff] %v5981
    %6110 = vst [vmem:[#allocation10 + $0xb8] sm:$0xff] %v5982
    %6111 = vst [vmem:[#allocation10 + $0xc0] sm:$0xff] %v5983
    %6112 = vst [vmem:[#allocation10 + $0xc8] sm:$0xff] %v5984
    %6113 = vst [vmem:[#allocation10 + $0xd0] sm:$0xff] %v5985
    %6114 = vst [vmem:[#allocation10 + $0xd8] sm:$0xff] %v5986
    %6115 = vst [vmem:[#allocation10 + $0xe0] sm:$0xff] %v5987
    %6116 = vst [vmem:[#allocation10 + $0xe8] sm:$0xff] %v5988
    %6117 = vst [vmem:[#allocation10 + $0xf0] sm:$0xff] %v5989
    %6118 = vst [vmem:[#allocation10 + $0xf8] sm:$0xff] %v5990
    %6119 = vst [vmem:[#allocation10 + $0x100] sm:$0xff] %v5991
    %6120 = vst [vmem:[#allocation10 + $0x108] sm:$0xff] %v5992
    %6121 = vst [vmem:[#allocation10 + $0x110] sm:$0xff] %v5993
    %6122 = vst [vmem:[#allocation10 + $0x118] sm:$0xff] %v5994
    %6123 = vst [vmem:[#allocation10 + $0x120] sm:$0xff] %v5995
    %6124 = vst [vmem:[#allocation10 + $0x128] sm:$0xff] %v5996
    %6125 = vst [vmem:[#allocation10 + $0x130] sm:$0xff] %v5997
    %6126 = vst [vmem:[#allocation10 + $0x138] sm:$0xff] %v5998
    %6127 = vst [vmem:[#allocation10 + $0x140] sm:$0xff] %v5999
    %6128 = vst [vmem:[#allocation10 + $0x148] sm:$0xff] %v6000
    %6129 = vst [vmem:[#allocation10 + $0x150] sm:$0xff] %v6001
    %6130 = vst [vmem:[#allocation10 + $0x158] sm:$0xff] %v6002
    %6131 = vst [vmem:[#allocation10 + $0x160] sm:$0xff] %v6003
    %6132 = vst [vmem:[#allocation10 + $0x168] sm:$0xff] %v6004
    %6133 = vst [vmem:[#allocation10 + $0x170] sm:$0xff] %v6005
    %6134 = vst [vmem:[#allocation10 + $0x178] sm:$0xff] %v6006
    %6135 = vst [vmem:[#allocation10 + $0x180] sm:$0xff] %v6007
    %6136 = vst [vmem:[#allocation10 + $0x188] sm:$0xff] %v6008
    %6137 = vst [vmem:[#allocation10 + $0x190] sm:$0xff] %v6009
    %6138 = vst [vmem:[#allocation10 + $0x198] sm:$0xff] %v6010
    %6139 = vst [vmem:[#allocation10 + $0x1a0] sm:$0xff] %v6011
    %6140 = vst [vmem:[#allocation10 + $0x1a8] sm:$0xff] %v6012
    %6141 = vst [vmem:[#allocation10 + $0x1b0] sm:$0xff] %v6013
    %6142 = vst [vmem:[#allocation10 + $0x1b8] sm:$0xff] %v6014
    %6143 = vst [vmem:[#allocation10 + $0x1c0] sm:$0xff] %v6015
    %6144 = vst [vmem:[#allocation10 + $0x1c8] sm:$0xff] %v6016
    %6145 = vst [vmem:[#allocation10 + $0x1d0] sm:$0xff] %v6017
    %6146 = vst [vmem:[#allocation10 + $0x1d8] sm:$0xff] %v6018
    %6147 = vst [vmem:[#allocation10 + $0x1e0] sm:$0xff] %v6019
    %6148 = vst [vmem:[#allocation10 + $0x1e8] sm:$0xff] %v6020
    %6149 = vst [vmem:[#allocation10 + $0x1f0] sm:$0xff] %v6021
    %6150 = vst [vmem:[#allocation10 + $0x1f8] sm:$0xff] %v6022
    %6151 = vst [vmem:[#allocation10 + $0x200] sm:$0xff] %v6023
    %6152 = vst [vmem:[#allocation10 + $0x208] sm:$0xff] %v6024
    %6153 = vst [vmem:[#allocation10 + $0x210] sm:$0xff] %v6025
    %6154 = vst [vmem:[#allocation10 + $0x218] sm:$0xff] %v6026
    %6155 = vst [vmem:[#allocation10 + $0x220] sm:$0xff] %v6027
    %6156 = vst [vmem:[#allocation10 + $0x228] sm:$0xff] %v6028
    %6157 = vst [vmem:[#allocation10 + $0x230] sm:$0xff] %v6029
    %6158 = vst [vmem:[#allocation10 + $0x238] sm:$0xff] %v6030
    %6159 = vst [vmem:[#allocation10 + $0x240] sm:$0xff] %v6031
    %6160 = vst [vmem:[#allocation10 + $0x248] sm:$0xff] %v6032
    %6161 = vst [vmem:[#allocation10 + $0x250] sm:$0xff] %v6033
    %6162 = vst [vmem:[#allocation10 + $0x258] sm:$0xff] %v6034
    %6163 = vst [vmem:[#allocation10 + $0x260] sm:$0xff] %v6035
    %6164 = vst [vmem:[#allocation10 + $0x268] sm:$0xff] %v6036
    %6165 = vst [vmem:[#allocation10 + $0x270] sm:$0xff] %v6037
    %6166 = vst [vmem:[#allocation10 + $0x278] sm:$0xff] %v6038
    %6167 = vst [vmem:[#allocation10 + $0x280] sm:$0xff] %v6039
    %6168 = vst [vmem:[#allocation10 + $0x288] sm:$0xff] %v6040
    %6169 = vst [vmem:[#allocation10 + $0x290] sm:$0xff] %v6041
    %6170 = vst [vmem:[#allocation10 + $0x298] sm:$0xff] %v6042
    %6171 = vst [vmem:[#allocation10 + $0x2a0] sm:$0xff] %v6043
    %6172 = vst [vmem:[#allocation10 + $0x2a8] sm:$0xff] %v6044
    %6173 = vst [vmem:[#allocation10 + $0x2b0] sm:$0xff] %v6045
    %6174 = vst [vmem:[#allocation10 + $0x2b8] sm:$0xff] %v6046
    %6175 = vst [vmem:[#allocation10 + $0x2c0] sm:$0xff] %v6047
    %6176 = vst [vmem:[#allocation10 + $0x2c8] sm:$0xff] %v6048
    %6177 = vst [vmem:[#allocation10 + $0x2d0] sm:$0xff] %v6049
    %6178 = vst [vmem:[#allocation10 + $0x2d8] sm:$0xff] %v6050
    %6179 = vst [vmem:[#allocation10 + $0x2e0] sm:$0xff] %v6051
    %6180 = vst [vmem:[#allocation10 + $0x2e8] sm:$0xff] %v6052
    %6181 = vst [vmem:[#allocation10 + $0x2f0] sm:$0xff] %v6053
    %6182 = vst [vmem:[#allocation10 + $0x2f8] sm:$0xff] %v6054
    %6183 = vst [vmem:[#allocation10 + $0x300] sm:$0xff] %v6055
    %6184 = vst [vmem:[#allocation10 + $0x308] sm:$0xff] %v6056
    %6185 = vst [vmem:[#allocation10 + $0x310] sm:$0xff] %v6057
    %6186 = vst [vmem:[#allocation10 + $0x318] sm:$0xff] %v6058
    %6187 = vst [vmem:[#allocation10 + $0x320] sm:$0xff] %v6059
    %6188 = vst [vmem:[#allocation10 + $0x328] sm:$0xff] %v6060
    %6189 = vst [vmem:[#allocation10 + $0x330] sm:$0xff] %v6061
    %6190 = vst [vmem:[#allocation10 + $0x338] sm:$0xff] %v6062
    %6191 = vst [vmem:[#allocation10 + $0x340] sm:$0xff] %v6063
    %6192 = vst [vmem:[#allocation10 + $0x348] sm:$0xff] %v6064
    %6193 = vst [vmem:[#allocation10 + $0x350] sm:$0xff] %v6065
    %6194 = vst [vmem:[#allocation10 + $0x358] sm:$0xff] %v6066
    %6195 = vst [vmem:[#allocation10 + $0x360] sm:$0xff] %v6067
    %6196 = vst [vmem:[#allocation10 + $0x368] sm:$0xff] %v6068
    %6197 = vst [vmem:[#allocation10 + $0x370] sm:$0xff] %v6069
    %6198 = vst [vmem:[#allocation10 + $0x378] sm:$0xff] %v6070
    %6199 = vst [vmem:[#allocation10 + $0x380] sm:$0xff] %v6071
    %6200 = vst [vmem:[#allocation10 + $0x388] sm:$0xff] %v6072
    %6201 = vst [vmem:[#allocation10 + $0x390] sm:$0xff] %v6073
    %6202 = vst [vmem:[#allocation10 + $0x398] sm:$0xff] %v6074
    %6203 = vst [vmem:[#allocation10 + $0x3a0] sm:$0xff] %v6075
    %6204 = vst [vmem:[#allocation10 + $0x3a8] sm:$0xff] %v6076
    %6205 = vst [vmem:[#allocation10 + $0x3b0] sm:$0xff] %v6077
    %6206 = vst [vmem:[#allocation10 + $0x3b8] sm:$0xff] %v6078
    %6207 = vst [vmem:[#allocation10 + $0x3c0] sm:$0xff] %v6079
    %6208 = vst [vmem:[#allocation10 + $0x3c8] sm:$0xff] %v6080
    %6209 = vst [vmem:[#allocation10 + $0x3d0] sm:$0xff] %v6081
    %6210 = vst [vmem:[#allocation10 + $0x3d8] sm:$0xff] %v6082
    %6211 = vst [vmem:[#allocation10 + $0x3e0] sm:$0xff] %v6083
    %6212 = vst [vmem:[#allocation10 + $0x3e8] sm:$0xff] %v6084
    %6213 = vst [vmem:[#allocation10 + $0x3f0] sm:$0xff] %v6085
    %6214 = vst [vmem:[#allocation10 + $0x3f8] sm:$0xff] %v6086
    // Predicated region
    $region34: #{tpu_custom_call.1} parent=1 // pred_check
      _
    $region35: #{tpu_custom_call.1} parent=1 // pred_check_branch
      %6216 = sbr.rel (0) target = $region37
    $region36: #{tpu_custom_call.1} parent=1 // pred_region
      %6218 = vsyncadd [#allocation4], 0
      %s6219 = sshll.u32 [#allocation10], 4
      %s6220 = int_to_ptr.vmem [resolvable:$true] %s6219
      %s6221 = sshll.u32 %s4, 4
      %s6222 = int_to_ptr.hbm [resolvable:$true] %s6221
      %6227 = dma.vmem_to_hbm [thread:$0]  %s6220, 16384, %s6222, [#allocation4], 256, 256, 16
    $region37: #{tpu_custom_call.1} parent=1 // pred_fallthru
      _
    // Predicated region
    $region38: #{tpu_custom_call.1} parent=1 // pred_check
      _
    $region39: #{tpu_custom_call.1} parent=1 // pred_check_branch
      %6229 = sbr.rel (0) target = $region41
    $region40: #{tpu_custom_call.1} parent=1 // pred_region
      %6231 = dma.done [#allocation4], 16384
    $region41: #{tpu_custom_call.1} parent=1 // pred_fallthru
      _
    %6232 = vsyncpa [#allocation3], 1
    %6233 = vsyncpa [#allocation6], 1
    %6234 = vsyncpa [#allocation9], 1
    %6235 = vsyncpa [#allocation4], 1

</llo_original>
